<compile_context>
chip_gen: v7x
topology: tpu7x:2x2x1
jax: 0.10.0
libtpu: 0.0.40
codegen_flags: <defaults>
</compile_context>

<pallas_src>
import jax
import jax.numpy as jnp
import numpy as np
from jax.experimental import pallas as pl
from jax.experimental.pallas import tpu as pltpu

# ----------------------------- static config --------------------------------
B = 8                 # batch
C = 4                 # number of (numerical) tabular columns
H = 8                 # hidden_dim: per-column embedding width from pre-encoder
D = C * H             # flattened TabNet input dim (= 32)
N_D = 16              # decision width
N_A = 16              # attention width
ND_NA = N_D + N_A     # 32
N_STEPS = 3
N_GLU = 4             # 2 shared + 2 step-specific GLU layers per transformer
N_TRANSFORMERS = N_STEPS + 1   # initial splitter + one per decision step
GAMMA = 1.3
OUT_DIM = 4
SQRT_HALF = 0.7071067811865476
SPARSEMAX_ITERS = 20  # interval halves per iter; 2^-21 ~ 5e-7 tau error

# ----------------------------- slab index map --------------------------------
W_PRE = 0


def _w_glu(inst, li, half):
    return 1 + (inst * N_GLU + li) * 2 + half


W_ATT0 = 1 + N_TRANSFORMERS * N_GLU * 2      # 33
W_FINAL = W_ATT0 + N_STEPS                   # 36
N_W = W_FINAL + 1                            # 37 weight entries, each [32, 32]
N_B = W_FINAL                                # 36 bias entries, each [B, 32]


# ----------------------------- shared math -----------------------------------
def _sigmoid(x):
    # 0.5*(tanh(x/2)+1): exact sigmoid, EUP transcendental, no inf intermediate.
    return 0.5 * (jnp.tanh(0.5 * x) + 1.0)


def _sparsemax(z, n_iter):
    """Sparsemax over the last axis via bisection on the threshold tau.

    f(tau) = sum(max(z - tau, 0)) - 1 is monotone decreasing with its root in
    [max(z) - 1, max(z)].  Only the lower bound `lo` is carried; the interval
    half-width is a compile-time constant halving per unrolled iteration, so
    each iteration is: add-const -> sub -> max -> lane-reduce -> cmp -> where
    -> add on the serial chain.
    """
    zmax = jnp.max(z, axis=-1, keepdims=True)
    lo = zmax - 1.0
    half = 0.5
    for _ in range(n_iter):
        mid = lo + half
        over = jnp.sum(jnp.maximum(z - mid, 0.0), axis=-1, keepdims=True) > 1.0
        lo = lo + jnp.where(over, half, 0.0)
        half *= 0.5
    return jnp.maximum(z - (lo + half), 0.0)


# ------------------------------ Pallas kernel --------------------------------
def tabnet_kernel(x_ref, w_ref, b_ref, o_ref):
    x = x_ref[...]                                   # [B, 32], lanes C..31 zero
    bsz = x.shape[0]

    def glu(h, inst, li):
        wl = _w_glu(inst, li, 0)
        wg = _w_glu(inst, li, 1)
        lin = jnp.dot(h, w_ref[wl], preferred_element_type=jnp.float32) + b_ref[wl]
        gate = jnp.dot(h, w_ref[wg], preferred_element_type=jnp.float32) + b_ref[wg]
        return lin * _sigmoid(gate)

    def feat_transformer(h, inst):
        out = glu(h, inst, 0)                        # first layer: no residual
        for li in range(1, N_GLU):
            out = (glu(out, inst, li) + out) * SQRT_HALF
        return out                                   # [B, ND_NA], full width

    # Pre-encoder (per-column linear embedding folded into one block-diagonal
    # 32x32 matmul) + initial eval-mode BatchNorm, both folded at pack time.
    # Rows C..31 of W_PRE are zero, matching the zero-padded input lanes.
    feat = (jnp.dot(x, w_ref[W_PRE], preferred_element_type=jnp.float32)
            + b_ref[W_PRE])                          # [B, D]

    prior = jnp.ones((bsz, D), jnp.float32)
    ft = feat_transformer(feat, 0)                   # initial splitter output
    agg = jnp.zeros((bsz, ND_NA), jnp.float32)

    for step in range(N_STEPS):
        # Attentive transformer: fc (rows 0..N_D-1 zero => consumes only the
        # attention half of ft) with BN scale folded, plus BN bias.
        m_pre = (jnp.dot(ft, w_ref[W_ATT0 + step],
                         preferred_element_type=jnp.float32)
                 + b_ref[W_ATT0 + step])
        mask = _sparsemax(m_pre * prior, n_iter=SPARSEMAX_ITERS)
        prior = (GAMMA - mask) * prior
        ft = feat_transformer(mask * feat, step + 1)
        # ReLU the full 32-wide output; the attention half is killed by the
        # zero rows of the padded final weight (ReLU is elementwise => exact).
        agg = agg + jnp.maximum(ft, 0.0)

    # Lane-dense store: full 32-wide result; wrapper slices to OUT_DIM.
    o_ref[...] = jnp.dot(agg, w_ref[W_FINAL], preferred_element_type=jnp.float32)


def tabnet_forward(x, w_slab, b_slab):
    bsz = x.shape[0]
    assert bsz == B, "biases are pre-broadcast to the static batch size"
    # Zero-pad the C raw columns out to the full 32-lane width (rows C..31 of
    # W_PRE are zero, so the result is identical).
    x_pad = jnp.zeros((bsz, ND_NA), jnp.float32).at[:, :C].set(x)
    vspec = pl.BlockSpec(memory_space=pltpu.MemorySpace.VMEM)
    out32 = pl.pallas_call(
        tabnet_kernel,
        out_shape=jax.ShapeDtypeStruct((bsz, ND_NA), jnp.float32),
        in_specs=[vspec, vspec, vspec],
        out_specs=vspec,
        cost_estimate=pl.CostEstimate(flops=600_000, transcendentals=4_000,
                                      bytes_accessed=200_000),
    )(x_pad, w_slab, b_slab)
    return out32[:, :OUT_DIM]


# ------------------------- deterministic parameters --------------------------
def make_params(key):
    ks = jax.random.split(key, 16)

    def nrm(k, shape, scale):
        return (jax.random.normal(k, shape) * scale).astype(jnp.float32)

    # Pre-encoder: per-column weight/bias [C, H].
    # TODO(synk): categorical-column embedding lookups from the pre-encoder
    # metadata are not reproduced; all columns are treated as numerical linear
    # embeddings.
    col_w = nrm(ks[0], (C, H), 0.5)
    col_b = nrm(ks[1], (C, H), 0.1)

    # TODO(synk): BatchNorm layers are folded to eval-mode scale/bias; training
    # mode (batch statistics / ghost-BN virtual batches) is not reproduced.
    init_s = 1.0 + nrm(ks[2], (1, D), 0.05)
    init_b = nrm(ks[3], (1, D), 0.05)

    shared_fc0 = nrm(ks[4], (D, 2 * ND_NA), 0.2)
    shared_fc1 = nrm(ks[5], (ND_NA, 2 * ND_NA), 0.2)
    glu_bn_s = 1.0 + nrm(ks[6], (N_TRANSFORMERS, N_GLU, 1, 2 * ND_NA), 0.05)
    glu_bn_b = nrm(ks[7], (N_TRANSFORMERS, N_GLU, 1, 2 * ND_NA), 0.05)
    spec_fc = nrm(ks[8], (N_TRANSFORMERS, 2, ND_NA, 2 * ND_NA), 0.2)

    att_fc = nrm(ks[9], (N_STEPS, N_A, D), 0.2)
    att_bn_s = 1.0 + nrm(ks[10], (N_STEPS, 1, D), 0.05)
    att_bn_b = nrm(ks[11], (N_STEPS, 1, D), 0.05)

    final_w = nrm(ks[12], (N_D, OUT_DIM), 0.2)

    params = (col_w, col_b, init_s, init_b, shared_fc0, shared_fc1,
              glu_bn_s, glu_bn_b, spec_fc, att_fc, att_bn_s, att_bn_b, final_w)
    x = jax.random.normal(ks[13], (B, C), jnp.float32)
    return x, params


def pack_params(params):
    """Fold eval-mode BN scales into weights, split GLU fcs into lin/gate
    halves, pre-broadcast biases to the batch height, and pack everything into
    one weight slab + one bias slab."""
    (col_w, col_b, init_s, init_b, shared_fc0, shared_fc1,
     glu_bn_s, glu_bn_b, spec_fc, att_fc, att_bn_s, att_bn_b, final_w) = params

    w_entries = [None] * N_W
    b_entries = [None] * N_B

    def bias_tile(b_row):
        # [1, 32] -> [B, 32]: remove the in-kernel sublane broadcast.
        return jnp.broadcast_to(b_row.reshape(1, ND_NA), (B, ND_NA))

    # Pre-encoder block-diagonal weight, initial BN scale folded in.
    pre_w = jnp.zeros((C, D), jnp.float32)
    for c in range(C):
        pre_w = pre_w.at[c, c * H:(c + 1) * H].set(col_w[c])
    pre_w = pre_w * init_s
    pre_b = col_b.reshape(1, D) * init_s + init_b
    w_entries[W_PRE] = jnp.zeros((ND_NA, ND_NA), jnp.float32).at[:C, :].set(pre_w)
    b_entries[W_PRE] = bias_tile(pre_b)

    # GLU fcs: per (instance, layer), linear/gate halves with the per-instance
    # ghost-BN scale folded in; the BN bias stays as the bias add.
    for inst in range(N_TRANSFORMERS):
        fcs = (shared_fc0, shared_fc1, spec_fc[inst, 0], spec_fc[inst, 1])
        for li in range(N_GLU):
            fc = fcs[li]                          # [32, 64]
            s = glu_bn_s[inst, li, 0]             # [64]
            b = glu_bn_b[inst, li, 0]             # [64]
            w_entries[_w_glu(inst, li, 0)] = fc[:, :ND_NA] * s[:ND_NA]
            w_entries[_w_glu(inst, li, 1)] = fc[:, ND_NA:] * s[ND_NA:]
            b_entries[_w_glu(inst, li, 0)] = bias_tile(b[:ND_NA])
            b_entries[_w_glu(inst, li, 1)] = bias_tile(b[ND_NA:])

    # Attentive transformers: BN scale folded; rows 0..N_D-1 zero so feeding
    # the full 32-wide transformer output equals slicing [:, N_D:].
    for step in range(N_STEPS):
        w = att_fc[step] * att_bn_s[step]          # [N_A, D]
        w_entries[W_ATT0 + step] = (
            jnp.zeros((ND_NA, D), jnp.float32).at[N_D:, :].set(w))
        b_entries[W_ATT0 + step] = bias_tile(att_bn_b[step])

    # Final bias-free linear; rows >= N_D and cols >= OUT_DIM are zero.
    w_entries[W_FINAL] = (
        jnp.zeros((ND_NA, ND_NA), jnp.float32).at[:N_D, :OUT_DIM].set(final_w))

    w_slab = jnp.stack(w_entries)                  # [37, 32, 32]
    b_slab = jnp.stack(b_entries)                  # [36, B, 32]
    return w_slab, b_slab


# ------------------------- pure-JAX reference ---------------------------------
def _reference_forward(x, params):
    """Original (unfolded, sliced) TabNet math as plain JAX, for validation."""
    (col_w, col_b, init_s, init_b, shared_fc0, shared_fc1,
     glu_bn_s, glu_bn_b, spec_fc, att_fc, att_bn_s, att_bn_b, final_w) = params
    bsz = x.shape[0]
    hp = jax.lax.Precision.HIGHEST

    feat = (x[:, :, None] * col_w[None, :, :]).reshape(bsz, D) + col_b.reshape(1, D)
    feat = feat * init_s + init_b

    def glu_layer(h, fc_w, bn_s, bn_b):
        z = jnp.dot(h, fc_w, precision=hp) * bn_s + bn_b
        return z[:, :ND_NA] * _sigmoid(z[:, ND_NA:])

    def feat_transformer(h, inst):
        out = glu_layer(h, shared_fc0, glu_bn_s[inst, 0], glu_bn_b[inst, 0])
        out = (glu_layer(out, shared_fc1, glu_bn_s[inst, 1],
                         glu_bn_b[inst, 1]) + out) * SQRT_HALF
        for li in range(2):
            out = (glu_layer(out, spec_fc[inst, li], glu_bn_s[inst, 2 + li],
                             glu_bn_b[inst, 2 + li]) + out) * SQRT_HALF
        return out

    prior = jnp.ones((bsz, D), jnp.float32)
    att = feat_transformer(feat, 0)[:, N_D:]
    agg = jnp.zeros((bsz, N_D), jnp.float32)
    for step in range(N_STEPS):
        m_pre = jnp.dot(att, att_fc[step], precision=hp) * att_bn_s[step] + att_bn_b[step]
        mask = _sparsemax(m_pre * prior, n_iter=40)
        prior = (GAMMA - mask) * prior
        ft = feat_transformer(mask * feat, step + 1)
        agg = agg + jnp.maximum(ft[:, :N_D], 0.0)
        att = ft[:, N_D:]
    return jnp.dot(agg, final_w, precision=hp)


# ----------------------------------- main ------------------------------------
if __name__ == "__main__":
    x, params = make_params(jax.random.PRNGKey(0))
    w_slab, b_slab = pack_params(params)

    out = jax.block_until_ready(tabnet_forward(x, w_slab, b_slab))

    ref = jax.block_until_ready(jax.jit(_reference_forward)(x, params))

    assert out.shape == (B, OUT_DIM) and out.dtype == jnp.float32
    assert bool(jnp.all(jnp.isfinite(out)))
    np.testing.assert_allclose(np.asarray(out), np.asarray(ref),
                               rtol=1e-2, atol=1e-2)
    print("KERNEL_OK")
</pallas_src>

<mosaic_0001>
module attributes {stable_mosaic.version = 11 : i64} {
  func.func @tabnet_kernel(%arg0: memref<8x32xf32, #tpu.memory_space<vmem>>, %arg1: memref<37x32x32xf32, #tpu.memory_space<vmem>>, %arg2: memref<36x8x32xf32, #tpu.memory_space<vmem>>, %arg3: memref<8x32xf32, #tpu.memory_space<vmem>>) attributes {dimension_semantics = [], scalar_prefetch = 0 : i64, scratch_operands = 0 : i64, tpu.core_type = #tpu.core_type<tc>} {
    %c0 = arith.constant 0 : index
    %c0_0 = arith.constant 0 : index
    %0 = vector.load %arg0[%c0, %c0_0] : memref<8x32xf32, #tpu.memory_space<vmem>>, vector<8x32xf32>
    %c0_1 = arith.constant 0 : index
    %c0_2 = arith.constant 0 : index
    %c0_3 = arith.constant 0 : index
    %1 = vector.load %arg1[%c0_1, %c0_2, %c0_3] : memref<37x32x32xf32, #tpu.memory_space<vmem>>, vector<1x32x32xf32>
    %2 = vector.shape_cast %1 : vector<1x32x32xf32> to vector<32x32xf32>
    %cst = arith.constant dense<0.000000e+00> : vector<8x32xf32>
    %3 = tpu.matmul %0, %2, %cst {dimension_numbers = #tpu.dot_dimension_numbers<[1], [0], [0], [1], [0, 0, 1, 1], [], []>} : vector<8x32xf32>, vector<32x32xf32>, vector<8x32xf32> -> vector<8x32xf32>
    %c0_4 = arith.constant 0 : index
    %c0_5 = arith.constant 0 : index
    %c0_6 = arith.constant 0 : index
    %4 = vector.load %arg2[%c0_4, %c0_5, %c0_6] : memref<36x8x32xf32, #tpu.memory_space<vmem>>, vector<1x8x32xf32>
    %5 = vector.shape_cast %4 : vector<1x8x32xf32> to vector<8x32xf32>
    %6 = arith.addf %3, %5 : vector<8x32xf32>
    %cst_7 = arith.constant 1.000000e+00 : f32
    %7 = vector.broadcast %cst_7 : f32 to vector<8x32xf32>
    %c1 = arith.constant 1 : index
    %c0_8 = arith.constant 0 : index
    %c0_9 = arith.constant 0 : index
    %8 = vector.load %arg1[%c1, %c0_8, %c0_9] : memref<37x32x32xf32, #tpu.memory_space<vmem>>, vector<1x32x32xf32>
    %9 = vector.shape_cast %8 : vector<1x32x32xf32> to vector<32x32xf32>
    %cst_10 = arith.constant dense<0.000000e+00> : vector<8x32xf32>
    %10 = tpu.matmul %6, %9, %cst_10 {dimension_numbers = #tpu.dot_dimension_numbers<[1], [0], [0], [1], [0, 0, 1, 1], [], []>} : vector<8x32xf32>, vector<32x32xf32>, vector<8x32xf32> -> vector<8x32xf32>
    %c1_11 = arith.constant 1 : index
    %c0_12 = arith.constant 0 : index
    %c0_13 = arith.constant 0 : index
    %11 = vector.load %arg2[%c1_11, %c0_12, %c0_13] : memref<36x8x32xf32, #tpu.memory_space<vmem>>, vector<1x8x32xf32>
    %12 = vector.shape_cast %11 : vector<1x8x32xf32> to vector<8x32xf32>
    %13 = arith.addf %10, %12 : vector<8x32xf32>
    %c2 = arith.constant 2 : index
    %c0_14 = arith.constant 0 : index
    %c0_15 = arith.constant 0 : index
    %14 = vector.load %arg1[%c2, %c0_14, %c0_15] : memref<37x32x32xf32, #tpu.memory_space<vmem>>, vector<1x32x32xf32>
    %15 = vector.shape_cast %14 : vector<1x32x32xf32> to vector<32x32xf32>
    %cst_16 = arith.constant dense<0.000000e+00> : vector<8x32xf32>
    %16 = tpu.matmul %6, %15, %cst_16 {dimension_numbers = #tpu.dot_dimension_numbers<[1], [0], [0], [1], [0, 0, 1, 1], [], []>} : vector<8x32xf32>, vector<32x32xf32>, vector<8x32xf32> -> vector<8x32xf32>
    %c2_17 = arith.constant 2 : index
    %c0_18 = arith.constant 0 : index
    %c0_19 = arith.constant 0 : index
    %17 = vector.load %arg2[%c2_17, %c0_18, %c0_19] : memref<36x8x32xf32, #tpu.memory_space<vmem>>, vector<1x8x32xf32>
    %18 = vector.shape_cast %17 : vector<1x8x32xf32> to vector<8x32xf32>
    %19 = arith.addf %16, %18 : vector<8x32xf32>
    %cst_20 = arith.constant 5.000000e-01 : f32
    %20 = vector.broadcast %cst_20 : f32 to vector<8x32xf32>
    %21 = arith.mulf %20, %19 : vector<8x32xf32>
    %22 = math.tanh %21 : vector<8x32xf32>
    %cst_21 = arith.constant 1.000000e+00 : f32
    %23 = vector.broadcast %cst_21 : f32 to vector<8x32xf32>
    %24 = arith.addf %22, %23 : vector<8x32xf32>
    %cst_22 = arith.constant 5.000000e-01 : f32
    %25 = vector.broadcast %cst_22 : f32 to vector<8x32xf32>
    %26 = arith.mulf %25, %24 : vector<8x32xf32>
    %27 = arith.mulf %13, %26 : vector<8x32xf32>
    %c3 = arith.constant 3 : index
    %c0_23 = arith.constant 0 : index
    %c0_24 = arith.constant 0 : index
    %28 = vector.load %arg1[%c3, %c0_23, %c0_24] : memref<37x32x32xf32, #tpu.memory_space<vmem>>, vector<1x32x32xf32>
    %29 = vector.shape_cast %28 : vector<1x32x32xf32> to vector<32x32xf32>
    %cst_25 = arith.constant dense<0.000000e+00> : vector<8x32xf32>
    %30 = tpu.matmul %27, %29, %cst_25 {dimension_numbers = #tpu.dot_dimension_numbers<[1], [0], [0], [1], [0, 0, 1, 1], [], []>} : vector<8x32xf32>, vector<32x32xf32>, vector<8x32xf32> -> vector<8x32xf32>
    %c3_26 = arith.constant 3 : index
    %c0_27 = arith.constant 0 : index
    %c0_28 = arith.constant 0 : index
    %31 = vector.load %arg2[%c3_26, %c0_27, %c0_28] : memref<36x8x32xf32, #tpu.memory_space<vmem>>, vector<1x8x32xf32>
    %32 = vector.shape_cast %31 : vector<1x8x32xf32> to vector<8x32xf32>
    %33 = arith.addf %30, %32 : vector<8x32xf32>
    %c4 = arith.constant 4 : index
    %c0_29 = arith.constant 0 : index
    %c0_30 = arith.constant 0 : index
    %34 = vector.load %arg1[%c4, %c0_29, %c0_30] : memref<37x32x32xf32, #tpu.memory_space<vmem>>, vector<1x32x32xf32>
    %35 = vector.shape_cast %34 : vector<1x32x32xf32> to vector<32x32xf32>
    %cst_31 = arith.constant dense<0.000000e+00> : vector<8x32xf32>
    %36 = tpu.matmul %27, %35, %cst_31 {dimension_numbers = #tpu.dot_dimension_numbers<[1], [0], [0], [1], [0, 0, 1, 1], [], []>} : vector<8x32xf32>, vector<32x32xf32>, vector<8x32xf32> -> vector<8x32xf32>
    %c4_32 = arith.constant 4 : index
    %c0_33 = arith.constant 0 : index
    %c0_34 = arith.constant 0 : index
    %37 = vector.load %arg2[%c4_32, %c0_33, %c0_34] : memref<36x8x32xf32, #tpu.memory_space<vmem>>, vector<1x8x32xf32>
    %38 = vector.shape_cast %37 : vector<1x8x32xf32> to vector<8x32xf32>
    %39 = arith.addf %36, %38 : vector<8x32xf32>
    %cst_35 = arith.constant 5.000000e-01 : f32
    %40 = vector.broadcast %cst_35 : f32 to vector<8x32xf32>
    %41 = arith.mulf %40, %39 : vector<8x32xf32>
    %42 = math.tanh %41 : vector<8x32xf32>
    %cst_36 = arith.constant 1.000000e+00 : f32
    %43 = vector.broadcast %cst_36 : f32 to vector<8x32xf32>
    %44 = arith.addf %42, %43 : vector<8x32xf32>
    %cst_37 = arith.constant 5.000000e-01 : f32
    %45 = vector.broadcast %cst_37 : f32 to vector<8x32xf32>
    %46 = arith.mulf %45, %44 : vector<8x32xf32>
    %47 = arith.mulf %33, %46 : vector<8x32xf32>
    %48 = arith.addf %47, %27 : vector<8x32xf32>
    %cst_38 = arith.constant 0.707106769 : f32
    %49 = vector.broadcast %cst_38 : f32 to vector<8x32xf32>
    %50 = arith.mulf %48, %49 : vector<8x32xf32>
    %c5 = arith.constant 5 : index
    %c0_39 = arith.constant 0 : index
    %c0_40 = arith.constant 0 : index
    %51 = vector.load %arg1[%c5, %c0_39, %c0_40] : memref<37x32x32xf32, #tpu.memory_space<vmem>>, vector<1x32x32xf32>
    %52 = vector.shape_cast %51 : vector<1x32x32xf32> to vector<32x32xf32>
    %cst_41 = arith.constant dense<0.000000e+00> : vector<8x32xf32>
    %53 = tpu.matmul %50, %52, %cst_41 {dimension_numbers = #tpu.dot_dimension_numbers<[1], [0], [0], [1], [0, 0, 1, 1], [], []>} : vector<8x32xf32>, vector<32x32xf32>, vector<8x32xf32> -> vector<8x32xf32>
    %c5_42 = arith.constant 5 : index
    %c0_43 = arith.constant 0 : index
    %c0_44 = arith.constant 0 : index
    %54 = vector.load %arg2[%c5_42, %c0_43, %c0_44] : memref<36x8x32xf32, #tpu.memory_space<vmem>>, vector<1x8x32xf32>
    %55 = vector.shape_cast %54 : vector<1x8x32xf32> to vector<8x32xf32>
    %56 = arith.addf %53, %55 : vector<8x32xf32>
    %c6 = arith.constant 6 : index
    %c0_45 = arith.constant 0 : index
    %c0_46 = arith.constant 0 : index
    %57 = vector.load %arg1[%c6, %c0_45, %c0_46] : memref<37x32x32xf32, #tpu.memory_space<vmem>>, vector<1x32x32xf32>
    %58 = vector.shape_cast %57 : vector<1x32x32xf32> to vector<32x32xf32>
    %cst_47 = arith.constant dense<0.000000e+00> : vector<8x32xf32>
    %59 = tpu.matmul %50, %58, %cst_47 {dimension_numbers = #tpu.dot_dimension_numbers<[1], [0], [0], [1], [0, 0, 1, 1], [], []>} : vector<8x32xf32>, vector<32x32xf32>, vector<8x32xf32> -> vector<8x32xf32>
    %c6_48 = arith.constant 6 : index
    %c0_49 = arith.constant 0 : index
    %c0_50 = arith.constant 0 : index
    %60 = vector.load %arg2[%c6_48, %c0_49, %c0_50] : memref<36x8x32xf32, #tpu.memory_space<vmem>>, vector<1x8x32xf32>
    %61 = vector.shape_cast %60 : vector<1x8x32xf32> to vector<8x32xf32>
    %62 = arith.addf %59, %61 : vector<8x32xf32>
    %cst_51 = arith.constant 5.000000e-01 : f32
    %63 = vector.broadcast %cst_51 : f32 to vector<8x32xf32>
    %64 = arith.mulf %63, %62 : vector<8x32xf32>
    %65 = math.tanh %64 : vector<8x32xf32>
    %cst_52 = arith.constant 1.000000e+00 : f32
    %66 = vector.broadcast %cst_52 : f32 to vector<8x32xf32>
    %67 = arith.addf %65, %66 : vector<8x32xf32>
    %cst_53 = arith.constant 5.000000e-01 : f32
    %68 = vector.broadcast %cst_53 : f32 to vector<8x32xf32>
    %69 = arith.mulf %68, %67 : vector<8x32xf32>
    %70 = arith.mulf %56, %69 : vector<8x32xf32>
    %71 = arith.addf %70, %50 : vector<8x32xf32>
    %cst_54 = arith.constant 0.707106769 : f32
    %72 = vector.broadcast %cst_54 : f32 to vector<8x32xf32>
    %73 = arith.mulf %71, %72 : vector<8x32xf32>
    %c7 = arith.constant 7 : index
    %c0_55 = arith.constant 0 : index
    %c0_56 = arith.constant 0 : index
    %74 = vector.load %arg1[%c7, %c0_55, %c0_56] : memref<37x32x32xf32, #tpu.memory_space<vmem>>, vector<1x32x32xf32>
    %75 = vector.shape_cast %74 : vector<1x32x32xf32> to vector<32x32xf32>
    %cst_57 = arith.constant dense<0.000000e+00> : vector<8x32xf32>
    %76 = tpu.matmul %73, %75, %cst_57 {dimension_numbers = #tpu.dot_dimension_numbers<[1], [0], [0], [1], [0, 0, 1, 1], [], []>} : vector<8x32xf32>, vector<32x32xf32>, vector<8x32xf32> -> vector<8x32xf32>
    %c7_58 = arith.constant 7 : index
    %c0_59 = arith.constant 0 : index
    %c0_60 = arith.constant 0 : index
    %77 = vector.load %arg2[%c7_58, %c0_59, %c0_60] : memref<36x8x32xf32, #tpu.memory_space<vmem>>, vector<1x8x32xf32>
    %78 = vector.shape_cast %77 : vector<1x8x32xf32> to vector<8x32xf32>
    %79 = arith.addf %76, %78 : vector<8x32xf32>
    %c8 = arith.constant 8 : index
    %c0_61 = arith.constant 0 : index
    %c0_62 = arith.constant 0 : index
    %80 = vector.load %arg1[%c8, %c0_61, %c0_62] : memref<37x32x32xf32, #tpu.memory_space<vmem>>, vector<1x32x32xf32>
    %81 = vector.shape_cast %80 : vector<1x32x32xf32> to vector<32x32xf32>
    %cst_63 = arith.constant dense<0.000000e+00> : vector<8x32xf32>
    %82 = tpu.matmul %73, %81, %cst_63 {dimension_numbers = #tpu.dot_dimension_numbers<[1], [0], [0], [1], [0, 0, 1, 1], [], []>} : vector<8x32xf32>, vector<32x32xf32>, vector<8x32xf32> -> vector<8x32xf32>
    %c8_64 = arith.constant 8 : index
    %c0_65 = arith.constant 0 : index
    %c0_66 = arith.constant 0 : index
    %83 = vector.load %arg2[%c8_64, %c0_65, %c0_66] : memref<36x8x32xf32, #tpu.memory_space<vmem>>, vector<1x8x32xf32>
    %84 = vector.shape_cast %83 : vector<1x8x32xf32> to vector<8x32xf32>
    %85 = arith.addf %82, %84 : vector<8x32xf32>
    %cst_67 = arith.constant 5.000000e-01 : f32
    %86 = vector.broadcast %cst_67 : f32 to vector<8x32xf32>
    %87 = arith.mulf %86, %85 : vector<8x32xf32>
    %88 = math.tanh %87 : vector<8x32xf32>
    %cst_68 = arith.constant 1.000000e+00 : f32
    %89 = vector.broadcast %cst_68 : f32 to vector<8x32xf32>
    %90 = arith.addf %88, %89 : vector<8x32xf32>
    %cst_69 = arith.constant 5.000000e-01 : f32
    %91 = vector.broadcast %cst_69 : f32 to vector<8x32xf32>
    %92 = arith.mulf %91, %90 : vector<8x32xf32>
    %93 = arith.mulf %79, %92 : vector<8x32xf32>
    %94 = arith.addf %93, %73 : vector<8x32xf32>
    %cst_70 = arith.constant 0.707106769 : f32
    %95 = vector.broadcast %cst_70 : f32 to vector<8x32xf32>
    %96 = arith.mulf %94, %95 : vector<8x32xf32>
    %cst_71 = arith.constant 0.000000e+00 : f32
    %97 = vector.broadcast %cst_71 : f32 to vector<8x32xf32>
    %c33 = arith.constant 33 : index
    %c0_72 = arith.constant 0 : index
    %c0_73 = arith.constant 0 : index
    %98 = vector.load %arg1[%c33, %c0_72, %c0_73] : memref<37x32x32xf32, #tpu.memory_space<vmem>>, vector<1x32x32xf32>
    %99 = vector.shape_cast %98 : vector<1x32x32xf32> to vector<32x32xf32>
    %cst_74 = arith.constant dense<0.000000e+00> : vector<8x32xf32>
    %100 = tpu.matmul %96, %99, %cst_74 {dimension_numbers = #tpu.dot_dimension_numbers<[1], [0], [0], [1], [0, 0, 1, 1], [], []>} : vector<8x32xf32>, vector<32x32xf32>, vector<8x32xf32> -> vector<8x32xf32>
    %c33_75 = arith.constant 33 : index
    %c0_76 = arith.constant 0 : index
    %c0_77 = arith.constant 0 : index
    %101 = vector.load %arg2[%c33_75, %c0_76, %c0_77] : memref<36x8x32xf32, #tpu.memory_space<vmem>>, vector<1x8x32xf32>
    %102 = vector.shape_cast %101 : vector<1x8x32xf32> to vector<8x32xf32>
    %103 = arith.addf %100, %102 : vector<8x32xf32>
    %104 = arith.mulf %103, %7 : vector<8x32xf32>
    %cst_78 = arith.constant dense<0xFF800000> : vector<8xf32>
    %105 = vector.multi_reduction <maximumf>, %104, %cst_78 [1] : vector<8x32xf32> to vector<8xf32>
    %106 = vector.shape_cast %105 : vector<8xf32> to vector<8x1xf32>
    %cst_79 = arith.constant 1.000000e+00 : f32
    %107 = vector.broadcast %cst_79 : f32 to vector<8x1xf32>
    %108 = arith.subf %106, %107 : vector<8x1xf32>
    %cst_80 = arith.constant 5.000000e-01 : f32
    %109 = vector.broadcast %cst_80 : f32 to vector<8x1xf32>
    %110 = arith.addf %108, %109 : vector<8x1xf32>
    %111 = vector.broadcast %110 : vector<8x1xf32> to vector<8x32xf32>
    %112 = arith.subf %104, %111 : vector<8x32xf32>
    %cst_81 = arith.constant 0.000000e+00 : f32
    %113 = vector.broadcast %cst_81 : f32 to vector<8x32xf32>
    %114 = arith.maximumf %112, %113 : vector<8x32xf32>
    %cst_82 = arith.constant dense<0.000000e+00> : vector<8xf32>
    %115 = vector.multi_reduction <add>, %114, %cst_82 [1] : vector<8x32xf32> to vector<8xf32>
    %116 = vector.shape_cast %115 : vector<8xf32> to vector<8x1xf32>
    %cst_83 = arith.constant 1.000000e+00 : f32
    %117 = vector.broadcast %cst_83 : f32 to vector<8x1xf32>
    %118 = arith.cmpf ogt, %116, %117 : vector<8x1xf32>
    %cst_84 = arith.constant 5.000000e-01 : f32
    %cst_85 = arith.constant 0.000000e+00 : f32
    %119 = vector.broadcast %cst_84 : f32 to vector<8x1xf32>
    %120 = vector.broadcast %cst_85 : f32 to vector<8x1xf32>
    %121 = arith.select %118, %119, %120 : vector<8x1xi1>, vector<8x1xf32>
    %122 = arith.addf %108, %121 : vector<8x1xf32>
    %cst_86 = arith.constant 2.500000e-01 : f32
    %123 = vector.broadcast %cst_86 : f32 to vector<8x1xf32>
    %124 = arith.addf %122, %123 : vector<8x1xf32>
    %125 = vector.broadcast %124 : vector<8x1xf32> to vector<8x32xf32>
    %126 = arith.subf %104, %125 : vector<8x32xf32>
    %cst_87 = arith.constant 0.000000e+00 : f32
    %127 = vector.broadcast %cst_87 : f32 to vector<8x32xf32>
    %128 = arith.maximumf %126, %127 : vector<8x32xf32>
    %cst_88 = arith.constant dense<0.000000e+00> : vector<8xf32>
    %129 = vector.multi_reduction <add>, %128, %cst_88 [1] : vector<8x32xf32> to vector<8xf32>
    %130 = vector.shape_cast %129 : vector<8xf32> to vector<8x1xf32>
    %cst_89 = arith.constant 1.000000e+00 : f32
    %131 = vector.broadcast %cst_89 : f32 to vector<8x1xf32>
    %132 = arith.cmpf ogt, %130, %131 : vector<8x1xf32>
    %cst_90 = arith.constant 2.500000e-01 : f32
    %cst_91 = arith.constant 0.000000e+00 : f32
    %133 = vector.broadcast %cst_90 : f32 to vector<8x1xf32>
    %134 = vector.broadcast %cst_91 : f32 to vector<8x1xf32>
    %135 = arith.select %132, %133, %134 : vector<8x1xi1>, vector<8x1xf32>
    %136 = arith.addf %122, %135 : vector<8x1xf32>
    %cst_92 = arith.constant 1.250000e-01 : f32
    %137 = vector.broadcast %cst_92 : f32 to vector<8x1xf32>
    %138 = arith.addf %136, %137 : vector<8x1xf32>
    %139 = vector.broadcast %138 : vector<8x1xf32> to vector<8x32xf32>
    %140 = arith.subf %104, %139 : vector<8x32xf32>
    %cst_93 = arith.constant 0.000000e+00 : f32
    %141 = vector.broadcast %cst_93 : f32 to vector<8x32xf32>
    %142 = arith.maximumf %140, %141 : vector<8x32xf32>
    %cst_94 = arith.constant dense<0.000000e+00> : vector<8xf32>
    %143 = vector.multi_reduction <add>, %142, %cst_94 [1] : vector<8x32xf32> to vector<8xf32>
    %144 = vector.shape_cast %143 : vector<8xf32> to vector<8x1xf32>
    %cst_95 = arith.constant 1.000000e+00 : f32
    %145 = vector.broadcast %cst_95 : f32 to vector<8x1xf32>
    %146 = arith.cmpf ogt, %144, %145 : vector<8x1xf32>
    %cst_96 = arith.constant 1.250000e-01 : f32
    %cst_97 = arith.constant 0.000000e+00 : f32
    %147 = vector.broadcast %cst_96 : f32 to vector<8x1xf32>
    %148 = vector.broadcast %cst_97 : f32 to vector<8x1xf32>
    %149 = arith.select %146, %147, %148 : vector<8x1xi1>, vector<8x1xf32>
    %150 = arith.addf %136, %149 : vector<8x1xf32>
    %cst_98 = arith.constant 6.250000e-02 : f32
    %151 = vector.broadcast %cst_98 : f32 to vector<8x1xf32>
    %152 = arith.addf %150, %151 : vector<8x1xf32>
    %153 = vector.broadcast %152 : vector<8x1xf32> to vector<8x32xf32>
    %154 = arith.subf %104, %153 : vector<8x32xf32>
    %cst_99 = arith.constant 0.000000e+00 : f32
    %155 = vector.broadcast %cst_99 : f32 to vector<8x32xf32>
    %156 = arith.maximumf %154, %155 : vector<8x32xf32>
    %cst_100 = arith.constant dense<0.000000e+00> : vector<8xf32>
    %157 = vector.multi_reduction <add>, %156, %cst_100 [1] : vector<8x32xf32> to vector<8xf32>
    %158 = vector.shape_cast %157 : vector<8xf32> to vector<8x1xf32>
    %cst_101 = arith.constant 1.000000e+00 : f32
    %159 = vector.broadcast %cst_101 : f32 to vector<8x1xf32>
    %160 = arith.cmpf ogt, %158, %159 : vector<8x1xf32>
    %cst_102 = arith.constant 6.250000e-02 : f32
    %cst_103 = arith.constant 0.000000e+00 : f32
    %161 = vector.broadcast %cst_102 : f32 to vector<8x1xf32>
    %162 = vector.broadcast %cst_103 : f32 to vector<8x1xf32>
    %163 = arith.select %160, %161, %162 : vector<8x1xi1>, vector<8x1xf32>
    %164 = arith.addf %150, %163 : vector<8x1xf32>
    %cst_104 = arith.constant 3.125000e-02 : f32
    %165 = vector.broadcast %cst_104 : f32 to vector<8x1xf32>
    %166 = arith.addf %164, %165 : vector<8x1xf32>
    %167 = vector.broadcast %166 : vector<8x1xf32> to vector<8x32xf32>
    %168 = arith.subf %104, %167 : vector<8x32xf32>
    %cst_105 = arith.constant 0.000000e+00 : f32
    %169 = vector.broadcast %cst_105 : f32 to vector<8x32xf32>
    %170 = arith.maximumf %168, %169 : vector<8x32xf32>
    %cst_106 = arith.constant dense<0.000000e+00> : vector<8xf32>
    %171 = vector.multi_reduction <add>, %170, %cst_106 [1] : vector<8x32xf32> to vector<8xf32>
    %172 = vector.shape_cast %171 : vector<8xf32> to vector<8x1xf32>
    %cst_107 = arith.constant 1.000000e+00 : f32
    %173 = vector.broadcast %cst_107 : f32 to vector<8x1xf32>
    %174 = arith.cmpf ogt, %172, %173 : vector<8x1xf32>
    %cst_108 = arith.constant 3.125000e-02 : f32
    %cst_109 = arith.constant 0.000000e+00 : f32
    %175 = vector.broadcast %cst_108 : f32 to vector<8x1xf32>
    %176 = vector.broadcast %cst_109 : f32 to vector<8x1xf32>
    %177 = arith.select %174, %175, %176 : vector<8x1xi1>, vector<8x1xf32>
    %178 = arith.addf %164, %177 : vector<8x1xf32>
    %cst_110 = arith.constant 1.562500e-02 : f32
    %179 = vector.broadcast %cst_110 : f32 to vector<8x1xf32>
    %180 = arith.addf %178, %179 : vector<8x1xf32>
    %181 = vector.broadcast %180 : vector<8x1xf32> to vector<8x32xf32>
    %182 = arith.subf %104, %181 : vector<8x32xf32>
    %cst_111 = arith.constant 0.000000e+00 : f32
    %183 = vector.broadcast %cst_111 : f32 to vector<8x32xf32>
    %184 = arith.maximumf %182, %183 : vector<8x32xf32>
    %cst_112 = arith.constant dense<0.000000e+00> : vector<8xf32>
    %185 = vector.multi_reduction <add>, %184, %cst_112 [1] : vector<8x32xf32> to vector<8xf32>
    %186 = vector.shape_cast %185 : vector<8xf32> to vector<8x1xf32>
    %cst_113 = arith.constant 1.000000e+00 : f32
    %187 = vector.broadcast %cst_113 : f32 to vector<8x1xf32>
    %188 = arith.cmpf ogt, %186, %187 : vector<8x1xf32>
    %cst_114 = arith.constant 1.562500e-02 : f32
    %cst_115 = arith.constant 0.000000e+00 : f32
    %189 = vector.broadcast %cst_114 : f32 to vector<8x1xf32>
    %190 = vector.broadcast %cst_115 : f32 to vector<8x1xf32>
    %191 = arith.select %188, %189, %190 : vector<8x1xi1>, vector<8x1xf32>
    %192 = arith.addf %178, %191 : vector<8x1xf32>
    %cst_116 = arith.constant 7.812500e-03 : f32
    %193 = vector.broadcast %cst_116 : f32 to vector<8x1xf32>
    %194 = arith.addf %192, %193 : vector<8x1xf32>
    %195 = vector.broadcast %194 : vector<8x1xf32> to vector<8x32xf32>
    %196 = arith.subf %104, %195 : vector<8x32xf32>
    %cst_117 = arith.constant 0.000000e+00 : f32
    %197 = vector.broadcast %cst_117 : f32 to vector<8x32xf32>
    %198 = arith.maximumf %196, %197 : vector<8x32xf32>
    %cst_118 = arith.constant dense<0.000000e+00> : vector<8xf32>
    %199 = vector.multi_reduction <add>, %198, %cst_118 [1] : vector<8x32xf32> to vector<8xf32>
    %200 = vector.shape_cast %199 : vector<8xf32> to vector<8x1xf32>
    %cst_119 = arith.constant 1.000000e+00 : f32
    %201 = vector.broadcast %cst_119 : f32 to vector<8x1xf32>
    %202 = arith.cmpf ogt, %200, %201 : vector<8x1xf32>
    %cst_120 = arith.constant 7.812500e-03 : f32
    %cst_121 = arith.constant 0.000000e+00 : f32
    %203 = vector.broadcast %cst_120 : f32 to vector<8x1xf32>
    %204 = vector.broadcast %cst_121 : f32 to vector<8x1xf32>
    %205 = arith.select %202, %203, %204 : vector<8x1xi1>, vector<8x1xf32>
    %206 = arith.addf %192, %205 : vector<8x1xf32>
    %cst_122 = arith.constant 3.906250e-03 : f32
    %207 = vector.broadcast %cst_122 : f32 to vector<8x1xf32>
    %208 = arith.addf %206, %207 : vector<8x1xf32>
    %209 = vector.broadcast %208 : vector<8x1xf32> to vector<8x32xf32>
    %210 = arith.subf %104, %209 : vector<8x32xf32>
    %cst_123 = arith.constant 0.000000e+00 : f32
    %211 = vector.broadcast %cst_123 : f32 to vector<8x32xf32>
    %212 = arith.maximumf %210, %211 : vector<8x32xf32>
    %cst_124 = arith.constant dense<0.000000e+00> : vector<8xf32>
    %213 = vector.multi_reduction <add>, %212, %cst_124 [1] : vector<8x32xf32> to vector<8xf32>
    %214 = vector.shape_cast %213 : vector<8xf32> to vector<8x1xf32>
    %cst_125 = arith.constant 1.000000e+00 : f32
    %215 = vector.broadcast %cst_125 : f32 to vector<8x1xf32>
    %216 = arith.cmpf ogt, %214, %215 : vector<8x1xf32>
    %cst_126 = arith.constant 3.906250e-03 : f32
    %cst_127 = arith.constant 0.000000e+00 : f32
    %217 = vector.broadcast %cst_126 : f32 to vector<8x1xf32>
    %218 = vector.broadcast %cst_127 : f32 to vector<8x1xf32>
    %219 = arith.select %216, %217, %218 : vector<8x1xi1>, vector<8x1xf32>
    %220 = arith.addf %206, %219 : vector<8x1xf32>
    %cst_128 = arith.constant 0.001953125 : f32
    %221 = vector.broadcast %cst_128 : f32 to vector<8x1xf32>
    %222 = arith.addf %220, %221 : vector<8x1xf32>
    %223 = vector.broadcast %222 : vector<8x1xf32> to vector<8x32xf32>
    %224 = arith.subf %104, %223 : vector<8x32xf32>
    %cst_129 = arith.constant 0.000000e+00 : f32
    %225 = vector.broadcast %cst_129 : f32 to vector<8x32xf32>
    %226 = arith.maximumf %224, %225 : vector<8x32xf32>
    %cst_130 = arith.constant dense<0.000000e+00> : vector<8xf32>
    %227 = vector.multi_reduction <add>, %226, %cst_130 [1] : vector<8x32xf32> to vector<8xf32>
    %228 = vector.shape_cast %227 : vector<8xf32> to vector<8x1xf32>
    %cst_131 = arith.constant 1.000000e+00 : f32
    %229 = vector.broadcast %cst_131 : f32 to vector<8x1xf32>
    %230 = arith.cmpf ogt, %228, %229 : vector<8x1xf32>
    %cst_132 = arith.constant 0.001953125 : f32
    %cst_133 = arith.constant 0.000000e+00 : f32
    %231 = vector.broadcast %cst_132 : f32 to vector<8x1xf32>
    %232 = vector.broadcast %cst_133 : f32 to vector<8x1xf32>
    %233 = arith.select %230, %231, %232 : vector<8x1xi1>, vector<8x1xf32>
    %234 = arith.addf %220, %233 : vector<8x1xf32>
    %cst_134 = arith.constant 9.765625E-4 : f32
    %235 = vector.broadcast %cst_134 : f32 to vector<8x1xf32>
    %236 = arith.addf %234, %235 : vector<8x1xf32>
    %237 = vector.broadcast %236 : vector<8x1xf32> to vector<8x32xf32>
    %238 = arith.subf %104, %237 : vector<8x32xf32>
    %cst_135 = arith.constant 0.000000e+00 : f32
    %239 = vector.broadcast %cst_135 : f32 to vector<8x32xf32>
    %240 = arith.maximumf %238, %239 : vector<8x32xf32>
    %cst_136 = arith.constant dense<0.000000e+00> : vector<8xf32>
    %241 = vector.multi_reduction <add>, %240, %cst_136 [1] : vector<8x32xf32> to vector<8xf32>
    %242 = vector.shape_cast %241 : vector<8xf32> to vector<8x1xf32>
    %cst_137 = arith.constant 1.000000e+00 : f32
    %243 = vector.broadcast %cst_137 : f32 to vector<8x1xf32>
    %244 = arith.cmpf ogt, %242, %243 : vector<8x1xf32>
    %cst_138 = arith.constant 9.765625E-4 : f32
    %cst_139 = arith.constant 0.000000e+00 : f32
    %245 = vector.broadcast %cst_138 : f32 to vector<8x1xf32>
    %246 = vector.broadcast %cst_139 : f32 to vector<8x1xf32>
    %247 = arith.select %244, %245, %246 : vector<8x1xi1>, vector<8x1xf32>
    %248 = arith.addf %234, %247 : vector<8x1xf32>
    %cst_140 = arith.constant 4.8828125E-4 : f32
    %249 = vector.broadcast %cst_140 : f32 to vector<8x1xf32>
    %250 = arith.addf %248, %249 : vector<8x1xf32>
    %251 = vector.broadcast %250 : vector<8x1xf32> to vector<8x32xf32>
    %252 = arith.subf %104, %251 : vector<8x32xf32>
    %cst_141 = arith.constant 0.000000e+00 : f32
    %253 = vector.broadcast %cst_141 : f32 to vector<8x32xf32>
    %254 = arith.maximumf %252, %253 : vector<8x32xf32>
    %cst_142 = arith.constant dense<0.000000e+00> : vector<8xf32>
    %255 = vector.multi_reduction <add>, %254, %cst_142 [1] : vector<8x32xf32> to vector<8xf32>
    %256 = vector.shape_cast %255 : vector<8xf32> to vector<8x1xf32>
    %cst_143 = arith.constant 1.000000e+00 : f32
    %257 = vector.broadcast %cst_143 : f32 to vector<8x1xf32>
    %258 = arith.cmpf ogt, %256, %257 : vector<8x1xf32>
    %cst_144 = arith.constant 4.8828125E-4 : f32
    %cst_145 = arith.constant 0.000000e+00 : f32
    %259 = vector.broadcast %cst_144 : f32 to vector<8x1xf32>
    %260 = vector.broadcast %cst_145 : f32 to vector<8x1xf32>
    %261 = arith.select %258, %259, %260 : vector<8x1xi1>, vector<8x1xf32>
    %262 = arith.addf %248, %261 : vector<8x1xf32>
    %cst_146 = arith.constant 2.44140625E-4 : f32
    %263 = vector.broadcast %cst_146 : f32 to vector<8x1xf32>
    %264 = arith.addf %262, %263 : vector<8x1xf32>
    %265 = vector.broadcast %264 : vector<8x1xf32> to vector<8x32xf32>
    %266 = arith.subf %104, %265 : vector<8x32xf32>
    %cst_147 = arith.constant 0.000000e+00 : f32
    %267 = vector.broadcast %cst_147 : f32 to vector<8x32xf32>
    %268 = arith.maximumf %266, %267 : vector<8x32xf32>
    %cst_148 = arith.constant dense<0.000000e+00> : vector<8xf32>
    %269 = vector.multi_reduction <add>, %268, %cst_148 [1] : vector<8x32xf32> to vector<8xf32>
    %270 = vector.shape_cast %269 : vector<8xf32> to vector<8x1xf32>
    %cst_149 = arith.constant 1.000000e+00 : f32
    %271 = vector.broadcast %cst_149 : f32 to vector<8x1xf32>
    %272 = arith.cmpf ogt, %270, %271 : vector<8x1xf32>
    %cst_150 = arith.constant 2.44140625E-4 : f32
    %cst_151 = arith.constant 0.000000e+00 : f32
    %273 = vector.broadcast %cst_150 : f32 to vector<8x1xf32>
    %274 = vector.broadcast %cst_151 : f32 to vector<8x1xf32>
    %275 = arith.select %272, %273, %274 : vector<8x1xi1>, vector<8x1xf32>
    %276 = arith.addf %262, %275 : vector<8x1xf32>
    %cst_152 = arith.constant 1.22070313E-4 : f32
    %277 = vector.broadcast %cst_152 : f32 to vector<8x1xf32>
    %278 = arith.addf %276, %277 : vector<8x1xf32>
    %279 = vector.broadcast %278 : vector<8x1xf32> to vector<8x32xf32>
    %280 = arith.subf %104, %279 : vector<8x32xf32>
    %cst_153 = arith.constant 0.000000e+00 : f32
    %281 = vector.broadcast %cst_153 : f32 to vector<8x32xf32>
    %282 = arith.maximumf %280, %281 : vector<8x32xf32>
    %cst_154 = arith.constant dense<0.000000e+00> : vector<8xf32>
    %283 = vector.multi_reduction <add>, %282, %cst_154 [1] : vector<8x32xf32> to vector<8xf32>
    %284 = vector.shape_cast %283 : vector<8xf32> to vector<8x1xf32>
    %cst_155 = arith.constant 1.000000e+00 : f32
    %285 = vector.broadcast %cst_155 : f32 to vector<8x1xf32>
    %286 = arith.cmpf ogt, %284, %285 : vector<8x1xf32>
    %cst_156 = arith.constant 1.22070313E-4 : f32
    %cst_157 = arith.constant 0.000000e+00 : f32
    %287 = vector.broadcast %cst_156 : f32 to vector<8x1xf32>
    %288 = vector.broadcast %cst_157 : f32 to vector<8x1xf32>
    %289 = arith.select %286, %287, %288 : vector<8x1xi1>, vector<8x1xf32>
    %290 = arith.addf %276, %289 : vector<8x1xf32>
    %cst_158 = arith.constant 6.10351563E-5 : f32
    %291 = vector.broadcast %cst_158 : f32 to vector<8x1xf32>
    %292 = arith.addf %290, %291 : vector<8x1xf32>
    %293 = vector.broadcast %292 : vector<8x1xf32> to vector<8x32xf32>
    %294 = arith.subf %104, %293 : vector<8x32xf32>
    %cst_159 = arith.constant 0.000000e+00 : f32
    %295 = vector.broadcast %cst_159 : f32 to vector<8x32xf32>
    %296 = arith.maximumf %294, %295 : vector<8x32xf32>
    %cst_160 = arith.constant dense<0.000000e+00> : vector<8xf32>
    %297 = vector.multi_reduction <add>, %296, %cst_160 [1] : vector<8x32xf32> to vector<8xf32>
    %298 = vector.shape_cast %297 : vector<8xf32> to vector<8x1xf32>
    %cst_161 = arith.constant 1.000000e+00 : f32
    %299 = vector.broadcast %cst_161 : f32 to vector<8x1xf32>
    %300 = arith.cmpf ogt, %298, %299 : vector<8x1xf32>
    %cst_162 = arith.constant 6.10351563E-5 : f32
    %cst_163 = arith.constant 0.000000e+00 : f32
    %301 = vector.broadcast %cst_162 : f32 to vector<8x1xf32>
    %302 = vector.broadcast %cst_163 : f32 to vector<8x1xf32>
    %303 = arith.select %300, %301, %302 : vector<8x1xi1>, vector<8x1xf32>
    %304 = arith.addf %290, %303 : vector<8x1xf32>
    %cst_164 = arith.constant 3.05175781E-5 : f32
    %305 = vector.broadcast %cst_164 : f32 to vector<8x1xf32>
    %306 = arith.addf %304, %305 : vector<8x1xf32>
    %307 = vector.broadcast %306 : vector<8x1xf32> to vector<8x32xf32>
    %308 = arith.subf %104, %307 : vector<8x32xf32>
    %cst_165 = arith.constant 0.000000e+00 : f32
    %309 = vector.broadcast %cst_165 : f32 to vector<8x32xf32>
    %310 = arith.maximumf %308, %309 : vector<8x32xf32>
    %cst_166 = arith.constant dense<0.000000e+00> : vector<8xf32>
    %311 = vector.multi_reduction <add>, %310, %cst_166 [1] : vector<8x32xf32> to vector<8xf32>
    %312 = vector.shape_cast %311 : vector<8xf32> to vector<8x1xf32>
    %cst_167 = arith.constant 1.000000e+00 : f32
    %313 = vector.broadcast %cst_167 : f32 to vector<8x1xf32>
    %314 = arith.cmpf ogt, %312, %313 : vector<8x1xf32>
    %cst_168 = arith.constant 3.05175781E-5 : f32
    %cst_169 = arith.constant 0.000000e+00 : f32
    %315 = vector.broadcast %cst_168 : f32 to vector<8x1xf32>
    %316 = vector.broadcast %cst_169 : f32 to vector<8x1xf32>
    %317 = arith.select %314, %315, %316 : vector<8x1xi1>, vector<8x1xf32>
    %318 = arith.addf %304, %317 : vector<8x1xf32>
    %cst_170 = arith.constant 1.52587891E-5 : f32
    %319 = vector.broadcast %cst_170 : f32 to vector<8x1xf32>
    %320 = arith.addf %318, %319 : vector<8x1xf32>
    %321 = vector.broadcast %320 : vector<8x1xf32> to vector<8x32xf32>
    %322 = arith.subf %104, %321 : vector<8x32xf32>
    %cst_171 = arith.constant 0.000000e+00 : f32
    %323 = vector.broadcast %cst_171 : f32 to vector<8x32xf32>
    %324 = arith.maximumf %322, %323 : vector<8x32xf32>
    %cst_172 = arith.constant dense<0.000000e+00> : vector<8xf32>
    %325 = vector.multi_reduction <add>, %324, %cst_172 [1] : vector<8x32xf32> to vector<8xf32>
    %326 = vector.shape_cast %325 : vector<8xf32> to vector<8x1xf32>
    %cst_173 = arith.constant 1.000000e+00 : f32
    %327 = vector.broadcast %cst_173 : f32 to vector<8x1xf32>
    %328 = arith.cmpf ogt, %326, %327 : vector<8x1xf32>
    %cst_174 = arith.constant 1.52587891E-5 : f32
    %cst_175 = arith.constant 0.000000e+00 : f32
    %329 = vector.broadcast %cst_174 : f32 to vector<8x1xf32>
    %330 = vector.broadcast %cst_175 : f32 to vector<8x1xf32>
    %331 = arith.select %328, %329, %330 : vector<8x1xi1>, vector<8x1xf32>
    %332 = arith.addf %318, %331 : vector<8x1xf32>
    %cst_176 = arith.constant 7.62939453E-6 : f32
    %333 = vector.broadcast %cst_176 : f32 to vector<8x1xf32>
    %334 = arith.addf %332, %333 : vector<8x1xf32>
    %335 = vector.broadcast %334 : vector<8x1xf32> to vector<8x32xf32>
    %336 = arith.subf %104, %335 : vector<8x32xf32>
    %cst_177 = arith.constant 0.000000e+00 : f32
    %337 = vector.broadcast %cst_177 : f32 to vector<8x32xf32>
    %338 = arith.maximumf %336, %337 : vector<8x32xf32>
    %cst_178 = arith.constant dense<0.000000e+00> : vector<8xf32>
    %339 = vector.multi_reduction <add>, %338, %cst_178 [1] : vector<8x32xf32> to vector<8xf32>
    %340 = vector.shape_cast %339 : vector<8xf32> to vector<8x1xf32>
    %cst_179 = arith.constant 1.000000e+00 : f32
    %341 = vector.broadcast %cst_179 : f32 to vector<8x1xf32>
    %342 = arith.cmpf ogt, %340, %341 : vector<8x1xf32>
    %cst_180 = arith.constant 7.62939453E-6 : f32
    %cst_181 = arith.constant 0.000000e+00 : f32
    %343 = vector.broadcast %cst_180 : f32 to vector<8x1xf32>
    %344 = vector.broadcast %cst_181 : f32 to vector<8x1xf32>
    %345 = arith.select %342, %343, %344 : vector<8x1xi1>, vector<8x1xf32>
    %346 = arith.addf %332, %345 : vector<8x1xf32>
    %cst_182 = arith.constant 3.81469727E-6 : f32
    %347 = vector.broadcast %cst_182 : f32 to vector<8x1xf32>
    %348 = arith.addf %346, %347 : vector<8x1xf32>
    %349 = vector.broadcast %348 : vector<8x1xf32> to vector<8x32xf32>
    %350 = arith.subf %104, %349 : vector<8x32xf32>
    %cst_183 = arith.constant 0.000000e+00 : f32
    %351 = vector.broadcast %cst_183 : f32 to vector<8x32xf32>
    %352 = arith.maximumf %350, %351 : vector<8x32xf32>
    %cst_184 = arith.constant dense<0.000000e+00> : vector<8xf32>
    %353 = vector.multi_reduction <add>, %352, %cst_184 [1] : vector<8x32xf32> to vector<8xf32>
    %354 = vector.shape_cast %353 : vector<8xf32> to vector<8x1xf32>
    %cst_185 = arith.constant 1.000000e+00 : f32
    %355 = vector.broadcast %cst_185 : f32 to vector<8x1xf32>
    %356 = arith.cmpf ogt, %354, %355 : vector<8x1xf32>
    %cst_186 = arith.constant 3.81469727E-6 : f32
    %cst_187 = arith.constant 0.000000e+00 : f32
    %357 = vector.broadcast %cst_186 : f32 to vector<8x1xf32>
    %358 = vector.broadcast %cst_187 : f32 to vector<8x1xf32>
    %359 = arith.select %356, %357, %358 : vector<8x1xi1>, vector<8x1xf32>
    %360 = arith.addf %346, %359 : vector<8x1xf32>
    %cst_188 = arith.constant 1.90734863E-6 : f32
    %361 = vector.broadcast %cst_188 : f32 to vector<8x1xf32>
    %362 = arith.addf %360, %361 : vector<8x1xf32>
    %363 = vector.broadcast %362 : vector<8x1xf32> to vector<8x32xf32>
    %364 = arith.subf %104, %363 : vector<8x32xf32>
    %cst_189 = arith.constant 0.000000e+00 : f32
    %365 = vector.broadcast %cst_189 : f32 to vector<8x32xf32>
    %366 = arith.maximumf %364, %365 : vector<8x32xf32>
    %cst_190 = arith.constant dense<0.000000e+00> : vector<8xf32>
    %367 = vector.multi_reduction <add>, %366, %cst_190 [1] : vector<8x32xf32> to vector<8xf32>
    %368 = vector.shape_cast %367 : vector<8xf32> to vector<8x1xf32>
    %cst_191 = arith.constant 1.000000e+00 : f32
    %369 = vector.broadcast %cst_191 : f32 to vector<8x1xf32>
    %370 = arith.cmpf ogt, %368, %369 : vector<8x1xf32>
    %cst_192 = arith.constant 1.90734863E-6 : f32
    %cst_193 = arith.constant 0.000000e+00 : f32
    %371 = vector.broadcast %cst_192 : f32 to vector<8x1xf32>
    %372 = vector.broadcast %cst_193 : f32 to vector<8x1xf32>
    %373 = arith.select %370, %371, %372 : vector<8x1xi1>, vector<8x1xf32>
    %374 = arith.addf %360, %373 : vector<8x1xf32>
    %cst_194 = arith.constant 9.53674316E-7 : f32
    %375 = vector.broadcast %cst_194 : f32 to vector<8x1xf32>
    %376 = arith.addf %374, %375 : vector<8x1xf32>
    %377 = vector.broadcast %376 : vector<8x1xf32> to vector<8x32xf32>
    %378 = arith.subf %104, %377 : vector<8x32xf32>
    %cst_195 = arith.constant 0.000000e+00 : f32
    %379 = vector.broadcast %cst_195 : f32 to vector<8x32xf32>
    %380 = arith.maximumf %378, %379 : vector<8x32xf32>
    %cst_196 = arith.constant dense<0.000000e+00> : vector<8xf32>
    %381 = vector.multi_reduction <add>, %380, %cst_196 [1] : vector<8x32xf32> to vector<8xf32>
    %382 = vector.shape_cast %381 : vector<8xf32> to vector<8x1xf32>
    %cst_197 = arith.constant 1.000000e+00 : f32
    %383 = vector.broadcast %cst_197 : f32 to vector<8x1xf32>
    %384 = arith.cmpf ogt, %382, %383 : vector<8x1xf32>
    %cst_198 = arith.constant 9.53674316E-7 : f32
    %cst_199 = arith.constant 0.000000e+00 : f32
    %385 = vector.broadcast %cst_198 : f32 to vector<8x1xf32>
    %386 = vector.broadcast %cst_199 : f32 to vector<8x1xf32>
    %387 = arith.select %384, %385, %386 : vector<8x1xi1>, vector<8x1xf32>
    %388 = arith.addf %374, %387 : vector<8x1xf32>
    %cst_200 = arith.constant 4.76837158E-7 : f32
    %389 = vector.broadcast %cst_200 : f32 to vector<8x1xf32>
    %390 = arith.addf %388, %389 : vector<8x1xf32>
    %391 = vector.broadcast %390 : vector<8x1xf32> to vector<8x32xf32>
    %392 = arith.subf %104, %391 : vector<8x32xf32>
    %cst_201 = arith.constant 0.000000e+00 : f32
    %393 = vector.broadcast %cst_201 : f32 to vector<8x32xf32>
    %394 = arith.maximumf %392, %393 : vector<8x32xf32>
    %cst_202 = arith.constant 1.300000e+00 : f32
    %395 = vector.broadcast %cst_202 : f32 to vector<8x32xf32>
    %396 = arith.subf %395, %394 : vector<8x32xf32>
    %397 = arith.mulf %396, %7 : vector<8x32xf32>
    %398 = arith.mulf %394, %6 : vector<8x32xf32>
    %c9 = arith.constant 9 : index
    %c0_203 = arith.constant 0 : index
    %c0_204 = arith.constant 0 : index
    %399 = vector.load %arg1[%c9, %c0_203, %c0_204] : memref<37x32x32xf32, #tpu.memory_space<vmem>>, vector<1x32x32xf32>
    %400 = vector.shape_cast %399 : vector<1x32x32xf32> to vector<32x32xf32>
    %cst_205 = arith.constant dense<0.000000e+00> : vector<8x32xf32>
    %401 = tpu.matmul %398, %400, %cst_205 {dimension_numbers = #tpu.dot_dimension_numbers<[1], [0], [0], [1], [0, 0, 1, 1], [], []>} : vector<8x32xf32>, vector<32x32xf32>, vector<8x32xf32> -> vector<8x32xf32>
    %c9_206 = arith.constant 9 : index
    %c0_207 = arith.constant 0 : index
    %c0_208 = arith.constant 0 : index
    %402 = vector.load %arg2[%c9_206, %c0_207, %c0_208] : memref<36x8x32xf32, #tpu.memory_space<vmem>>, vector<1x8x32xf32>
    %403 = vector.shape_cast %402 : vector<1x8x32xf32> to vector<8x32xf32>
    %404 = arith.addf %401, %403 : vector<8x32xf32>
    %c10 = arith.constant 10 : index
    %c0_209 = arith.constant 0 : index
    %c0_210 = arith.constant 0 : index
    %405 = vector.load %arg1[%c10, %c0_209, %c0_210] : memref<37x32x32xf32, #tpu.memory_space<vmem>>, vector<1x32x32xf32>
    %406 = vector.shape_cast %405 : vector<1x32x32xf32> to vector<32x32xf32>
    %cst_211 = arith.constant dense<0.000000e+00> : vector<8x32xf32>
    %407 = tpu.matmul %398, %406, %cst_211 {dimension_numbers = #tpu.dot_dimension_numbers<[1], [0], [0], [1], [0, 0, 1, 1], [], []>} : vector<8x32xf32>, vector<32x32xf32>, vector<8x32xf32> -> vector<8x32xf32>
    %c10_212 = arith.constant 10 : index
    %c0_213 = arith.constant 0 : index
    %c0_214 = arith.constant 0 : index
    %408 = vector.load %arg2[%c10_212, %c0_213, %c0_214] : memref<36x8x32xf32, #tpu.memory_space<vmem>>, vector<1x8x32xf32>
    %409 = vector.shape_cast %408 : vector<1x8x32xf32> to vector<8x32xf32>
    %410 = arith.addf %407, %409 : vector<8x32xf32>
    %cst_215 = arith.constant 5.000000e-01 : f32
    %411 = vector.broadcast %cst_215 : f32 to vector<8x32xf32>
    %412 = arith.mulf %411, %410 : vector<8x32xf32>
    %413 = math.tanh %412 : vector<8x32xf32>
    %cst_216 = arith.constant 1.000000e+00 : f32
    %414 = vector.broadcast %cst_216 : f32 to vector<8x32xf32>
    %415 = arith.addf %413, %414 : vector<8x32xf32>
    %cst_217 = arith.constant 5.000000e-01 : f32
    %416 = vector.broadcast %cst_217 : f32 to vector<8x32xf32>
    %417 = arith.mulf %416, %415 : vector<8x32xf32>
    %418 = arith.mulf %404, %417 : vector<8x32xf32>
    %c11 = arith.constant 11 : index
    %c0_218 = arith.constant 0 : index
    %c0_219 = arith.constant 0 : index
    %419 = vector.load %arg1[%c11, %c0_218, %c0_219] : memref<37x32x32xf32, #tpu.memory_space<vmem>>, vector<1x32x32xf32>
    %420 = vector.shape_cast %419 : vector<1x32x32xf32> to vector<32x32xf32>
    %cst_220 = arith.constant dense<0.000000e+00> : vector<8x32xf32>
    %421 = tpu.matmul %418, %420, %cst_220 {dimension_numbers = #tpu.dot_dimension_numbers<[1], [0], [0], [1], [0, 0, 1, 1], [], []>} : vector<8x32xf32>, vector<32x32xf32>, vector<8x32xf32> -> vector<8x32xf32>
    %c11_221 = arith.constant 11 : index
    %c0_222 = arith.constant 0 : index
    %c0_223 = arith.constant 0 : index
    %422 = vector.load %arg2[%c11_221, %c0_222, %c0_223] : memref<36x8x32xf32, #tpu.memory_space<vmem>>, vector<1x8x32xf32>
    %423 = vector.shape_cast %422 : vector<1x8x32xf32> to vector<8x32xf32>
    %424 = arith.addf %421, %423 : vector<8x32xf32>
    %c12 = arith.constant 12 : index
    %c0_224 = arith.constant 0 : index
    %c0_225 = arith.constant 0 : index
    %425 = vector.load %arg1[%c12, %c0_224, %c0_225] : memref<37x32x32xf32, #tpu.memory_space<vmem>>, vector<1x32x32xf32>
    %426 = vector.shape_cast %425 : vector<1x32x32xf32> to vector<32x32xf32>
    %cst_226 = arith.constant dense<0.000000e+00> : vector<8x32xf32>
    %427 = tpu.matmul %418, %426, %cst_226 {dimension_numbers = #tpu.dot_dimension_numbers<[1], [0], [0], [1], [0, 0, 1, 1], [], []>} : vector<8x32xf32>, vector<32x32xf32>, vector<8x32xf32> -> vector<8x32xf32>
    %c12_227 = arith.constant 12 : index
    %c0_228 = arith.constant 0 : index
    %c0_229 = arith.constant 0 : index
    %428 = vector.load %arg2[%c12_227, %c0_228, %c0_229] : memref<36x8x32xf32, #tpu.memory_space<vmem>>, vector<1x8x32xf32>
    %429 = vector.shape_cast %428 : vector<1x8x32xf32> to vector<8x32xf32>
    %430 = arith.addf %427, %429 : vector<8x32xf32>
    %cst_230 = arith.constant 5.000000e-01 : f32
    %431 = vector.broadcast %cst_230 : f32 to vector<8x32xf32>
    %432 = arith.mulf %431, %430 : vector<8x32xf32>
    %433 = math.tanh %432 : vector<8x32xf32>
    %cst_231 = arith.constant 1.000000e+00 : f32
    %434 = vector.broadcast %cst_231 : f32 to vector<8x32xf32>
    %435 = arith.addf %433, %434 : vector<8x32xf32>
    %cst_232 = arith.constant 5.000000e-01 : f32
    %436 = vector.broadcast %cst_232 : f32 to vector<8x32xf32>
    %437 = arith.mulf %436, %435 : vector<8x32xf32>
    %438 = arith.mulf %424, %437 : vector<8x32xf32>
    %439 = arith.addf %438, %418 : vector<8x32xf32>
    %cst_233 = arith.constant 0.707106769 : f32
    %440 = vector.broadcast %cst_233 : f32 to vector<8x32xf32>
    %441 = arith.mulf %439, %440 : vector<8x32xf32>
    %c13 = arith.constant 13 : index
    %c0_234 = arith.constant 0 : index
    %c0_235 = arith.constant 0 : index
    %442 = vector.load %arg1[%c13, %c0_234, %c0_235] : memref<37x32x32xf32, #tpu.memory_space<vmem>>, vector<1x32x32xf32>
    %443 = vector.shape_cast %442 : vector<1x32x32xf32> to vector<32x32xf32>
    %cst_236 = arith.constant dense<0.000000e+00> : vector<8x32xf32>
    %444 = tpu.matmul %441, %443, %cst_236 {dimension_numbers = #tpu.dot_dimension_numbers<[1], [0], [0], [1], [0, 0, 1, 1], [], []>} : vector<8x32xf32>, vector<32x32xf32>, vector<8x32xf32> -> vector<8x32xf32>
    %c13_237 = arith.constant 13 : index
    %c0_238 = arith.constant 0 : index
    %c0_239 = arith.constant 0 : index
    %445 = vector.load %arg2[%c13_237, %c0_238, %c0_239] : memref<36x8x32xf32, #tpu.memory_space<vmem>>, vector<1x8x32xf32>
    %446 = vector.shape_cast %445 : vector<1x8x32xf32> to vector<8x32xf32>
    %447 = arith.addf %444, %446 : vector<8x32xf32>
    %c14 = arith.constant 14 : index
    %c0_240 = arith.constant 0 : index
    %c0_241 = arith.constant 0 : index
    %448 = vector.load %arg1[%c14, %c0_240, %c0_241] : memref<37x32x32xf32, #tpu.memory_space<vmem>>, vector<1x32x32xf32>
    %449 = vector.shape_cast %448 : vector<1x32x32xf32> to vector<32x32xf32>
    %cst_242 = arith.constant dense<0.000000e+00> : vector<8x32xf32>
    %450 = tpu.matmul %441, %449, %cst_242 {dimension_numbers = #tpu.dot_dimension_numbers<[1], [0], [0], [1], [0, 0, 1, 1], [], []>} : vector<8x32xf32>, vector<32x32xf32>, vector<8x32xf32> -> vector<8x32xf32>
    %c14_243 = arith.constant 14 : index
    %c0_244 = arith.constant 0 : index
    %c0_245 = arith.constant 0 : index
    %451 = vector.load %arg2[%c14_243, %c0_244, %c0_245] : memref<36x8x32xf32, #tpu.memory_space<vmem>>, vector<1x8x32xf32>
    %452 = vector.shape_cast %451 : vector<1x8x32xf32> to vector<8x32xf32>
    %453 = arith.addf %450, %452 : vector<8x32xf32>
    %cst_246 = arith.constant 5.000000e-01 : f32
    %454 = vector.broadcast %cst_246 : f32 to vector<8x32xf32>
    %455 = arith.mulf %454, %453 : vector<8x32xf32>
    %456 = math.tanh %455 : vector<8x32xf32>
    %cst_247 = arith.constant 1.000000e+00 : f32
    %457 = vector.broadcast %cst_247 : f32 to vector<8x32xf32>
    %458 = arith.addf %456, %457 : vector<8x32xf32>
    %cst_248 = arith.constant 5.000000e-01 : f32
    %459 = vector.broadcast %cst_248 : f32 to vector<8x32xf32>
    %460 = arith.mulf %459, %458 : vector<8x32xf32>
    %461 = arith.mulf %447, %460 : vector<8x32xf32>
    %462 = arith.addf %461, %441 : vector<8x32xf32>
    %cst_249 = arith.constant 0.707106769 : f32
    %463 = vector.broadcast %cst_249 : f32 to vector<8x32xf32>
    %464 = arith.mulf %462, %463 : vector<8x32xf32>
    %c15 = arith.constant 15 : index
    %c0_250 = arith.constant 0 : index
    %c0_251 = arith.constant 0 : index
    %465 = vector.load %arg1[%c15, %c0_250, %c0_251] : memref<37x32x32xf32, #tpu.memory_space<vmem>>, vector<1x32x32xf32>
    %466 = vector.shape_cast %465 : vector<1x32x32xf32> to vector<32x32xf32>
    %cst_252 = arith.constant dense<0.000000e+00> : vector<8x32xf32>
    %467 = tpu.matmul %464, %466, %cst_252 {dimension_numbers = #tpu.dot_dimension_numbers<[1], [0], [0], [1], [0, 0, 1, 1], [], []>} : vector<8x32xf32>, vector<32x32xf32>, vector<8x32xf32> -> vector<8x32xf32>
    %c15_253 = arith.constant 15 : index
    %c0_254 = arith.constant 0 : index
    %c0_255 = arith.constant 0 : index
    %468 = vector.load %arg2[%c15_253, %c0_254, %c0_255] : memref<36x8x32xf32, #tpu.memory_space<vmem>>, vector<1x8x32xf32>
    %469 = vector.shape_cast %468 : vector<1x8x32xf32> to vector<8x32xf32>
    %470 = arith.addf %467, %469 : vector<8x32xf32>
    %c16 = arith.constant 16 : index
    %c0_256 = arith.constant 0 : index
    %c0_257 = arith.constant 0 : index
    %471 = vector.load %arg1[%c16, %c0_256, %c0_257] : memref<37x32x32xf32, #tpu.memory_space<vmem>>, vector<1x32x32xf32>
    %472 = vector.shape_cast %471 : vector<1x32x32xf32> to vector<32x32xf32>
    %cst_258 = arith.constant dense<0.000000e+00> : vector<8x32xf32>
    %473 = tpu.matmul %464, %472, %cst_258 {dimension_numbers = #tpu.dot_dimension_numbers<[1], [0], [0], [1], [0, 0, 1, 1], [], []>} : vector<8x32xf32>, vector<32x32xf32>, vector<8x32xf32> -> vector<8x32xf32>
    %c16_259 = arith.constant 16 : index
    %c0_260 = arith.constant 0 : index
    %c0_261 = arith.constant 0 : index
    %474 = vector.load %arg2[%c16_259, %c0_260, %c0_261] : memref<36x8x32xf32, #tpu.memory_space<vmem>>, vector<1x8x32xf32>
    %475 = vector.shape_cast %474 : vector<1x8x32xf32> to vector<8x32xf32>
    %476 = arith.addf %473, %475 : vector<8x32xf32>
    %cst_262 = arith.constant 5.000000e-01 : f32
    %477 = vector.broadcast %cst_262 : f32 to vector<8x32xf32>
    %478 = arith.mulf %477, %476 : vector<8x32xf32>
    %479 = math.tanh %478 : vector<8x32xf32>
    %cst_263 = arith.constant 1.000000e+00 : f32
    %480 = vector.broadcast %cst_263 : f32 to vector<8x32xf32>
    %481 = arith.addf %479, %480 : vector<8x32xf32>
    %cst_264 = arith.constant 5.000000e-01 : f32
    %482 = vector.broadcast %cst_264 : f32 to vector<8x32xf32>
    %483 = arith.mulf %482, %481 : vector<8x32xf32>
    %484 = arith.mulf %470, %483 : vector<8x32xf32>
    %485 = arith.addf %484, %464 : vector<8x32xf32>
    %cst_265 = arith.constant 0.707106769 : f32
    %486 = vector.broadcast %cst_265 : f32 to vector<8x32xf32>
    %487 = arith.mulf %485, %486 : vector<8x32xf32>
    %cst_266 = arith.constant 0.000000e+00 : f32
    %488 = vector.broadcast %cst_266 : f32 to vector<8x32xf32>
    %489 = arith.maximumf %487, %488 : vector<8x32xf32>
    %490 = arith.addf %97, %489 : vector<8x32xf32>
    %c34 = arith.constant 34 : index
    %c0_267 = arith.constant 0 : index
    %c0_268 = arith.constant 0 : index
    %491 = vector.load %arg1[%c34, %c0_267, %c0_268] : memref<37x32x32xf32, #tpu.memory_space<vmem>>, vector<1x32x32xf32>
    %492 = vector.shape_cast %491 : vector<1x32x32xf32> to vector<32x32xf32>
    %cst_269 = arith.constant dense<0.000000e+00> : vector<8x32xf32>
    %493 = tpu.matmul %487, %492, %cst_269 {dimension_numbers = #tpu.dot_dimension_numbers<[1], [0], [0], [1], [0, 0, 1, 1], [], []>} : vector<8x32xf32>, vector<32x32xf32>, vector<8x32xf32> -> vector<8x32xf32>
    %c34_270 = arith.constant 34 : index
    %c0_271 = arith.constant 0 : index
    %c0_272 = arith.constant 0 : index
    %494 = vector.load %arg2[%c34_270, %c0_271, %c0_272] : memref<36x8x32xf32, #tpu.memory_space<vmem>>, vector<1x8x32xf32>
    %495 = vector.shape_cast %494 : vector<1x8x32xf32> to vector<8x32xf32>
    %496 = arith.addf %493, %495 : vector<8x32xf32>
    %497 = arith.mulf %496, %397 : vector<8x32xf32>
    %cst_273 = arith.constant dense<0xFF800000> : vector<8xf32>
    %498 = vector.multi_reduction <maximumf>, %497, %cst_273 [1] : vector<8x32xf32> to vector<8xf32>
    %499 = vector.shape_cast %498 : vector<8xf32> to vector<8x1xf32>
    %cst_274 = arith.constant 1.000000e+00 : f32
    %500 = vector.broadcast %cst_274 : f32 to vector<8x1xf32>
    %501 = arith.subf %499, %500 : vector<8x1xf32>
    %cst_275 = arith.constant 5.000000e-01 : f32
    %502 = vector.broadcast %cst_275 : f32 to vector<8x1xf32>
    %503 = arith.addf %501, %502 : vector<8x1xf32>
    %504 = vector.broadcast %503 : vector<8x1xf32> to vector<8x32xf32>
    %505 = arith.subf %497, %504 : vector<8x32xf32>
    %cst_276 = arith.constant 0.000000e+00 : f32
    %506 = vector.broadcast %cst_276 : f32 to vector<8x32xf32>
    %507 = arith.maximumf %505, %506 : vector<8x32xf32>
    %cst_277 = arith.constant dense<0.000000e+00> : vector<8xf32>
    %508 = vector.multi_reduction <add>, %507, %cst_277 [1] : vector<8x32xf32> to vector<8xf32>
    %509 = vector.shape_cast %508 : vector<8xf32> to vector<8x1xf32>
    %cst_278 = arith.constant 1.000000e+00 : f32
    %510 = vector.broadcast %cst_278 : f32 to vector<8x1xf32>
    %511 = arith.cmpf ogt, %509, %510 : vector<8x1xf32>
    %cst_279 = arith.constant 5.000000e-01 : f32
    %cst_280 = arith.constant 0.000000e+00 : f32
    %512 = vector.broadcast %cst_279 : f32 to vector<8x1xf32>
    %513 = vector.broadcast %cst_280 : f32 to vector<8x1xf32>
    %514 = arith.select %511, %512, %513 : vector<8x1xi1>, vector<8x1xf32>
    %515 = arith.addf %501, %514 : vector<8x1xf32>
    %cst_281 = arith.constant 2.500000e-01 : f32
    %516 = vector.broadcast %cst_281 : f32 to vector<8x1xf32>
    %517 = arith.addf %515, %516 : vector<8x1xf32>
    %518 = vector.broadcast %517 : vector<8x1xf32> to vector<8x32xf32>
    %519 = arith.subf %497, %518 : vector<8x32xf32>
    %cst_282 = arith.constant 0.000000e+00 : f32
    %520 = vector.broadcast %cst_282 : f32 to vector<8x32xf32>
    %521 = arith.maximumf %519, %520 : vector<8x32xf32>
    %cst_283 = arith.constant dense<0.000000e+00> : vector<8xf32>
    %522 = vector.multi_reduction <add>, %521, %cst_283 [1] : vector<8x32xf32> to vector<8xf32>
    %523 = vector.shape_cast %522 : vector<8xf32> to vector<8x1xf32>
    %cst_284 = arith.constant 1.000000e+00 : f32
    %524 = vector.broadcast %cst_284 : f32 to vector<8x1xf32>
    %525 = arith.cmpf ogt, %523, %524 : vector<8x1xf32>
    %cst_285 = arith.constant 2.500000e-01 : f32
    %cst_286 = arith.constant 0.000000e+00 : f32
    %526 = vector.broadcast %cst_285 : f32 to vector<8x1xf32>
    %527 = vector.broadcast %cst_286 : f32 to vector<8x1xf32>
    %528 = arith.select %525, %526, %527 : vector<8x1xi1>, vector<8x1xf32>
    %529 = arith.addf %515, %528 : vector<8x1xf32>
    %cst_287 = arith.constant 1.250000e-01 : f32
    %530 = vector.broadcast %cst_287 : f32 to vector<8x1xf32>
    %531 = arith.addf %529, %530 : vector<8x1xf32>
    %532 = vector.broadcast %531 : vector<8x1xf32> to vector<8x32xf32>
    %533 = arith.subf %497, %532 : vector<8x32xf32>
    %cst_288 = arith.constant 0.000000e+00 : f32
    %534 = vector.broadcast %cst_288 : f32 to vector<8x32xf32>
    %535 = arith.maximumf %533, %534 : vector<8x32xf32>
    %cst_289 = arith.constant dense<0.000000e+00> : vector<8xf32>
    %536 = vector.multi_reduction <add>, %535, %cst_289 [1] : vector<8x32xf32> to vector<8xf32>
    %537 = vector.shape_cast %536 : vector<8xf32> to vector<8x1xf32>
    %cst_290 = arith.constant 1.000000e+00 : f32
    %538 = vector.broadcast %cst_290 : f32 to vector<8x1xf32>
    %539 = arith.cmpf ogt, %537, %538 : vector<8x1xf32>
    %cst_291 = arith.constant 1.250000e-01 : f32
    %cst_292 = arith.constant 0.000000e+00 : f32
    %540 = vector.broadcast %cst_291 : f32 to vector<8x1xf32>
    %541 = vector.broadcast %cst_292 : f32 to vector<8x1xf32>
    %542 = arith.select %539, %540, %541 : vector<8x1xi1>, vector<8x1xf32>
    %543 = arith.addf %529, %542 : vector<8x1xf32>
    %cst_293 = arith.constant 6.250000e-02 : f32
    %544 = vector.broadcast %cst_293 : f32 to vector<8x1xf32>
    %545 = arith.addf %543, %544 : vector<8x1xf32>
    %546 = vector.broadcast %545 : vector<8x1xf32> to vector<8x32xf32>
    %547 = arith.subf %497, %546 : vector<8x32xf32>
    %cst_294 = arith.constant 0.000000e+00 : f32
    %548 = vector.broadcast %cst_294 : f32 to vector<8x32xf32>
    %549 = arith.maximumf %547, %548 : vector<8x32xf32>
    %cst_295 = arith.constant dense<0.000000e+00> : vector<8xf32>
    %550 = vector.multi_reduction <add>, %549, %cst_295 [1] : vector<8x32xf32> to vector<8xf32>
    %551 = vector.shape_cast %550 : vector<8xf32> to vector<8x1xf32>
    %cst_296 = arith.constant 1.000000e+00 : f32
    %552 = vector.broadcast %cst_296 : f32 to vector<8x1xf32>
    %553 = arith.cmpf ogt, %551, %552 : vector<8x1xf32>
    %cst_297 = arith.constant 6.250000e-02 : f32
    %cst_298 = arith.constant 0.000000e+00 : f32
    %554 = vector.broadcast %cst_297 : f32 to vector<8x1xf32>
    %555 = vector.broadcast %cst_298 : f32 to vector<8x1xf32>
    %556 = arith.select %553, %554, %555 : vector<8x1xi1>, vector<8x1xf32>
    %557 = arith.addf %543, %556 : vector<8x1xf32>
    %cst_299 = arith.constant 3.125000e-02 : f32
    %558 = vector.broadcast %cst_299 : f32 to vector<8x1xf32>
    %559 = arith.addf %557, %558 : vector<8x1xf32>
    %560 = vector.broadcast %559 : vector<8x1xf32> to vector<8x32xf32>
    %561 = arith.subf %497, %560 : vector<8x32xf32>
    %cst_300 = arith.constant 0.000000e+00 : f32
    %562 = vector.broadcast %cst_300 : f32 to vector<8x32xf32>
    %563 = arith.maximumf %561, %562 : vector<8x32xf32>
    %cst_301 = arith.constant dense<0.000000e+00> : vector<8xf32>
    %564 = vector.multi_reduction <add>, %563, %cst_301 [1] : vector<8x32xf32> to vector<8xf32>
    %565 = vector.shape_cast %564 : vector<8xf32> to vector<8x1xf32>
    %cst_302 = arith.constant 1.000000e+00 : f32
    %566 = vector.broadcast %cst_302 : f32 to vector<8x1xf32>
    %567 = arith.cmpf ogt, %565, %566 : vector<8x1xf32>
    %cst_303 = arith.constant 3.125000e-02 : f32
    %cst_304 = arith.constant 0.000000e+00 : f32
    %568 = vector.broadcast %cst_303 : f32 to vector<8x1xf32>
    %569 = vector.broadcast %cst_304 : f32 to vector<8x1xf32>
    %570 = arith.select %567, %568, %569 : vector<8x1xi1>, vector<8x1xf32>
    %571 = arith.addf %557, %570 : vector<8x1xf32>
    %cst_305 = arith.constant 1.562500e-02 : f32
    %572 = vector.broadcast %cst_305 : f32 to vector<8x1xf32>
    %573 = arith.addf %571, %572 : vector<8x1xf32>
    %574 = vector.broadcast %573 : vector<8x1xf32> to vector<8x32xf32>
    %575 = arith.subf %497, %574 : vector<8x32xf32>
    %cst_306 = arith.constant 0.000000e+00 : f32
    %576 = vector.broadcast %cst_306 : f32 to vector<8x32xf32>
    %577 = arith.maximumf %575, %576 : vector<8x32xf32>
    %cst_307 = arith.constant dense<0.000000e+00> : vector<8xf32>
    %578 = vector.multi_reduction <add>, %577, %cst_307 [1] : vector<8x32xf32> to vector<8xf32>
    %579 = vector.shape_cast %578 : vector<8xf32> to vector<8x1xf32>
    %cst_308 = arith.constant 1.000000e+00 : f32
    %580 = vector.broadcast %cst_308 : f32 to vector<8x1xf32>
    %581 = arith.cmpf ogt, %579, %580 : vector<8x1xf32>
    %cst_309 = arith.constant 1.562500e-02 : f32
    %cst_310 = arith.constant 0.000000e+00 : f32
    %582 = vector.broadcast %cst_309 : f32 to vector<8x1xf32>
    %583 = vector.broadcast %cst_310 : f32 to vector<8x1xf32>
    %584 = arith.select %581, %582, %583 : vector<8x1xi1>, vector<8x1xf32>
    %585 = arith.addf %571, %584 : vector<8x1xf32>
    %cst_311 = arith.constant 7.812500e-03 : f32
    %586 = vector.broadcast %cst_311 : f32 to vector<8x1xf32>
    %587 = arith.addf %585, %586 : vector<8x1xf32>
    %588 = vector.broadcast %587 : vector<8x1xf32> to vector<8x32xf32>
    %589 = arith.subf %497, %588 : vector<8x32xf32>
    %cst_312 = arith.constant 0.000000e+00 : f32
    %590 = vector.broadcast %cst_312 : f32 to vector<8x32xf32>
    %591 = arith.maximumf %589, %590 : vector<8x32xf32>
    %cst_313 = arith.constant dense<0.000000e+00> : vector<8xf32>
    %592 = vector.multi_reduction <add>, %591, %cst_313 [1] : vector<8x32xf32> to vector<8xf32>
    %593 = vector.shape_cast %592 : vector<8xf32> to vector<8x1xf32>
    %cst_314 = arith.constant 1.000000e+00 : f32
    %594 = vector.broadcast %cst_314 : f32 to vector<8x1xf32>
    %595 = arith.cmpf ogt, %593, %594 : vector<8x1xf32>
    %cst_315 = arith.constant 7.812500e-03 : f32
    %cst_316 = arith.constant 0.000000e+00 : f32
    %596 = vector.broadcast %cst_315 : f32 to vector<8x1xf32>
    %597 = vector.broadcast %cst_316 : f32 to vector<8x1xf32>
    %598 = arith.select %595, %596, %597 : vector<8x1xi1>, vector<8x1xf32>
    %599 = arith.addf %585, %598 : vector<8x1xf32>
    %cst_317 = arith.constant 3.906250e-03 : f32
    %600 = vector.broadcast %cst_317 : f32 to vector<8x1xf32>
    %601 = arith.addf %599, %600 : vector<8x1xf32>
    %602 = vector.broadcast %601 : vector<8x1xf32> to vector<8x32xf32>
    %603 = arith.subf %497, %602 : vector<8x32xf32>
    %cst_318 = arith.constant 0.000000e+00 : f32
    %604 = vector.broadcast %cst_318 : f32 to vector<8x32xf32>
    %605 = arith.maximumf %603, %604 : vector<8x32xf32>
    %cst_319 = arith.constant dense<0.000000e+00> : vector<8xf32>
    %606 = vector.multi_reduction <add>, %605, %cst_319 [1] : vector<8x32xf32> to vector<8xf32>
    %607 = vector.shape_cast %606 : vector<8xf32> to vector<8x1xf32>
    %cst_320 = arith.constant 1.000000e+00 : f32
    %608 = vector.broadcast %cst_320 : f32 to vector<8x1xf32>
    %609 = arith.cmpf ogt, %607, %608 : vector<8x1xf32>
    %cst_321 = arith.constant 3.906250e-03 : f32
    %cst_322 = arith.constant 0.000000e+00 : f32
    %610 = vector.broadcast %cst_321 : f32 to vector<8x1xf32>
    %611 = vector.broadcast %cst_322 : f32 to vector<8x1xf32>
    %612 = arith.select %609, %610, %611 : vector<8x1xi1>, vector<8x1xf32>
    %613 = arith.addf %599, %612 : vector<8x1xf32>
    %cst_323 = arith.constant 0.001953125 : f32
    %614 = vector.broadcast %cst_323 : f32 to vector<8x1xf32>
    %615 = arith.addf %613, %614 : vector<8x1xf32>
    %616 = vector.broadcast %615 : vector<8x1xf32> to vector<8x32xf32>
    %617 = arith.subf %497, %616 : vector<8x32xf32>
    %cst_324 = arith.constant 0.000000e+00 : f32
    %618 = vector.broadcast %cst_324 : f32 to vector<8x32xf32>
    %619 = arith.maximumf %617, %618 : vector<8x32xf32>
    %cst_325 = arith.constant dense<0.000000e+00> : vector<8xf32>
    %620 = vector.multi_reduction <add>, %619, %cst_325 [1] : vector<8x32xf32> to vector<8xf32>
    %621 = vector.shape_cast %620 : vector<8xf32> to vector<8x1xf32>
    %cst_326 = arith.constant 1.000000e+00 : f32
    %622 = vector.broadcast %cst_326 : f32 to vector<8x1xf32>
    %623 = arith.cmpf ogt, %621, %622 : vector<8x1xf32>
    %cst_327 = arith.constant 0.001953125 : f32
    %cst_328 = arith.constant 0.000000e+00 : f32
    %624 = vector.broadcast %cst_327 : f32 to vector<8x1xf32>
    %625 = vector.broadcast %cst_328 : f32 to vector<8x1xf32>
    %626 = arith.select %623, %624, %625 : vector<8x1xi1>, vector<8x1xf32>
    %627 = arith.addf %613, %626 : vector<8x1xf32>
    %cst_329 = arith.constant 9.765625E-4 : f32
    %628 = vector.broadcast %cst_329 : f32 to vector<8x1xf32>
    %629 = arith.addf %627, %628 : vector<8x1xf32>
    %630 = vector.broadcast %629 : vector<8x1xf32> to vector<8x32xf32>
    %631 = arith.subf %497, %630 : vector<8x32xf32>
    %cst_330 = arith.constant 0.000000e+00 : f32
    %632 = vector.broadcast %cst_330 : f32 to vector<8x32xf32>
    %633 = arith.maximumf %631, %632 : vector<8x32xf32>
    %cst_331 = arith.constant dense<0.000000e+00> : vector<8xf32>
    %634 = vector.multi_reduction <add>, %633, %cst_331 [1] : vector<8x32xf32> to vector<8xf32>
    %635 = vector.shape_cast %634 : vector<8xf32> to vector<8x1xf32>
    %cst_332 = arith.constant 1.000000e+00 : f32
    %636 = vector.broadcast %cst_332 : f32 to vector<8x1xf32>
    %637 = arith.cmpf ogt, %635, %636 : vector<8x1xf32>
    %cst_333 = arith.constant 9.765625E-4 : f32
    %cst_334 = arith.constant 0.000000e+00 : f32
    %638 = vector.broadcast %cst_333 : f32 to vector<8x1xf32>
    %639 = vector.broadcast %cst_334 : f32 to vector<8x1xf32>
    %640 = arith.select %637, %638, %639 : vector<8x1xi1>, vector<8x1xf32>
    %641 = arith.addf %627, %640 : vector<8x1xf32>
    %cst_335 = arith.constant 4.8828125E-4 : f32
    %642 = vector.broadcast %cst_335 : f32 to vector<8x1xf32>
    %643 = arith.addf %641, %642 : vector<8x1xf32>
    %644 = vector.broadcast %643 : vector<8x1xf32> to vector<8x32xf32>
    %645 = arith.subf %497, %644 : vector<8x32xf32>
    %cst_336 = arith.constant 0.000000e+00 : f32
    %646 = vector.broadcast %cst_336 : f32 to vector<8x32xf32>
    %647 = arith.maximumf %645, %646 : vector<8x32xf32>
    %cst_337 = arith.constant dense<0.000000e+00> : vector<8xf32>
    %648 = vector.multi_reduction <add>, %647, %cst_337 [1] : vector<8x32xf32> to vector<8xf32>
    %649 = vector.shape_cast %648 : vector<8xf32> to vector<8x1xf32>
    %cst_338 = arith.constant 1.000000e+00 : f32
    %650 = vector.broadcast %cst_338 : f32 to vector<8x1xf32>
    %651 = arith.cmpf ogt, %649, %650 : vector<8x1xf32>
    %cst_339 = arith.constant 4.8828125E-4 : f32
    %cst_340 = arith.constant 0.000000e+00 : f32
    %652 = vector.broadcast %cst_339 : f32 to vector<8x1xf32>
    %653 = vector.broadcast %cst_340 : f32 to vector<8x1xf32>
    %654 = arith.select %651, %652, %653 : vector<8x1xi1>, vector<8x1xf32>
    %655 = arith.addf %641, %654 : vector<8x1xf32>
    %cst_341 = arith.constant 2.44140625E-4 : f32
    %656 = vector.broadcast %cst_341 : f32 to vector<8x1xf32>
    %657 = arith.addf %655, %656 : vector<8x1xf32>
    %658 = vector.broadcast %657 : vector<8x1xf32> to vector<8x32xf32>
    %659 = arith.subf %497, %658 : vector<8x32xf32>
    %cst_342 = arith.constant 0.000000e+00 : f32
    %660 = vector.broadcast %cst_342 : f32 to vector<8x32xf32>
    %661 = arith.maximumf %659, %660 : vector<8x32xf32>
    %cst_343 = arith.constant dense<0.000000e+00> : vector<8xf32>
    %662 = vector.multi_reduction <add>, %661, %cst_343 [1] : vector<8x32xf32> to vector<8xf32>
    %663 = vector.shape_cast %662 : vector<8xf32> to vector<8x1xf32>
    %cst_344 = arith.constant 1.000000e+00 : f32
    %664 = vector.broadcast %cst_344 : f32 to vector<8x1xf32>
    %665 = arith.cmpf ogt, %663, %664 : vector<8x1xf32>
    %cst_345 = arith.constant 2.44140625E-4 : f32
    %cst_346 = arith.constant 0.000000e+00 : f32
    %666 = vector.broadcast %cst_345 : f32 to vector<8x1xf32>
    %667 = vector.broadcast %cst_346 : f32 to vector<8x1xf32>
    %668 = arith.select %665, %666, %667 : vector<8x1xi1>, vector<8x1xf32>
    %669 = arith.addf %655, %668 : vector<8x1xf32>
    %cst_347 = arith.constant 1.22070313E-4 : f32
    %670 = vector.broadcast %cst_347 : f32 to vector<8x1xf32>
    %671 = arith.addf %669, %670 : vector<8x1xf32>
    %672 = vector.broadcast %671 : vector<8x1xf32> to vector<8x32xf32>
    %673 = arith.subf %497, %672 : vector<8x32xf32>
    %cst_348 = arith.constant 0.000000e+00 : f32
    %674 = vector.broadcast %cst_348 : f32 to vector<8x32xf32>
    %675 = arith.maximumf %673, %674 : vector<8x32xf32>
    %cst_349 = arith.constant dense<0.000000e+00> : vector<8xf32>
    %676 = vector.multi_reduction <add>, %675, %cst_349 [1] : vector<8x32xf32> to vector<8xf32>
    %677 = vector.shape_cast %676 : vector<8xf32> to vector<8x1xf32>
    %cst_350 = arith.constant 1.000000e+00 : f32
    %678 = vector.broadcast %cst_350 : f32 to vector<8x1xf32>
    %679 = arith.cmpf ogt, %677, %678 : vector<8x1xf32>
    %cst_351 = arith.constant 1.22070313E-4 : f32
    %cst_352 = arith.constant 0.000000e+00 : f32
    %680 = vector.broadcast %cst_351 : f32 to vector<8x1xf32>
    %681 = vector.broadcast %cst_352 : f32 to vector<8x1xf32>
    %682 = arith.select %679, %680, %681 : vector<8x1xi1>, vector<8x1xf32>
    %683 = arith.addf %669, %682 : vector<8x1xf32>
    %cst_353 = arith.constant 6.10351563E-5 : f32
    %684 = vector.broadcast %cst_353 : f32 to vector<8x1xf32>
    %685 = arith.addf %683, %684 : vector<8x1xf32>
    %686 = vector.broadcast %685 : vector<8x1xf32> to vector<8x32xf32>
    %687 = arith.subf %497, %686 : vector<8x32xf32>
    %cst_354 = arith.constant 0.000000e+00 : f32
    %688 = vector.broadcast %cst_354 : f32 to vector<8x32xf32>
    %689 = arith.maximumf %687, %688 : vector<8x32xf32>
    %cst_355 = arith.constant dense<0.000000e+00> : vector<8xf32>
    %690 = vector.multi_reduction <add>, %689, %cst_355 [1] : vector<8x32xf32> to vector<8xf32>
    %691 = vector.shape_cast %690 : vector<8xf32> to vector<8x1xf32>
    %cst_356 = arith.constant 1.000000e+00 : f32
    %692 = vector.broadcast %cst_356 : f32 to vector<8x1xf32>
    %693 = arith.cmpf ogt, %691, %692 : vector<8x1xf32>
    %cst_357 = arith.constant 6.10351563E-5 : f32
    %cst_358 = arith.constant 0.000000e+00 : f32
    %694 = vector.broadcast %cst_357 : f32 to vector<8x1xf32>
    %695 = vector.broadcast %cst_358 : f32 to vector<8x1xf32>
    %696 = arith.select %693, %694, %695 : vector<8x1xi1>, vector<8x1xf32>
    %697 = arith.addf %683, %696 : vector<8x1xf32>
    %cst_359 = arith.constant 3.05175781E-5 : f32
    %698 = vector.broadcast %cst_359 : f32 to vector<8x1xf32>
    %699 = arith.addf %697, %698 : vector<8x1xf32>
    %700 = vector.broadcast %699 : vector<8x1xf32> to vector<8x32xf32>
    %701 = arith.subf %497, %700 : vector<8x32xf32>
    %cst_360 = arith.constant 0.000000e+00 : f32
    %702 = vector.broadcast %cst_360 : f32 to vector<8x32xf32>
    %703 = arith.maximumf %701, %702 : vector<8x32xf32>
    %cst_361 = arith.constant dense<0.000000e+00> : vector<8xf32>
    %704 = vector.multi_reduction <add>, %703, %cst_361 [1] : vector<8x32xf32> to vector<8xf32>
    %705 = vector.shape_cast %704 : vector<8xf32> to vector<8x1xf32>
    %cst_362 = arith.constant 1.000000e+00 : f32
    %706 = vector.broadcast %cst_362 : f32 to vector<8x1xf32>
    %707 = arith.cmpf ogt, %705, %706 : vector<8x1xf32>
    %cst_363 = arith.constant 3.05175781E-5 : f32
    %cst_364 = arith.constant 0.000000e+00 : f32
    %708 = vector.broadcast %cst_363 : f32 to vector<8x1xf32>
    %709 = vector.broadcast %cst_364 : f32 to vector<8x1xf32>
    %710 = arith.select %707, %708, %709 : vector<8x1xi1>, vector<8x1xf32>
    %711 = arith.addf %697, %710 : vector<8x1xf32>
    %cst_365 = arith.constant 1.52587891E-5 : f32
    %712 = vector.broadcast %cst_365 : f32 to vector<8x1xf32>
    %713 = arith.addf %711, %712 : vector<8x1xf32>
    %714 = vector.broadcast %713 : vector<8x1xf32> to vector<8x32xf32>
    %715 = arith.subf %497, %714 : vector<8x32xf32>
    %cst_366 = arith.constant 0.000000e+00 : f32
    %716 = vector.broadcast %cst_366 : f32 to vector<8x32xf32>
    %717 = arith.maximumf %715, %716 : vector<8x32xf32>
    %cst_367 = arith.constant dense<0.000000e+00> : vector<8xf32>
    %718 = vector.multi_reduction <add>, %717, %cst_367 [1] : vector<8x32xf32> to vector<8xf32>
    %719 = vector.shape_cast %718 : vector<8xf32> to vector<8x1xf32>
    %cst_368 = arith.constant 1.000000e+00 : f32
    %720 = vector.broadcast %cst_368 : f32 to vector<8x1xf32>
    %721 = arith.cmpf ogt, %719, %720 : vector<8x1xf32>
    %cst_369 = arith.constant 1.52587891E-5 : f32
    %cst_370 = arith.constant 0.000000e+00 : f32
    %722 = vector.broadcast %cst_369 : f32 to vector<8x1xf32>
    %723 = vector.broadcast %cst_370 : f32 to vector<8x1xf32>
    %724 = arith.select %721, %722, %723 : vector<8x1xi1>, vector<8x1xf32>
    %725 = arith.addf %711, %724 : vector<8x1xf32>
    %cst_371 = arith.constant 7.62939453E-6 : f32
    %726 = vector.broadcast %cst_371 : f32 to vector<8x1xf32>
    %727 = arith.addf %725, %726 : vector<8x1xf32>
    %728 = vector.broadcast %727 : vector<8x1xf32> to vector<8x32xf32>
    %729 = arith.subf %497, %728 : vector<8x32xf32>
    %cst_372 = arith.constant 0.000000e+00 : f32
    %730 = vector.broadcast %cst_372 : f32 to vector<8x32xf32>
    %731 = arith.maximumf %729, %730 : vector<8x32xf32>
    %cst_373 = arith.constant dense<0.000000e+00> : vector<8xf32>
    %732 = vector.multi_reduction <add>, %731, %cst_373 [1] : vector<8x32xf32> to vector<8xf32>
    %733 = vector.shape_cast %732 : vector<8xf32> to vector<8x1xf32>
    %cst_374 = arith.constant 1.000000e+00 : f32
    %734 = vector.broadcast %cst_374 : f32 to vector<8x1xf32>
    %735 = arith.cmpf ogt, %733, %734 : vector<8x1xf32>
    %cst_375 = arith.constant 7.62939453E-6 : f32
    %cst_376 = arith.constant 0.000000e+00 : f32
    %736 = vector.broadcast %cst_375 : f32 to vector<8x1xf32>
    %737 = vector.broadcast %cst_376 : f32 to vector<8x1xf32>
    %738 = arith.select %735, %736, %737 : vector<8x1xi1>, vector<8x1xf32>
    %739 = arith.addf %725, %738 : vector<8x1xf32>
    %cst_377 = arith.constant 3.81469727E-6 : f32
    %740 = vector.broadcast %cst_377 : f32 to vector<8x1xf32>
    %741 = arith.addf %739, %740 : vector<8x1xf32>
    %742 = vector.broadcast %741 : vector<8x1xf32> to vector<8x32xf32>
    %743 = arith.subf %497, %742 : vector<8x32xf32>
    %cst_378 = arith.constant 0.000000e+00 : f32
    %744 = vector.broadcast %cst_378 : f32 to vector<8x32xf32>
    %745 = arith.maximumf %743, %744 : vector<8x32xf32>
    %cst_379 = arith.constant dense<0.000000e+00> : vector<8xf32>
    %746 = vector.multi_reduction <add>, %745, %cst_379 [1] : vector<8x32xf32> to vector<8xf32>
    %747 = vector.shape_cast %746 : vector<8xf32> to vector<8x1xf32>
    %cst_380 = arith.constant 1.000000e+00 : f32
    %748 = vector.broadcast %cst_380 : f32 to vector<8x1xf32>
    %749 = arith.cmpf ogt, %747, %748 : vector<8x1xf32>
    %cst_381 = arith.constant 3.81469727E-6 : f32
    %cst_382 = arith.constant 0.000000e+00 : f32
    %750 = vector.broadcast %cst_381 : f32 to vector<8x1xf32>
    %751 = vector.broadcast %cst_382 : f32 to vector<8x1xf32>
    %752 = arith.select %749, %750, %751 : vector<8x1xi1>, vector<8x1xf32>
    %753 = arith.addf %739, %752 : vector<8x1xf32>
    %cst_383 = arith.constant 1.90734863E-6 : f32
    %754 = vector.broadcast %cst_383 : f32 to vector<8x1xf32>
    %755 = arith.addf %753, %754 : vector<8x1xf32>
    %756 = vector.broadcast %755 : vector<8x1xf32> to vector<8x32xf32>
    %757 = arith.subf %497, %756 : vector<8x32xf32>
    %cst_384 = arith.constant 0.000000e+00 : f32
    %758 = vector.broadcast %cst_384 : f32 to vector<8x32xf32>
    %759 = arith.maximumf %757, %758 : vector<8x32xf32>
    %cst_385 = arith.constant dense<0.000000e+00> : vector<8xf32>
    %760 = vector.multi_reduction <add>, %759, %cst_385 [1] : vector<8x32xf32> to vector<8xf32>
    %761 = vector.shape_cast %760 : vector<8xf32> to vector<8x1xf32>
    %cst_386 = arith.constant 1.000000e+00 : f32
    %762 = vector.broadcast %cst_386 : f32 to vector<8x1xf32>
    %763 = arith.cmpf ogt, %761, %762 : vector<8x1xf32>
    %cst_387 = arith.constant 1.90734863E-6 : f32
    %cst_388 = arith.constant 0.000000e+00 : f32
    %764 = vector.broadcast %cst_387 : f32 to vector<8x1xf32>
    %765 = vector.broadcast %cst_388 : f32 to vector<8x1xf32>
    %766 = arith.select %763, %764, %765 : vector<8x1xi1>, vector<8x1xf32>
    %767 = arith.addf %753, %766 : vector<8x1xf32>
    %cst_389 = arith.constant 9.53674316E-7 : f32
    %768 = vector.broadcast %cst_389 : f32 to vector<8x1xf32>
    %769 = arith.addf %767, %768 : vector<8x1xf32>
    %770 = vector.broadcast %769 : vector<8x1xf32> to vector<8x32xf32>
    %771 = arith.subf %497, %770 : vector<8x32xf32>
    %cst_390 = arith.constant 0.000000e+00 : f32
    %772 = vector.broadcast %cst_390 : f32 to vector<8x32xf32>
    %773 = arith.maximumf %771, %772 : vector<8x32xf32>
    %cst_391 = arith.constant dense<0.000000e+00> : vector<8xf32>
    %774 = vector.multi_reduction <add>, %773, %cst_391 [1] : vector<8x32xf32> to vector<8xf32>
    %775 = vector.shape_cast %774 : vector<8xf32> to vector<8x1xf32>
    %cst_392 = arith.constant 1.000000e+00 : f32
    %776 = vector.broadcast %cst_392 : f32 to vector<8x1xf32>
    %777 = arith.cmpf ogt, %775, %776 : vector<8x1xf32>
    %cst_393 = arith.constant 9.53674316E-7 : f32
    %cst_394 = arith.constant 0.000000e+00 : f32
    %778 = vector.broadcast %cst_393 : f32 to vector<8x1xf32>
    %779 = vector.broadcast %cst_394 : f32 to vector<8x1xf32>
    %780 = arith.select %777, %778, %779 : vector<8x1xi1>, vector<8x1xf32>
    %781 = arith.addf %767, %780 : vector<8x1xf32>
    %cst_395 = arith.constant 4.76837158E-7 : f32
    %782 = vector.broadcast %cst_395 : f32 to vector<8x1xf32>
    %783 = arith.addf %781, %782 : vector<8x1xf32>
    %784 = vector.broadcast %783 : vector<8x1xf32> to vector<8x32xf32>
    %785 = arith.subf %497, %784 : vector<8x32xf32>
    %cst_396 = arith.constant 0.000000e+00 : f32
    %786 = vector.broadcast %cst_396 : f32 to vector<8x32xf32>
    %787 = arith.maximumf %785, %786 : vector<8x32xf32>
    %cst_397 = arith.constant 1.300000e+00 : f32
    %788 = vector.broadcast %cst_397 : f32 to vector<8x32xf32>
    %789 = arith.subf %788, %787 : vector<8x32xf32>
    %790 = arith.mulf %789, %397 : vector<8x32xf32>
    %791 = arith.mulf %787, %6 : vector<8x32xf32>
    %c17 = arith.constant 17 : index
    %c0_398 = arith.constant 0 : index
    %c0_399 = arith.constant 0 : index
    %792 = vector.load %arg1[%c17, %c0_398, %c0_399] : memref<37x32x32xf32, #tpu.memory_space<vmem>>, vector<1x32x32xf32>
    %793 = vector.shape_cast %792 : vector<1x32x32xf32> to vector<32x32xf32>
    %cst_400 = arith.constant dense<0.000000e+00> : vector<8x32xf32>
    %794 = tpu.matmul %791, %793, %cst_400 {dimension_numbers = #tpu.dot_dimension_numbers<[1], [0], [0], [1], [0, 0, 1, 1], [], []>} : vector<8x32xf32>, vector<32x32xf32>, vector<8x32xf32> -> vector<8x32xf32>
    %c17_401 = arith.constant 17 : index
    %c0_402 = arith.constant 0 : index
    %c0_403 = arith.constant 0 : index
    %795 = vector.load %arg2[%c17_401, %c0_402, %c0_403] : memref<36x8x32xf32, #tpu.memory_space<vmem>>, vector<1x8x32xf32>
    %796 = vector.shape_cast %795 : vector<1x8x32xf32> to vector<8x32xf32>
    %797 = arith.addf %794, %796 : vector<8x32xf32>
    %c18 = arith.constant 18 : index
    %c0_404 = arith.constant 0 : index
    %c0_405 = arith.constant 0 : index
    %798 = vector.load %arg1[%c18, %c0_404, %c0_405] : memref<37x32x32xf32, #tpu.memory_space<vmem>>, vector<1x32x32xf32>
    %799 = vector.shape_cast %798 : vector<1x32x32xf32> to vector<32x32xf32>
    %cst_406 = arith.constant dense<0.000000e+00> : vector<8x32xf32>
    %800 = tpu.matmul %791, %799, %cst_406 {dimension_numbers = #tpu.dot_dimension_numbers<[1], [0], [0], [1], [0, 0, 1, 1], [], []>} : vector<8x32xf32>, vector<32x32xf32>, vector<8x32xf32> -> vector<8x32xf32>
    %c18_407 = arith.constant 18 : index
    %c0_408 = arith.constant 0 : index
    %c0_409 = arith.constant 0 : index
    %801 = vector.load %arg2[%c18_407, %c0_408, %c0_409] : memref<36x8x32xf32, #tpu.memory_space<vmem>>, vector<1x8x32xf32>
    %802 = vector.shape_cast %801 : vector<1x8x32xf32> to vector<8x32xf32>
    %803 = arith.addf %800, %802 : vector<8x32xf32>
    %cst_410 = arith.constant 5.000000e-01 : f32
    %804 = vector.broadcast %cst_410 : f32 to vector<8x32xf32>
    %805 = arith.mulf %804, %803 : vector<8x32xf32>
    %806 = math.tanh %805 : vector<8x32xf32>
    %cst_411 = arith.constant 1.000000e+00 : f32
    %807 = vector.broadcast %cst_411 : f32 to vector<8x32xf32>
    %808 = arith.addf %806, %807 : vector<8x32xf32>
    %cst_412 = arith.constant 5.000000e-01 : f32
    %809 = vector.broadcast %cst_412 : f32 to vector<8x32xf32>
    %810 = arith.mulf %809, %808 : vector<8x32xf32>
    %811 = arith.mulf %797, %810 : vector<8x32xf32>
    %c19 = arith.constant 19 : index
    %c0_413 = arith.constant 0 : index
    %c0_414 = arith.constant 0 : index
    %812 = vector.load %arg1[%c19, %c0_413, %c0_414] : memref<37x32x32xf32, #tpu.memory_space<vmem>>, vector<1x32x32xf32>
    %813 = vector.shape_cast %812 : vector<1x32x32xf32> to vector<32x32xf32>
    %cst_415 = arith.constant dense<0.000000e+00> : vector<8x32xf32>
    %814 = tpu.matmul %811, %813, %cst_415 {dimension_numbers = #tpu.dot_dimension_numbers<[1], [0], [0], [1], [0, 0, 1, 1], [], []>} : vector<8x32xf32>, vector<32x32xf32>, vector<8x32xf32> -> vector<8x32xf32>
    %c19_416 = arith.constant 19 : index
    %c0_417 = arith.constant 0 : index
    %c0_418 = arith.constant 0 : index
    %815 = vector.load %arg2[%c19_416, %c0_417, %c0_418] : memref<36x8x32xf32, #tpu.memory_space<vmem>>, vector<1x8x32xf32>
    %816 = vector.shape_cast %815 : vector<1x8x32xf32> to vector<8x32xf32>
    %817 = arith.addf %814, %816 : vector<8x32xf32>
    %c20 = arith.constant 20 : index
    %c0_419 = arith.constant 0 : index
    %c0_420 = arith.constant 0 : index
    %818 = vector.load %arg1[%c20, %c0_419, %c0_420] : memref<37x32x32xf32, #tpu.memory_space<vmem>>, vector<1x32x32xf32>
    %819 = vector.shape_cast %818 : vector<1x32x32xf32> to vector<32x32xf32>
    %cst_421 = arith.constant dense<0.000000e+00> : vector<8x32xf32>
    %820 = tpu.matmul %811, %819, %cst_421 {dimension_numbers = #tpu.dot_dimension_numbers<[1], [0], [0], [1], [0, 0, 1, 1], [], []>} : vector<8x32xf32>, vector<32x32xf32>, vector<8x32xf32> -> vector<8x32xf32>
    %c20_422 = arith.constant 20 : index
    %c0_423 = arith.constant 0 : index
    %c0_424 = arith.constant 0 : index
    %821 = vector.load %arg2[%c20_422, %c0_423, %c0_424] : memref<36x8x32xf32, #tpu.memory_space<vmem>>, vector<1x8x32xf32>
    %822 = vector.shape_cast %821 : vector<1x8x32xf32> to vector<8x32xf32>
    %823 = arith.addf %820, %822 : vector<8x32xf32>
    %cst_425 = arith.constant 5.000000e-01 : f32
    %824 = vector.broadcast %cst_425 : f32 to vector<8x32xf32>
    %825 = arith.mulf %824, %823 : vector<8x32xf32>
    %826 = math.tanh %825 : vector<8x32xf32>
    %cst_426 = arith.constant 1.000000e+00 : f32
    %827 = vector.broadcast %cst_426 : f32 to vector<8x32xf32>
    %828 = arith.addf %826, %827 : vector<8x32xf32>
    %cst_427 = arith.constant 5.000000e-01 : f32
    %829 = vector.broadcast %cst_427 : f32 to vector<8x32xf32>
    %830 = arith.mulf %829, %828 : vector<8x32xf32>
    %831 = arith.mulf %817, %830 : vector<8x32xf32>
    %832 = arith.addf %831, %811 : vector<8x32xf32>
    %cst_428 = arith.constant 0.707106769 : f32
    %833 = vector.broadcast %cst_428 : f32 to vector<8x32xf32>
    %834 = arith.mulf %832, %833 : vector<8x32xf32>
    %c21 = arith.constant 21 : index
    %c0_429 = arith.constant 0 : index
    %c0_430 = arith.constant 0 : index
    %835 = vector.load %arg1[%c21, %c0_429, %c0_430] : memref<37x32x32xf32, #tpu.memory_space<vmem>>, vector<1x32x32xf32>
    %836 = vector.shape_cast %835 : vector<1x32x32xf32> to vector<32x32xf32>
    %cst_431 = arith.constant dense<0.000000e+00> : vector<8x32xf32>
    %837 = tpu.matmul %834, %836, %cst_431 {dimension_numbers = #tpu.dot_dimension_numbers<[1], [0], [0], [1], [0, 0, 1, 1], [], []>} : vector<8x32xf32>, vector<32x32xf32>, vector<8x32xf32> -> vector<8x32xf32>
    %c21_432 = arith.constant 21 : index
    %c0_433 = arith.constant 0 : index
    %c0_434 = arith.constant 0 : index
    %838 = vector.load %arg2[%c21_432, %c0_433, %c0_434] : memref<36x8x32xf32, #tpu.memory_space<vmem>>, vector<1x8x32xf32>
    %839 = vector.shape_cast %838 : vector<1x8x32xf32> to vector<8x32xf32>
    %840 = arith.addf %837, %839 : vector<8x32xf32>
    %c22 = arith.constant 22 : index
    %c0_435 = arith.constant 0 : index
    %c0_436 = arith.constant 0 : index
    %841 = vector.load %arg1[%c22, %c0_435, %c0_436] : memref<37x32x32xf32, #tpu.memory_space<vmem>>, vector<1x32x32xf32>
    %842 = vector.shape_cast %841 : vector<1x32x32xf32> to vector<32x32xf32>
    %cst_437 = arith.constant dense<0.000000e+00> : vector<8x32xf32>
    %843 = tpu.matmul %834, %842, %cst_437 {dimension_numbers = #tpu.dot_dimension_numbers<[1], [0], [0], [1], [0, 0, 1, 1], [], []>} : vector<8x32xf32>, vector<32x32xf32>, vector<8x32xf32> -> vector<8x32xf32>
    %c22_438 = arith.constant 22 : index
    %c0_439 = arith.constant 0 : index
    %c0_440 = arith.constant 0 : index
    %844 = vector.load %arg2[%c22_438, %c0_439, %c0_440] : memref<36x8x32xf32, #tpu.memory_space<vmem>>, vector<1x8x32xf32>
    %845 = vector.shape_cast %844 : vector<1x8x32xf32> to vector<8x32xf32>
    %846 = arith.addf %843, %845 : vector<8x32xf32>
    %cst_441 = arith.constant 5.000000e-01 : f32
    %847 = vector.broadcast %cst_441 : f32 to vector<8x32xf32>
    %848 = arith.mulf %847, %846 : vector<8x32xf32>
    %849 = math.tanh %848 : vector<8x32xf32>
    %cst_442 = arith.constant 1.000000e+00 : f32
    %850 = vector.broadcast %cst_442 : f32 to vector<8x32xf32>
    %851 = arith.addf %849, %850 : vector<8x32xf32>
    %cst_443 = arith.constant 5.000000e-01 : f32
    %852 = vector.broadcast %cst_443 : f32 to vector<8x32xf32>
    %853 = arith.mulf %852, %851 : vector<8x32xf32>
    %854 = arith.mulf %840, %853 : vector<8x32xf32>
    %855 = arith.addf %854, %834 : vector<8x32xf32>
    %cst_444 = arith.constant 0.707106769 : f32
    %856 = vector.broadcast %cst_444 : f32 to vector<8x32xf32>
    %857 = arith.mulf %855, %856 : vector<8x32xf32>
    %c23 = arith.constant 23 : index
    %c0_445 = arith.constant 0 : index
    %c0_446 = arith.constant 0 : index
    %858 = vector.load %arg1[%c23, %c0_445, %c0_446] : memref<37x32x32xf32, #tpu.memory_space<vmem>>, vector<1x32x32xf32>
    %859 = vector.shape_cast %858 : vector<1x32x32xf32> to vector<32x32xf32>
    %cst_447 = arith.constant dense<0.000000e+00> : vector<8x32xf32>
    %860 = tpu.matmul %857, %859, %cst_447 {dimension_numbers = #tpu.dot_dimension_numbers<[1], [0], [0], [1], [0, 0, 1, 1], [], []>} : vector<8x32xf32>, vector<32x32xf32>, vector<8x32xf32> -> vector<8x32xf32>
    %c23_448 = arith.constant 23 : index
    %c0_449 = arith.constant 0 : index
    %c0_450 = arith.constant 0 : index
    %861 = vector.load %arg2[%c23_448, %c0_449, %c0_450] : memref<36x8x32xf32, #tpu.memory_space<vmem>>, vector<1x8x32xf32>
    %862 = vector.shape_cast %861 : vector<1x8x32xf32> to vector<8x32xf32>
    %863 = arith.addf %860, %862 : vector<8x32xf32>
    %c24 = arith.constant 24 : index
    %c0_451 = arith.constant 0 : index
    %c0_452 = arith.constant 0 : index
    %864 = vector.load %arg1[%c24, %c0_451, %c0_452] : memref<37x32x32xf32, #tpu.memory_space<vmem>>, vector<1x32x32xf32>
    %865 = vector.shape_cast %864 : vector<1x32x32xf32> to vector<32x32xf32>
    %cst_453 = arith.constant dense<0.000000e+00> : vector<8x32xf32>
    %866 = tpu.matmul %857, %865, %cst_453 {dimension_numbers = #tpu.dot_dimension_numbers<[1], [0], [0], [1], [0, 0, 1, 1], [], []>} : vector<8x32xf32>, vector<32x32xf32>, vector<8x32xf32> -> vector<8x32xf32>
    %c24_454 = arith.constant 24 : index
    %c0_455 = arith.constant 0 : index
    %c0_456 = arith.constant 0 : index
    %867 = vector.load %arg2[%c24_454, %c0_455, %c0_456] : memref<36x8x32xf32, #tpu.memory_space<vmem>>, vector<1x8x32xf32>
    %868 = vector.shape_cast %867 : vector<1x8x32xf32> to vector<8x32xf32>
    %869 = arith.addf %866, %868 : vector<8x32xf32>
    %cst_457 = arith.constant 5.000000e-01 : f32
    %870 = vector.broadcast %cst_457 : f32 to vector<8x32xf32>
    %871 = arith.mulf %870, %869 : vector<8x32xf32>
    %872 = math.tanh %871 : vector<8x32xf32>
    %cst_458 = arith.constant 1.000000e+00 : f32
    %873 = vector.broadcast %cst_458 : f32 to vector<8x32xf32>
    %874 = arith.addf %872, %873 : vector<8x32xf32>
    %cst_459 = arith.constant 5.000000e-01 : f32
    %875 = vector.broadcast %cst_459 : f32 to vector<8x32xf32>
    %876 = arith.mulf %875, %874 : vector<8x32xf32>
    %877 = arith.mulf %863, %876 : vector<8x32xf32>
    %878 = arith.addf %877, %857 : vector<8x32xf32>
    %cst_460 = arith.constant 0.707106769 : f32
    %879 = vector.broadcast %cst_460 : f32 to vector<8x32xf32>
    %880 = arith.mulf %878, %879 : vector<8x32xf32>
    %cst_461 = arith.constant 0.000000e+00 : f32
    %881 = vector.broadcast %cst_461 : f32 to vector<8x32xf32>
    %882 = arith.maximumf %880, %881 : vector<8x32xf32>
    %883 = arith.addf %490, %882 : vector<8x32xf32>
    %c35 = arith.constant 35 : index
    %c0_462 = arith.constant 0 : index
    %c0_463 = arith.constant 0 : index
    %884 = vector.load %arg1[%c35, %c0_462, %c0_463] : memref<37x32x32xf32, #tpu.memory_space<vmem>>, vector<1x32x32xf32>
    %885 = vector.shape_cast %884 : vector<1x32x32xf32> to vector<32x32xf32>
    %cst_464 = arith.constant dense<0.000000e+00> : vector<8x32xf32>
    %886 = tpu.matmul %880, %885, %cst_464 {dimension_numbers = #tpu.dot_dimension_numbers<[1], [0], [0], [1], [0, 0, 1, 1], [], []>} : vector<8x32xf32>, vector<32x32xf32>, vector<8x32xf32> -> vector<8x32xf32>
    %c35_465 = arith.constant 35 : index
    %c0_466 = arith.constant 0 : index
    %c0_467 = arith.constant 0 : index
    %887 = vector.load %arg2[%c35_465, %c0_466, %c0_467] : memref<36x8x32xf32, #tpu.memory_space<vmem>>, vector<1x8x32xf32>
    %888 = vector.shape_cast %887 : vector<1x8x32xf32> to vector<8x32xf32>
    %889 = arith.addf %886, %888 : vector<8x32xf32>
    %890 = arith.mulf %889, %790 : vector<8x32xf32>
    %cst_468 = arith.constant dense<0xFF800000> : vector<8xf32>
    %891 = vector.multi_reduction <maximumf>, %890, %cst_468 [1] : vector<8x32xf32> to vector<8xf32>
    %892 = vector.shape_cast %891 : vector<8xf32> to vector<8x1xf32>
    %cst_469 = arith.constant 1.000000e+00 : f32
    %893 = vector.broadcast %cst_469 : f32 to vector<8x1xf32>
    %894 = arith.subf %892, %893 : vector<8x1xf32>
    %cst_470 = arith.constant 5.000000e-01 : f32
    %895 = vector.broadcast %cst_470 : f32 to vector<8x1xf32>
    %896 = arith.addf %894, %895 : vector<8x1xf32>
    %897 = vector.broadcast %896 : vector<8x1xf32> to vector<8x32xf32>
    %898 = arith.subf %890, %897 : vector<8x32xf32>
    %cst_471 = arith.constant 0.000000e+00 : f32
    %899 = vector.broadcast %cst_471 : f32 to vector<8x32xf32>
    %900 = arith.maximumf %898, %899 : vector<8x32xf32>
    %cst_472 = arith.constant dense<0.000000e+00> : vector<8xf32>
    %901 = vector.multi_reduction <add>, %900, %cst_472 [1] : vector<8x32xf32> to vector<8xf32>
    %902 = vector.shape_cast %901 : vector<8xf32> to vector<8x1xf32>
    %cst_473 = arith.constant 1.000000e+00 : f32
    %903 = vector.broadcast %cst_473 : f32 to vector<8x1xf32>
    %904 = arith.cmpf ogt, %902, %903 : vector<8x1xf32>
    %cst_474 = arith.constant 5.000000e-01 : f32
    %cst_475 = arith.constant 0.000000e+00 : f32
    %905 = vector.broadcast %cst_474 : f32 to vector<8x1xf32>
    %906 = vector.broadcast %cst_475 : f32 to vector<8x1xf32>
    %907 = arith.select %904, %905, %906 : vector<8x1xi1>, vector<8x1xf32>
    %908 = arith.addf %894, %907 : vector<8x1xf32>
    %cst_476 = arith.constant 2.500000e-01 : f32
    %909 = vector.broadcast %cst_476 : f32 to vector<8x1xf32>
    %910 = arith.addf %908, %909 : vector<8x1xf32>
    %911 = vector.broadcast %910 : vector<8x1xf32> to vector<8x32xf32>
    %912 = arith.subf %890, %911 : vector<8x32xf32>
    %cst_477 = arith.constant 0.000000e+00 : f32
    %913 = vector.broadcast %cst_477 : f32 to vector<8x32xf32>
    %914 = arith.maximumf %912, %913 : vector<8x32xf32>
    %cst_478 = arith.constant dense<0.000000e+00> : vector<8xf32>
    %915 = vector.multi_reduction <add>, %914, %cst_478 [1] : vector<8x32xf32> to vector<8xf32>
    %916 = vector.shape_cast %915 : vector<8xf32> to vector<8x1xf32>
    %cst_479 = arith.constant 1.000000e+00 : f32
    %917 = vector.broadcast %cst_479 : f32 to vector<8x1xf32>
    %918 = arith.cmpf ogt, %916, %917 : vector<8x1xf32>
    %cst_480 = arith.constant 2.500000e-01 : f32
    %cst_481 = arith.constant 0.000000e+00 : f32
    %919 = vector.broadcast %cst_480 : f32 to vector<8x1xf32>
    %920 = vector.broadcast %cst_481 : f32 to vector<8x1xf32>
    %921 = arith.select %918, %919, %920 : vector<8x1xi1>, vector<8x1xf32>
    %922 = arith.addf %908, %921 : vector<8x1xf32>
    %cst_482 = arith.constant 1.250000e-01 : f32
    %923 = vector.broadcast %cst_482 : f32 to vector<8x1xf32>
    %924 = arith.addf %922, %923 : vector<8x1xf32>
    %925 = vector.broadcast %924 : vector<8x1xf32> to vector<8x32xf32>
    %926 = arith.subf %890, %925 : vector<8x32xf32>
    %cst_483 = arith.constant 0.000000e+00 : f32
    %927 = vector.broadcast %cst_483 : f32 to vector<8x32xf32>
    %928 = arith.maximumf %926, %927 : vector<8x32xf32>
    %cst_484 = arith.constant dense<0.000000e+00> : vector<8xf32>
    %929 = vector.multi_reduction <add>, %928, %cst_484 [1] : vector<8x32xf32> to vector<8xf32>
    %930 = vector.shape_cast %929 : vector<8xf32> to vector<8x1xf32>
    %cst_485 = arith.constant 1.000000e+00 : f32
    %931 = vector.broadcast %cst_485 : f32 to vector<8x1xf32>
    %932 = arith.cmpf ogt, %930, %931 : vector<8x1xf32>
    %cst_486 = arith.constant 1.250000e-01 : f32
    %cst_487 = arith.constant 0.000000e+00 : f32
    %933 = vector.broadcast %cst_486 : f32 to vector<8x1xf32>
    %934 = vector.broadcast %cst_487 : f32 to vector<8x1xf32>
    %935 = arith.select %932, %933, %934 : vector<8x1xi1>, vector<8x1xf32>
    %936 = arith.addf %922, %935 : vector<8x1xf32>
    %cst_488 = arith.constant 6.250000e-02 : f32
    %937 = vector.broadcast %cst_488 : f32 to vector<8x1xf32>
    %938 = arith.addf %936, %937 : vector<8x1xf32>
    %939 = vector.broadcast %938 : vector<8x1xf32> to vector<8x32xf32>
    %940 = arith.subf %890, %939 : vector<8x32xf32>
    %cst_489 = arith.constant 0.000000e+00 : f32
    %941 = vector.broadcast %cst_489 : f32 to vector<8x32xf32>
    %942 = arith.maximumf %940, %941 : vector<8x32xf32>
    %cst_490 = arith.constant dense<0.000000e+00> : vector<8xf32>
    %943 = vector.multi_reduction <add>, %942, %cst_490 [1] : vector<8x32xf32> to vector<8xf32>
    %944 = vector.shape_cast %943 : vector<8xf32> to vector<8x1xf32>
    %cst_491 = arith.constant 1.000000e+00 : f32
    %945 = vector.broadcast %cst_491 : f32 to vector<8x1xf32>
    %946 = arith.cmpf ogt, %944, %945 : vector<8x1xf32>
    %cst_492 = arith.constant 6.250000e-02 : f32
    %cst_493 = arith.constant 0.000000e+00 : f32
    %947 = vector.broadcast %cst_492 : f32 to vector<8x1xf32>
    %948 = vector.broadcast %cst_493 : f32 to vector<8x1xf32>
    %949 = arith.select %946, %947, %948 : vector<8x1xi1>, vector<8x1xf32>
    %950 = arith.addf %936, %949 : vector<8x1xf32>
    %cst_494 = arith.constant 3.125000e-02 : f32
    %951 = vector.broadcast %cst_494 : f32 to vector<8x1xf32>
    %952 = arith.addf %950, %951 : vector<8x1xf32>
    %953 = vector.broadcast %952 : vector<8x1xf32> to vector<8x32xf32>
    %954 = arith.subf %890, %953 : vector<8x32xf32>
    %cst_495 = arith.constant 0.000000e+00 : f32
    %955 = vector.broadcast %cst_495 : f32 to vector<8x32xf32>
    %956 = arith.maximumf %954, %955 : vector<8x32xf32>
    %cst_496 = arith.constant dense<0.000000e+00> : vector<8xf32>
    %957 = vector.multi_reduction <add>, %956, %cst_496 [1] : vector<8x32xf32> to vector<8xf32>
    %958 = vector.shape_cast %957 : vector<8xf32> to vector<8x1xf32>
    %cst_497 = arith.constant 1.000000e+00 : f32
    %959 = vector.broadcast %cst_497 : f32 to vector<8x1xf32>
    %960 = arith.cmpf ogt, %958, %959 : vector<8x1xf32>
    %cst_498 = arith.constant 3.125000e-02 : f32
    %cst_499 = arith.constant 0.000000e+00 : f32
    %961 = vector.broadcast %cst_498 : f32 to vector<8x1xf32>
    %962 = vector.broadcast %cst_499 : f32 to vector<8x1xf32>
    %963 = arith.select %960, %961, %962 : vector<8x1xi1>, vector<8x1xf32>
    %964 = arith.addf %950, %963 : vector<8x1xf32>
    %cst_500 = arith.constant 1.562500e-02 : f32
    %965 = vector.broadcast %cst_500 : f32 to vector<8x1xf32>
    %966 = arith.addf %964, %965 : vector<8x1xf32>
    %967 = vector.broadcast %966 : vector<8x1xf32> to vector<8x32xf32>
    %968 = arith.subf %890, %967 : vector<8x32xf32>
    %cst_501 = arith.constant 0.000000e+00 : f32
    %969 = vector.broadcast %cst_501 : f32 to vector<8x32xf32>
    %970 = arith.maximumf %968, %969 : vector<8x32xf32>
    %cst_502 = arith.constant dense<0.000000e+00> : vector<8xf32>
    %971 = vector.multi_reduction <add>, %970, %cst_502 [1] : vector<8x32xf32> to vector<8xf32>
    %972 = vector.shape_cast %971 : vector<8xf32> to vector<8x1xf32>
    %cst_503 = arith.constant 1.000000e+00 : f32
    %973 = vector.broadcast %cst_503 : f32 to vector<8x1xf32>
    %974 = arith.cmpf ogt, %972, %973 : vector<8x1xf32>
    %cst_504 = arith.constant 1.562500e-02 : f32
    %cst_505 = arith.constant 0.000000e+00 : f32
    %975 = vector.broadcast %cst_504 : f32 to vector<8x1xf32>
    %976 = vector.broadcast %cst_505 : f32 to vector<8x1xf32>
    %977 = arith.select %974, %975, %976 : vector<8x1xi1>, vector<8x1xf32>
    %978 = arith.addf %964, %977 : vector<8x1xf32>
    %cst_506 = arith.constant 7.812500e-03 : f32
    %979 = vector.broadcast %cst_506 : f32 to vector<8x1xf32>
    %980 = arith.addf %978, %979 : vector<8x1xf32>
    %981 = vector.broadcast %980 : vector<8x1xf32> to vector<8x32xf32>
    %982 = arith.subf %890, %981 : vector<8x32xf32>
    %cst_507 = arith.constant 0.000000e+00 : f32
    %983 = vector.broadcast %cst_507 : f32 to vector<8x32xf32>
    %984 = arith.maximumf %982, %983 : vector<8x32xf32>
    %cst_508 = arith.constant dense<0.000000e+00> : vector<8xf32>
    %985 = vector.multi_reduction <add>, %984, %cst_508 [1] : vector<8x32xf32> to vector<8xf32>
    %986 = vector.shape_cast %985 : vector<8xf32> to vector<8x1xf32>
    %cst_509 = arith.constant 1.000000e+00 : f32
    %987 = vector.broadcast %cst_509 : f32 to vector<8x1xf32>
    %988 = arith.cmpf ogt, %986, %987 : vector<8x1xf32>
    %cst_510 = arith.constant 7.812500e-03 : f32
    %cst_511 = arith.constant 0.000000e+00 : f32
    %989 = vector.broadcast %cst_510 : f32 to vector<8x1xf32>
    %990 = vector.broadcast %cst_511 : f32 to vector<8x1xf32>
    %991 = arith.select %988, %989, %990 : vector<8x1xi1>, vector<8x1xf32>
    %992 = arith.addf %978, %991 : vector<8x1xf32>
    %cst_512 = arith.constant 3.906250e-03 : f32
    %993 = vector.broadcast %cst_512 : f32 to vector<8x1xf32>
    %994 = arith.addf %992, %993 : vector<8x1xf32>
    %995 = vector.broadcast %994 : vector<8x1xf32> to vector<8x32xf32>
    %996 = arith.subf %890, %995 : vector<8x32xf32>
    %cst_513 = arith.constant 0.000000e+00 : f32
    %997 = vector.broadcast %cst_513 : f32 to vector<8x32xf32>
    %998 = arith.maximumf %996, %997 : vector<8x32xf32>
    %cst_514 = arith.constant dense<0.000000e+00> : vector<8xf32>
    %999 = vector.multi_reduction <add>, %998, %cst_514 [1] : vector<8x32xf32> to vector<8xf32>
    %1000 = vector.shape_cast %999 : vector<8xf32> to vector<8x1xf32>
    %cst_515 = arith.constant 1.000000e+00 : f32
    %1001 = vector.broadcast %cst_515 : f32 to vector<8x1xf32>
    %1002 = arith.cmpf ogt, %1000, %1001 : vector<8x1xf32>
    %cst_516 = arith.constant 3.906250e-03 : f32
    %cst_517 = arith.constant 0.000000e+00 : f32
    %1003 = vector.broadcast %cst_516 : f32 to vector<8x1xf32>
    %1004 = vector.broadcast %cst_517 : f32 to vector<8x1xf32>
    %1005 = arith.select %1002, %1003, %1004 : vector<8x1xi1>, vector<8x1xf32>
    %1006 = arith.addf %992, %1005 : vector<8x1xf32>
    %cst_518 = arith.constant 0.001953125 : f32
    %1007 = vector.broadcast %cst_518 : f32 to vector<8x1xf32>
    %1008 = arith.addf %1006, %1007 : vector<8x1xf32>
    %1009 = vector.broadcast %1008 : vector<8x1xf32> to vector<8x32xf32>
    %1010 = arith.subf %890, %1009 : vector<8x32xf32>
    %cst_519 = arith.constant 0.000000e+00 : f32
    %1011 = vector.broadcast %cst_519 : f32 to vector<8x32xf32>
    %1012 = arith.maximumf %1010, %1011 : vector<8x32xf32>
    %cst_520 = arith.constant dense<0.000000e+00> : vector<8xf32>
    %1013 = vector.multi_reduction <add>, %1012, %cst_520 [1] : vector<8x32xf32> to vector<8xf32>
    %1014 = vector.shape_cast %1013 : vector<8xf32> to vector<8x1xf32>
    %cst_521 = arith.constant 1.000000e+00 : f32
    %1015 = vector.broadcast %cst_521 : f32 to vector<8x1xf32>
    %1016 = arith.cmpf ogt, %1014, %1015 : vector<8x1xf32>
    %cst_522 = arith.constant 0.001953125 : f32
    %cst_523 = arith.constant 0.000000e+00 : f32
    %1017 = vector.broadcast %cst_522 : f32 to vector<8x1xf32>
    %1018 = vector.broadcast %cst_523 : f32 to vector<8x1xf32>
    %1019 = arith.select %1016, %1017, %1018 : vector<8x1xi1>, vector<8x1xf32>
    %1020 = arith.addf %1006, %1019 : vector<8x1xf32>
    %cst_524 = arith.constant 9.765625E-4 : f32
    %1021 = vector.broadcast %cst_524 : f32 to vector<8x1xf32>
    %1022 = arith.addf %1020, %1021 : vector<8x1xf32>
    %1023 = vector.broadcast %1022 : vector<8x1xf32> to vector<8x32xf32>
    %1024 = arith.subf %890, %1023 : vector<8x32xf32>
    %cst_525 = arith.constant 0.000000e+00 : f32
    %1025 = vector.broadcast %cst_525 : f32 to vector<8x32xf32>
    %1026 = arith.maximumf %1024, %1025 : vector<8x32xf32>
    %cst_526 = arith.constant dense<0.000000e+00> : vector<8xf32>
    %1027 = vector.multi_reduction <add>, %1026, %cst_526 [1] : vector<8x32xf32> to vector<8xf32>
    %1028 = vector.shape_cast %1027 : vector<8xf32> to vector<8x1xf32>
    %cst_527 = arith.constant 1.000000e+00 : f32
    %1029 = vector.broadcast %cst_527 : f32 to vector<8x1xf32>
    %1030 = arith.cmpf ogt, %1028, %1029 : vector<8x1xf32>
    %cst_528 = arith.constant 9.765625E-4 : f32
    %cst_529 = arith.constant 0.000000e+00 : f32
    %1031 = vector.broadcast %cst_528 : f32 to vector<8x1xf32>
    %1032 = vector.broadcast %cst_529 : f32 to vector<8x1xf32>
    %1033 = arith.select %1030, %1031, %1032 : vector<8x1xi1>, vector<8x1xf32>
    %1034 = arith.addf %1020, %1033 : vector<8x1xf32>
    %cst_530 = arith.constant 4.8828125E-4 : f32
    %1035 = vector.broadcast %cst_530 : f32 to vector<8x1xf32>
    %1036 = arith.addf %1034, %1035 : vector<8x1xf32>
    %1037 = vector.broadcast %1036 : vector<8x1xf32> to vector<8x32xf32>
    %1038 = arith.subf %890, %1037 : vector<8x32xf32>
    %cst_531 = arith.constant 0.000000e+00 : f32
    %1039 = vector.broadcast %cst_531 : f32 to vector<8x32xf32>
    %1040 = arith.maximumf %1038, %1039 : vector<8x32xf32>
    %cst_532 = arith.constant dense<0.000000e+00> : vector<8xf32>
    %1041 = vector.multi_reduction <add>, %1040, %cst_532 [1] : vector<8x32xf32> to vector<8xf32>
    %1042 = vector.shape_cast %1041 : vector<8xf32> to vector<8x1xf32>
    %cst_533 = arith.constant 1.000000e+00 : f32
    %1043 = vector.broadcast %cst_533 : f32 to vector<8x1xf32>
    %1044 = arith.cmpf ogt, %1042, %1043 : vector<8x1xf32>
    %cst_534 = arith.constant 4.8828125E-4 : f32
    %cst_535 = arith.constant 0.000000e+00 : f32
    %1045 = vector.broadcast %cst_534 : f32 to vector<8x1xf32>
    %1046 = vector.broadcast %cst_535 : f32 to vector<8x1xf32>
    %1047 = arith.select %1044, %1045, %1046 : vector<8x1xi1>, vector<8x1xf32>
    %1048 = arith.addf %1034, %1047 : vector<8x1xf32>
    %cst_536 = arith.constant 2.44140625E-4 : f32
    %1049 = vector.broadcast %cst_536 : f32 to vector<8x1xf32>
    %1050 = arith.addf %1048, %1049 : vector<8x1xf32>
    %1051 = vector.broadcast %1050 : vector<8x1xf32> to vector<8x32xf32>
    %1052 = arith.subf %890, %1051 : vector<8x32xf32>
    %cst_537 = arith.constant 0.000000e+00 : f32
    %1053 = vector.broadcast %cst_537 : f32 to vector<8x32xf32>
    %1054 = arith.maximumf %1052, %1053 : vector<8x32xf32>
    %cst_538 = arith.constant dense<0.000000e+00> : vector<8xf32>
    %1055 = vector.multi_reduction <add>, %1054, %cst_538 [1] : vector<8x32xf32> to vector<8xf32>
    %1056 = vector.shape_cast %1055 : vector<8xf32> to vector<8x1xf32>
    %cst_539 = arith.constant 1.000000e+00 : f32
    %1057 = vector.broadcast %cst_539 : f32 to vector<8x1xf32>
    %1058 = arith.cmpf ogt, %1056, %1057 : vector<8x1xf32>
    %cst_540 = arith.constant 2.44140625E-4 : f32
    %cst_541 = arith.constant 0.000000e+00 : f32
    %1059 = vector.broadcast %cst_540 : f32 to vector<8x1xf32>
    %1060 = vector.broadcast %cst_541 : f32 to vector<8x1xf32>
    %1061 = arith.select %1058, %1059, %1060 : vector<8x1xi1>, vector<8x1xf32>
    %1062 = arith.addf %1048, %1061 : vector<8x1xf32>
    %cst_542 = arith.constant 1.22070313E-4 : f32
    %1063 = vector.broadcast %cst_542 : f32 to vector<8x1xf32>
    %1064 = arith.addf %1062, %1063 : vector<8x1xf32>
    %1065 = vector.broadcast %1064 : vector<8x1xf32> to vector<8x32xf32>
    %1066 = arith.subf %890, %1065 : vector<8x32xf32>
    %cst_543 = arith.constant 0.000000e+00 : f32
    %1067 = vector.broadcast %cst_543 : f32 to vector<8x32xf32>
    %1068 = arith.maximumf %1066, %1067 : vector<8x32xf32>
    %cst_544 = arith.constant dense<0.000000e+00> : vector<8xf32>
    %1069 = vector.multi_reduction <add>, %1068, %cst_544 [1] : vector<8x32xf32> to vector<8xf32>
    %1070 = vector.shape_cast %1069 : vector<8xf32> to vector<8x1xf32>
    %cst_545 = arith.constant 1.000000e+00 : f32
    %1071 = vector.broadcast %cst_545 : f32 to vector<8x1xf32>
    %1072 = arith.cmpf ogt, %1070, %1071 : vector<8x1xf32>
    %cst_546 = arith.constant 1.22070313E-4 : f32
    %cst_547 = arith.constant 0.000000e+00 : f32
    %1073 = vector.broadcast %cst_546 : f32 to vector<8x1xf32>
    %1074 = vector.broadcast %cst_547 : f32 to vector<8x1xf32>
    %1075 = arith.select %1072, %1073, %1074 : vector<8x1xi1>, vector<8x1xf32>
    %1076 = arith.addf %1062, %1075 : vector<8x1xf32>
    %cst_548 = arith.constant 6.10351563E-5 : f32
    %1077 = vector.broadcast %cst_548 : f32 to vector<8x1xf32>
    %1078 = arith.addf %1076, %1077 : vector<8x1xf32>
    %1079 = vector.broadcast %1078 : vector<8x1xf32> to vector<8x32xf32>
    %1080 = arith.subf %890, %1079 : vector<8x32xf32>
    %cst_549 = arith.constant 0.000000e+00 : f32
    %1081 = vector.broadcast %cst_549 : f32 to vector<8x32xf32>
    %1082 = arith.maximumf %1080, %1081 : vector<8x32xf32>
    %cst_550 = arith.constant dense<0.000000e+00> : vector<8xf32>
    %1083 = vector.multi_reduction <add>, %1082, %cst_550 [1] : vector<8x32xf32> to vector<8xf32>
    %1084 = vector.shape_cast %1083 : vector<8xf32> to vector<8x1xf32>
    %cst_551 = arith.constant 1.000000e+00 : f32
    %1085 = vector.broadcast %cst_551 : f32 to vector<8x1xf32>
    %1086 = arith.cmpf ogt, %1084, %1085 : vector<8x1xf32>
    %cst_552 = arith.constant 6.10351563E-5 : f32
    %cst_553 = arith.constant 0.000000e+00 : f32
    %1087 = vector.broadcast %cst_552 : f32 to vector<8x1xf32>
    %1088 = vector.broadcast %cst_553 : f32 to vector<8x1xf32>
    %1089 = arith.select %1086, %1087, %1088 : vector<8x1xi1>, vector<8x1xf32>
    %1090 = arith.addf %1076, %1089 : vector<8x1xf32>
    %cst_554 = arith.constant 3.05175781E-5 : f32
    %1091 = vector.broadcast %cst_554 : f32 to vector<8x1xf32>
    %1092 = arith.addf %1090, %1091 : vector<8x1xf32>
    %1093 = vector.broadcast %1092 : vector<8x1xf32> to vector<8x32xf32>
    %1094 = arith.subf %890, %1093 : vector<8x32xf32>
    %cst_555 = arith.constant 0.000000e+00 : f32
    %1095 = vector.broadcast %cst_555 : f32 to vector<8x32xf32>
    %1096 = arith.maximumf %1094, %1095 : vector<8x32xf32>
    %cst_556 = arith.constant dense<0.000000e+00> : vector<8xf32>
    %1097 = vector.multi_reduction <add>, %1096, %cst_556 [1] : vector<8x32xf32> to vector<8xf32>
    %1098 = vector.shape_cast %1097 : vector<8xf32> to vector<8x1xf32>
    %cst_557 = arith.constant 1.000000e+00 : f32
    %1099 = vector.broadcast %cst_557 : f32 to vector<8x1xf32>
    %1100 = arith.cmpf ogt, %1098, %1099 : vector<8x1xf32>
    %cst_558 = arith.constant 3.05175781E-5 : f32
    %cst_559 = arith.constant 0.000000e+00 : f32
    %1101 = vector.broadcast %cst_558 : f32 to vector<8x1xf32>
    %1102 = vector.broadcast %cst_559 : f32 to vector<8x1xf32>
    %1103 = arith.select %1100, %1101, %1102 : vector<8x1xi1>, vector<8x1xf32>
    %1104 = arith.addf %1090, %1103 : vector<8x1xf32>
    %cst_560 = arith.constant 1.52587891E-5 : f32
    %1105 = vector.broadcast %cst_560 : f32 to vector<8x1xf32>
    %1106 = arith.addf %1104, %1105 : vector<8x1xf32>
    %1107 = vector.broadcast %1106 : vector<8x1xf32> to vector<8x32xf32>
    %1108 = arith.subf %890, %1107 : vector<8x32xf32>
    %cst_561 = arith.constant 0.000000e+00 : f32
    %1109 = vector.broadcast %cst_561 : f32 to vector<8x32xf32>
    %1110 = arith.maximumf %1108, %1109 : vector<8x32xf32>
    %cst_562 = arith.constant dense<0.000000e+00> : vector<8xf32>
    %1111 = vector.multi_reduction <add>, %1110, %cst_562 [1] : vector<8x32xf32> to vector<8xf32>
    %1112 = vector.shape_cast %1111 : vector<8xf32> to vector<8x1xf32>
    %cst_563 = arith.constant 1.000000e+00 : f32
    %1113 = vector.broadcast %cst_563 : f32 to vector<8x1xf32>
    %1114 = arith.cmpf ogt, %1112, %1113 : vector<8x1xf32>
    %cst_564 = arith.constant 1.52587891E-5 : f32
    %cst_565 = arith.constant 0.000000e+00 : f32
    %1115 = vector.broadcast %cst_564 : f32 to vector<8x1xf32>
    %1116 = vector.broadcast %cst_565 : f32 to vector<8x1xf32>
    %1117 = arith.select %1114, %1115, %1116 : vector<8x1xi1>, vector<8x1xf32>
    %1118 = arith.addf %1104, %1117 : vector<8x1xf32>
    %cst_566 = arith.constant 7.62939453E-6 : f32
    %1119 = vector.broadcast %cst_566 : f32 to vector<8x1xf32>
    %1120 = arith.addf %1118, %1119 : vector<8x1xf32>
    %1121 = vector.broadcast %1120 : vector<8x1xf32> to vector<8x32xf32>
    %1122 = arith.subf %890, %1121 : vector<8x32xf32>
    %cst_567 = arith.constant 0.000000e+00 : f32
    %1123 = vector.broadcast %cst_567 : f32 to vector<8x32xf32>
    %1124 = arith.maximumf %1122, %1123 : vector<8x32xf32>
    %cst_568 = arith.constant dense<0.000000e+00> : vector<8xf32>
    %1125 = vector.multi_reduction <add>, %1124, %cst_568 [1] : vector<8x32xf32> to vector<8xf32>
    %1126 = vector.shape_cast %1125 : vector<8xf32> to vector<8x1xf32>
    %cst_569 = arith.constant 1.000000e+00 : f32
    %1127 = vector.broadcast %cst_569 : f32 to vector<8x1xf32>
    %1128 = arith.cmpf ogt, %1126, %1127 : vector<8x1xf32>
    %cst_570 = arith.constant 7.62939453E-6 : f32
    %cst_571 = arith.constant 0.000000e+00 : f32
    %1129 = vector.broadcast %cst_570 : f32 to vector<8x1xf32>
    %1130 = vector.broadcast %cst_571 : f32 to vector<8x1xf32>
    %1131 = arith.select %1128, %1129, %1130 : vector<8x1xi1>, vector<8x1xf32>
    %1132 = arith.addf %1118, %1131 : vector<8x1xf32>
    %cst_572 = arith.constant 3.81469727E-6 : f32
    %1133 = vector.broadcast %cst_572 : f32 to vector<8x1xf32>
    %1134 = arith.addf %1132, %1133 : vector<8x1xf32>
    %1135 = vector.broadcast %1134 : vector<8x1xf32> to vector<8x32xf32>
    %1136 = arith.subf %890, %1135 : vector<8x32xf32>
    %cst_573 = arith.constant 0.000000e+00 : f32
    %1137 = vector.broadcast %cst_573 : f32 to vector<8x32xf32>
    %1138 = arith.maximumf %1136, %1137 : vector<8x32xf32>
    %cst_574 = arith.constant dense<0.000000e+00> : vector<8xf32>
    %1139 = vector.multi_reduction <add>, %1138, %cst_574 [1] : vector<8x32xf32> to vector<8xf32>
    %1140 = vector.shape_cast %1139 : vector<8xf32> to vector<8x1xf32>
    %cst_575 = arith.constant 1.000000e+00 : f32
    %1141 = vector.broadcast %cst_575 : f32 to vector<8x1xf32>
    %1142 = arith.cmpf ogt, %1140, %1141 : vector<8x1xf32>
    %cst_576 = arith.constant 3.81469727E-6 : f32
    %cst_577 = arith.constant 0.000000e+00 : f32
    %1143 = vector.broadcast %cst_576 : f32 to vector<8x1xf32>
    %1144 = vector.broadcast %cst_577 : f32 to vector<8x1xf32>
    %1145 = arith.select %1142, %1143, %1144 : vector<8x1xi1>, vector<8x1xf32>
    %1146 = arith.addf %1132, %1145 : vector<8x1xf32>
    %cst_578 = arith.constant 1.90734863E-6 : f32
    %1147 = vector.broadcast %cst_578 : f32 to vector<8x1xf32>
    %1148 = arith.addf %1146, %1147 : vector<8x1xf32>
    %1149 = vector.broadcast %1148 : vector<8x1xf32> to vector<8x32xf32>
    %1150 = arith.subf %890, %1149 : vector<8x32xf32>
    %cst_579 = arith.constant 0.000000e+00 : f32
    %1151 = vector.broadcast %cst_579 : f32 to vector<8x32xf32>
    %1152 = arith.maximumf %1150, %1151 : vector<8x32xf32>
    %cst_580 = arith.constant dense<0.000000e+00> : vector<8xf32>
    %1153 = vector.multi_reduction <add>, %1152, %cst_580 [1] : vector<8x32xf32> to vector<8xf32>
    %1154 = vector.shape_cast %1153 : vector<8xf32> to vector<8x1xf32>
    %cst_581 = arith.constant 1.000000e+00 : f32
    %1155 = vector.broadcast %cst_581 : f32 to vector<8x1xf32>
    %1156 = arith.cmpf ogt, %1154, %1155 : vector<8x1xf32>
    %cst_582 = arith.constant 1.90734863E-6 : f32
    %cst_583 = arith.constant 0.000000e+00 : f32
    %1157 = vector.broadcast %cst_582 : f32 to vector<8x1xf32>
    %1158 = vector.broadcast %cst_583 : f32 to vector<8x1xf32>
    %1159 = arith.select %1156, %1157, %1158 : vector<8x1xi1>, vector<8x1xf32>
    %1160 = arith.addf %1146, %1159 : vector<8x1xf32>
    %cst_584 = arith.constant 9.53674316E-7 : f32
    %1161 = vector.broadcast %cst_584 : f32 to vector<8x1xf32>
    %1162 = arith.addf %1160, %1161 : vector<8x1xf32>
    %1163 = vector.broadcast %1162 : vector<8x1xf32> to vector<8x32xf32>
    %1164 = arith.subf %890, %1163 : vector<8x32xf32>
    %cst_585 = arith.constant 0.000000e+00 : f32
    %1165 = vector.broadcast %cst_585 : f32 to vector<8x32xf32>
    %1166 = arith.maximumf %1164, %1165 : vector<8x32xf32>
    %cst_586 = arith.constant dense<0.000000e+00> : vector<8xf32>
    %1167 = vector.multi_reduction <add>, %1166, %cst_586 [1] : vector<8x32xf32> to vector<8xf32>
    %1168 = vector.shape_cast %1167 : vector<8xf32> to vector<8x1xf32>
    %cst_587 = arith.constant 1.000000e+00 : f32
    %1169 = vector.broadcast %cst_587 : f32 to vector<8x1xf32>
    %1170 = arith.cmpf ogt, %1168, %1169 : vector<8x1xf32>
    %cst_588 = arith.constant 9.53674316E-7 : f32
    %cst_589 = arith.constant 0.000000e+00 : f32
    %1171 = vector.broadcast %cst_588 : f32 to vector<8x1xf32>
    %1172 = vector.broadcast %cst_589 : f32 to vector<8x1xf32>
    %1173 = arith.select %1170, %1171, %1172 : vector<8x1xi1>, vector<8x1xf32>
    %1174 = arith.addf %1160, %1173 : vector<8x1xf32>
    %cst_590 = arith.constant 4.76837158E-7 : f32
    %1175 = vector.broadcast %cst_590 : f32 to vector<8x1xf32>
    %1176 = arith.addf %1174, %1175 : vector<8x1xf32>
    %1177 = vector.broadcast %1176 : vector<8x1xf32> to vector<8x32xf32>
    %1178 = arith.subf %890, %1177 : vector<8x32xf32>
    %cst_591 = arith.constant 0.000000e+00 : f32
    %1179 = vector.broadcast %cst_591 : f32 to vector<8x32xf32>
    %1180 = arith.maximumf %1178, %1179 : vector<8x32xf32>
    %1181 = arith.mulf %1180, %6 : vector<8x32xf32>
    %c25 = arith.constant 25 : index
    %c0_592 = arith.constant 0 : index
    %c0_593 = arith.constant 0 : index
    %1182 = vector.load %arg1[%c25, %c0_592, %c0_593] : memref<37x32x32xf32, #tpu.memory_space<vmem>>, vector<1x32x32xf32>
    %1183 = vector.shape_cast %1182 : vector<1x32x32xf32> to vector<32x32xf32>
    %cst_594 = arith.constant dense<0.000000e+00> : vector<8x32xf32>
    %1184 = tpu.matmul %1181, %1183, %cst_594 {dimension_numbers = #tpu.dot_dimension_numbers<[1], [0], [0], [1], [0, 0, 1, 1], [], []>} : vector<8x32xf32>, vector<32x32xf32>, vector<8x32xf32> -> vector<8x32xf32>
    %c25_595 = arith.constant 25 : index
    %c0_596 = arith.constant 0 : index
    %c0_597 = arith.constant 0 : index
    %1185 = vector.load %arg2[%c25_595, %c0_596, %c0_597] : memref<36x8x32xf32, #tpu.memory_space<vmem>>, vector<1x8x32xf32>
    %1186 = vector.shape_cast %1185 : vector<1x8x32xf32> to vector<8x32xf32>
    %1187 = arith.addf %1184, %1186 : vector<8x32xf32>
    %c26 = arith.constant 26 : index
    %c0_598 = arith.constant 0 : index
    %c0_599 = arith.constant 0 : index
    %1188 = vector.load %arg1[%c26, %c0_598, %c0_599] : memref<37x32x32xf32, #tpu.memory_space<vmem>>, vector<1x32x32xf32>
    %1189 = vector.shape_cast %1188 : vector<1x32x32xf32> to vector<32x32xf32>
    %cst_600 = arith.constant dense<0.000000e+00> : vector<8x32xf32>
    %1190 = tpu.matmul %1181, %1189, %cst_600 {dimension_numbers = #tpu.dot_dimension_numbers<[1], [0], [0], [1], [0, 0, 1, 1], [], []>} : vector<8x32xf32>, vector<32x32xf32>, vector<8x32xf32> -> vector<8x32xf32>
    %c26_601 = arith.constant 26 : index
    %c0_602 = arith.constant 0 : index
    %c0_603 = arith.constant 0 : index
    %1191 = vector.load %arg2[%c26_601, %c0_602, %c0_603] : memref<36x8x32xf32, #tpu.memory_space<vmem>>, vector<1x8x32xf32>
    %1192 = vector.shape_cast %1191 : vector<1x8x32xf32> to vector<8x32xf32>
    %1193 = arith.addf %1190, %1192 : vector<8x32xf32>
    %cst_604 = arith.constant 5.000000e-01 : f32
    %1194 = vector.broadcast %cst_604 : f32 to vector<8x32xf32>
    %1195 = arith.mulf %1194, %1193 : vector<8x32xf32>
    %1196 = math.tanh %1195 : vector<8x32xf32>
    %cst_605 = arith.constant 1.000000e+00 : f32
    %1197 = vector.broadcast %cst_605 : f32 to vector<8x32xf32>
    %1198 = arith.addf %1196, %1197 : vector<8x32xf32>
    %cst_606 = arith.constant 5.000000e-01 : f32
    %1199 = vector.broadcast %cst_606 : f32 to vector<8x32xf32>
    %1200 = arith.mulf %1199, %1198 : vector<8x32xf32>
    %1201 = arith.mulf %1187, %1200 : vector<8x32xf32>
    %c27 = arith.constant 27 : index
    %c0_607 = arith.constant 0 : index
    %c0_608 = arith.constant 0 : index
    %1202 = vector.load %arg1[%c27, %c0_607, %c0_608] : memref<37x32x32xf32, #tpu.memory_space<vmem>>, vector<1x32x32xf32>
    %1203 = vector.shape_cast %1202 : vector<1x32x32xf32> to vector<32x32xf32>
    %cst_609 = arith.constant dense<0.000000e+00> : vector<8x32xf32>
    %1204 = tpu.matmul %1201, %1203, %cst_609 {dimension_numbers = #tpu.dot_dimension_numbers<[1], [0], [0], [1], [0, 0, 1, 1], [], []>} : vector<8x32xf32>, vector<32x32xf32>, vector<8x32xf32> -> vector<8x32xf32>
    %c27_610 = arith.constant 27 : index
    %c0_611 = arith.constant 0 : index
    %c0_612 = arith.constant 0 : index
    %1205 = vector.load %arg2[%c27_610, %c0_611, %c0_612] : memref<36x8x32xf32, #tpu.memory_space<vmem>>, vector<1x8x32xf32>
    %1206 = vector.shape_cast %1205 : vector<1x8x32xf32> to vector<8x32xf32>
    %1207 = arith.addf %1204, %1206 : vector<8x32xf32>
    %c28 = arith.constant 28 : index
    %c0_613 = arith.constant 0 : index
    %c0_614 = arith.constant 0 : index
    %1208 = vector.load %arg1[%c28, %c0_613, %c0_614] : memref<37x32x32xf32, #tpu.memory_space<vmem>>, vector<1x32x32xf32>
    %1209 = vector.shape_cast %1208 : vector<1x32x32xf32> to vector<32x32xf32>
    %cst_615 = arith.constant dense<0.000000e+00> : vector<8x32xf32>
    %1210 = tpu.matmul %1201, %1209, %cst_615 {dimension_numbers = #tpu.dot_dimension_numbers<[1], [0], [0], [1], [0, 0, 1, 1], [], []>} : vector<8x32xf32>, vector<32x32xf32>, vector<8x32xf32> -> vector<8x32xf32>
    %c28_616 = arith.constant 28 : index
    %c0_617 = arith.constant 0 : index
    %c0_618 = arith.constant 0 : index
    %1211 = vector.load %arg2[%c28_616, %c0_617, %c0_618] : memref<36x8x32xf32, #tpu.memory_space<vmem>>, vector<1x8x32xf32>
    %1212 = vector.shape_cast %1211 : vector<1x8x32xf32> to vector<8x32xf32>
    %1213 = arith.addf %1210, %1212 : vector<8x32xf32>
    %cst_619 = arith.constant 5.000000e-01 : f32
    %1214 = vector.broadcast %cst_619 : f32 to vector<8x32xf32>
    %1215 = arith.mulf %1214, %1213 : vector<8x32xf32>
    %1216 = math.tanh %1215 : vector<8x32xf32>
    %cst_620 = arith.constant 1.000000e+00 : f32
    %1217 = vector.broadcast %cst_620 : f32 to vector<8x32xf32>
    %1218 = arith.addf %1216, %1217 : vector<8x32xf32>
    %cst_621 = arith.constant 5.000000e-01 : f32
    %1219 = vector.broadcast %cst_621 : f32 to vector<8x32xf32>
    %1220 = arith.mulf %1219, %1218 : vector<8x32xf32>
    %1221 = arith.mulf %1207, %1220 : vector<8x32xf32>
    %1222 = arith.addf %1221, %1201 : vector<8x32xf32>
    %cst_622 = arith.constant 0.707106769 : f32
    %1223 = vector.broadcast %cst_622 : f32 to vector<8x32xf32>
    %1224 = arith.mulf %1222, %1223 : vector<8x32xf32>
    %c29 = arith.constant 29 : index
    %c0_623 = arith.constant 0 : index
    %c0_624 = arith.constant 0 : index
    %1225 = vector.load %arg1[%c29, %c0_623, %c0_624] : memref<37x32x32xf32, #tpu.memory_space<vmem>>, vector<1x32x32xf32>
    %1226 = vector.shape_cast %1225 : vector<1x32x32xf32> to vector<32x32xf32>
    %cst_625 = arith.constant dense<0.000000e+00> : vector<8x32xf32>
    %1227 = tpu.matmul %1224, %1226, %cst_625 {dimension_numbers = #tpu.dot_dimension_numbers<[1], [0], [0], [1], [0, 0, 1, 1], [], []>} : vector<8x32xf32>, vector<32x32xf32>, vector<8x32xf32> -> vector<8x32xf32>
    %c29_626 = arith.constant 29 : index
    %c0_627 = arith.constant 0 : index
    %c0_628 = arith.constant 0 : index
    %1228 = vector.load %arg2[%c29_626, %c0_627, %c0_628] : memref<36x8x32xf32, #tpu.memory_space<vmem>>, vector<1x8x32xf32>
    %1229 = vector.shape_cast %1228 : vector<1x8x32xf32> to vector<8x32xf32>
    %1230 = arith.addf %1227, %1229 : vector<8x32xf32>
    %c30 = arith.constant 30 : index
    %c0_629 = arith.constant 0 : index
    %c0_630 = arith.constant 0 : index
    %1231 = vector.load %arg1[%c30, %c0_629, %c0_630] : memref<37x32x32xf32, #tpu.memory_space<vmem>>, vector<1x32x32xf32>
    %1232 = vector.shape_cast %1231 : vector<1x32x32xf32> to vector<32x32xf32>
    %cst_631 = arith.constant dense<0.000000e+00> : vector<8x32xf32>
    %1233 = tpu.matmul %1224, %1232, %cst_631 {dimension_numbers = #tpu.dot_dimension_numbers<[1], [0], [0], [1], [0, 0, 1, 1], [], []>} : vector<8x32xf32>, vector<32x32xf32>, vector<8x32xf32> -> vector<8x32xf32>
    %c30_632 = arith.constant 30 : index
    %c0_633 = arith.constant 0 : index
    %c0_634 = arith.constant 0 : index
    %1234 = vector.load %arg2[%c30_632, %c0_633, %c0_634] : memref<36x8x32xf32, #tpu.memory_space<vmem>>, vector<1x8x32xf32>
    %1235 = vector.shape_cast %1234 : vector<1x8x32xf32> to vector<8x32xf32>
    %1236 = arith.addf %1233, %1235 : vector<8x32xf32>
    %cst_635 = arith.constant 5.000000e-01 : f32
    %1237 = vector.broadcast %cst_635 : f32 to vector<8x32xf32>
    %1238 = arith.mulf %1237, %1236 : vector<8x32xf32>
    %1239 = math.tanh %1238 : vector<8x32xf32>
    %cst_636 = arith.constant 1.000000e+00 : f32
    %1240 = vector.broadcast %cst_636 : f32 to vector<8x32xf32>
    %1241 = arith.addf %1239, %1240 : vector<8x32xf32>
    %cst_637 = arith.constant 5.000000e-01 : f32
    %1242 = vector.broadcast %cst_637 : f32 to vector<8x32xf32>
    %1243 = arith.mulf %1242, %1241 : vector<8x32xf32>
    %1244 = arith.mulf %1230, %1243 : vector<8x32xf32>
    %1245 = arith.addf %1244, %1224 : vector<8x32xf32>
    %cst_638 = arith.constant 0.707106769 : f32
    %1246 = vector.broadcast %cst_638 : f32 to vector<8x32xf32>
    %1247 = arith.mulf %1245, %1246 : vector<8x32xf32>
    %c31 = arith.constant 31 : index
    %c0_639 = arith.constant 0 : index
    %c0_640 = arith.constant 0 : index
    %1248 = vector.load %arg1[%c31, %c0_639, %c0_640] : memref<37x32x32xf32, #tpu.memory_space<vmem>>, vector<1x32x32xf32>
    %1249 = vector.shape_cast %1248 : vector<1x32x32xf32> to vector<32x32xf32>
    %cst_641 = arith.constant dense<0.000000e+00> : vector<8x32xf32>
    %1250 = tpu.matmul %1247, %1249, %cst_641 {dimension_numbers = #tpu.dot_dimension_numbers<[1], [0], [0], [1], [0, 0, 1, 1], [], []>} : vector<8x32xf32>, vector<32x32xf32>, vector<8x32xf32> -> vector<8x32xf32>
    %c31_642 = arith.constant 31 : index
    %c0_643 = arith.constant 0 : index
    %c0_644 = arith.constant 0 : index
    %1251 = vector.load %arg2[%c31_642, %c0_643, %c0_644] : memref<36x8x32xf32, #tpu.memory_space<vmem>>, vector<1x8x32xf32>
    %1252 = vector.shape_cast %1251 : vector<1x8x32xf32> to vector<8x32xf32>
    %1253 = arith.addf %1250, %1252 : vector<8x32xf32>
    %c32 = arith.constant 32 : index
    %c0_645 = arith.constant 0 : index
    %c0_646 = arith.constant 0 : index
    %1254 = vector.load %arg1[%c32, %c0_645, %c0_646] : memref<37x32x32xf32, #tpu.memory_space<vmem>>, vector<1x32x32xf32>
    %1255 = vector.shape_cast %1254 : vector<1x32x32xf32> to vector<32x32xf32>
    %cst_647 = arith.constant dense<0.000000e+00> : vector<8x32xf32>
    %1256 = tpu.matmul %1247, %1255, %cst_647 {dimension_numbers = #tpu.dot_dimension_numbers<[1], [0], [0], [1], [0, 0, 1, 1], [], []>} : vector<8x32xf32>, vector<32x32xf32>, vector<8x32xf32> -> vector<8x32xf32>
    %c32_648 = arith.constant 32 : index
    %c0_649 = arith.constant 0 : index
    %c0_650 = arith.constant 0 : index
    %1257 = vector.load %arg2[%c32_648, %c0_649, %c0_650] : memref<36x8x32xf32, #tpu.memory_space<vmem>>, vector<1x8x32xf32>
    %1258 = vector.shape_cast %1257 : vector<1x8x32xf32> to vector<8x32xf32>
    %1259 = arith.addf %1256, %1258 : vector<8x32xf32>
    %cst_651 = arith.constant 5.000000e-01 : f32
    %1260 = vector.broadcast %cst_651 : f32 to vector<8x32xf32>
    %1261 = arith.mulf %1260, %1259 : vector<8x32xf32>
    %1262 = math.tanh %1261 : vector<8x32xf32>
    %cst_652 = arith.constant 1.000000e+00 : f32
    %1263 = vector.broadcast %cst_652 : f32 to vector<8x32xf32>
    %1264 = arith.addf %1262, %1263 : vector<8x32xf32>
    %cst_653 = arith.constant 5.000000e-01 : f32
    %1265 = vector.broadcast %cst_653 : f32 to vector<8x32xf32>
    %1266 = arith.mulf %1265, %1264 : vector<8x32xf32>
    %1267 = arith.mulf %1253, %1266 : vector<8x32xf32>
    %1268 = arith.addf %1267, %1247 : vector<8x32xf32>
    %cst_654 = arith.constant 0.707106769 : f32
    %1269 = vector.broadcast %cst_654 : f32 to vector<8x32xf32>
    %1270 = arith.mulf %1268, %1269 : vector<8x32xf32>
    %cst_655 = arith.constant 0.000000e+00 : f32
    %1271 = vector.broadcast %cst_655 : f32 to vector<8x32xf32>
    %1272 = arith.maximumf %1270, %1271 : vector<8x32xf32>
    %1273 = arith.addf %883, %1272 : vector<8x32xf32>
    %c36 = arith.constant 36 : index
    %c0_656 = arith.constant 0 : index
    %c0_657 = arith.constant 0 : index
    %1274 = vector.load %arg1[%c36, %c0_656, %c0_657] : memref<37x32x32xf32, #tpu.memory_space<vmem>>, vector<1x32x32xf32>
    %1275 = vector.shape_cast %1274 : vector<1x32x32xf32> to vector<32x32xf32>
    %cst_658 = arith.constant dense<0.000000e+00> : vector<8x32xf32>
    %1276 = tpu.matmul %1273, %1275, %cst_658 {dimension_numbers = #tpu.dot_dimension_numbers<[1], [0], [0], [1], [0, 0, 1, 1], [], []>} : vector<8x32xf32>, vector<32x32xf32>, vector<8x32xf32> -> vector<8x32xf32>
    %c0_659 = arith.constant 0 : index
    %c0_660 = arith.constant 0 : index
    %1277 = vector.load %arg3[%c0_659, %c0_660] : memref<8x32xf32, #tpu.memory_space<vmem>>, vector<8x32xf32>
    tpu.vector_store %arg3[%c0_659, %c0_660], %1276 {strides = array<i32>} : memref<8x32xf32, #tpu.memory_space<vmem>>, vector<8x32xf32>,
    return
  }
}

</mosaic_0001>

<llo_original>
// kernel: tpu_custom_call.1
$region0: #{tpu_custom_call.1}
  #allocation0 [shape = 'u32[]', space=smem, size = 0x4, offset = 0x4, fixed_abs, tag = 'smem constant byte address 0x4 - core index']
  #allocation1 [shape = 'u32[144,128]{1,0:T(1,128)}', space=vmem, size = 0x12000, scoped, tag = 'internal scratch']
  %s0 = inlined_call_operand.vmem [shape: f32[8,32], index: 0, kind: input, shape index: {}]
  %s1 = inlined_call_operand.vmem [shape: f32[37,32,32], index: 1, kind: input, shape index: {}]
  %s2 = inlined_call_operand.vmem [shape: f32[36,8,32], index: 2, kind: input, shape index: {}]
  %s3 = inlined_call_operand.hbm [shape: f32[8,32], index: 3, kind: output, shape index: {}]
  %s4 = sld [smem:[#allocation0]]
  $region22: #{tpu_custom_call.1} parent=0
    _
  %s6 = ssub.s32 1, %s4
  %s7 = scalar_select 0, %s6, %s4
  $region1: #{tpu_custom_call.1} parent=0
    #allocation2 [shape = 'u8[4096]{0}', space=vmem, size = 0x1000, scoped, tag = 'output window, operand 0, single buffered']
    #allocation3 [shape = 's32[1]{0}', space=sflag, size = 0x4, scoped, tag = 'scoped memory for tpu_custom_call.1']
    %8 = vsyncpa [#allocation3], 0
    // Predicated region
    $region2: #{tpu_custom_call.1} parent=1 // pred_check
      _
    $region3: #{tpu_custom_call.1} parent=1 // pred_check_branch
      %10 = sbr.rel (0) target = $region5
    $region4: #{tpu_custom_call.1} parent=1 // pred_region
      _
    $region5: #{tpu_custom_call.1} parent=1 // pred_fallthru
      _
    // Predicated region
    $region6: #{tpu_custom_call.1} parent=1 // pred_check
      _
    $region7: #{tpu_custom_call.1} parent=1 // pred_check_branch
      %12 = sbr.rel (0) target = $region9
    $region8: #{tpu_custom_call.1} parent=1 // pred_region
      _
    $region9: #{tpu_custom_call.1} parent=1 // pred_fallthru
      _
    // Predicated region
    $region10: #{tpu_custom_call.1} parent=1 // pred_check
      _
    $region11: #{tpu_custom_call.1} parent=1 // pred_check_branch
      %14 = sbr.rel (0) target = $region13
    $region12: #{tpu_custom_call.1} parent=1 // pred_region
      _
    $region13: #{tpu_custom_call.1} parent=1 // pred_fallthru
      _
    %v15 = vld [vmem:[%s0] sm:$0xff]
    %v16 = vld [vmem:[%s1] sm:$0xff]
    %v17 = vld [vmem:[%s1 + $0x8] sm:$0xff]
    %v18 = vld [vmem:[%s1 + $0x10] sm:$0xff]
    %v19 = vld [vmem:[%s1 + $0x18] sm:$0xff]
    %v20 = vld [vmem:[%s2] sm:$0xff]
    %vm21 = vcmask 261120
    %v23 = vsel %vm21, %v15, 0
    %25 = vmatprep.subr.mxu0 0.0
    %26 = vmatpush1.msra.mxu0 %v16
    %27 = vmatprep.subr.mxu0 0.0
    %28 = vmatpush1.msra.mxu0 %v17
    %29 = vmatprep.subr.mxu0 0.0
    %30 = vmatpush1.msra.mxu0 %v18
    %31 = vmatprep.subr.mxu0 0.0
    %32 = vmatpush1.msra.mxu0 %v19
    %33 = vmatprep.subr.mxu0 0.0
    %34 = vmatpush1.msra.mxu0 0.0
    %35 = vmatprep.subr.mxu0 0.0
    %36 = vmatpush1.msra.mxu0 0.0
    %37 = vmatprep.subr.mxu0 0.0
    %38 = vmatpush1.msra.mxu0 0.0
    %39 = vmatprep.subr.mxu0 0.0
    %40 = vmatpush1.msra.mxu0 0.0
    %41 = vmatprep.subr.mxu0 0.0
    %42 = vmatpush1.msra.mxu0 0.0
    %43 = vmatprep.subr.mxu0 0.0
    %44 = vmatpush1.msra.mxu0 0.0
    %45 = vmatprep.subr.mxu0 0.0
    %46 = vmatpush1.msra.mxu0 0.0
    %47 = vmatprep.subr.mxu0 0.0
    %48 = vmatpush1.msra.mxu0 0.0
    %49 = vmatprep.subr.mxu0 0.0
    %50 = vmatpush1.msra.mxu0 0.0
    %51 = vmatprep.subr.mxu0 0.0
    %52 = vmatpush1.msra.mxu0 0.0
    %53 = vmatprep.subr.mxu0 0.0
    %54 = vmatpush1.msra.mxu0 0.0
    %55 = vmatprep.subr.mxu0 0.0
    %56 = vmatpush1.msra.mxu0 0.0
    %57 = vmatprep.subr.mxu0 0.0
    %58 = vmatpush1.msra.mxu0 0.0
    %59 = vmatprep.subr.mxu0 0.0
    %60 = vmatpush1.msra.mxu0 0.0
    %61 = vmatprep.subr.mxu0 0.0
    %62 = vmatpush1.msra.mxu0 0.0
    %63 = vmatprep.subr.mxu0 0.0
    %64 = vmatpush1.msra.mxu0 0.0
    %65 = vmatprep.subr.mxu0 0.0
    %66 = vmatpush1.msra.mxu0 0.0
    %67 = vmatprep.subr.mxu0 0.0
    %68 = vmatpush1.msra.mxu0 0.0
    %69 = vmatprep.subr.mxu0 0.0
    %70 = vmatpush1.msra.mxu0 0.0
    %71 = vmatprep.subr.mxu0 0.0
    %72 = vmatpush1.msra.mxu0 0.0
    %73 = vmatprep.subr.mxu0 0.0
    %74 = vmatpush1.msra.mxu0 0.0
    %75 = vmatprep.subr.mxu0 0.0
    %76 = vmatpush1.msra.mxu0 0.0
    %77 = vmatprep.subr.mxu0 0.0
    %78 = vmatpush1.msra.mxu0 0.0
    %79 = vmatprep.subr.mxu0 0.0
    %80 = vmatpush1.msra.mxu0 0.0
    %81 = vmatprep.subr.mxu0 0.0
    %82 = vmatpush1.msra.mxu0 0.0
    %83 = vmatprep.subr.mxu0 0.0
    %84 = vmatpush1.msra.mxu0 0.0
    %85 = vmatprep.subr.mxu0 0.0
    %86 = vmatpush1.msra.mxu0 0.0
    %87 = vmatprep.subr.mxu0 0.0
    %88 = vmatpush1.msra.mxu0 0.0
    %89 = vmatprep.mubr.f32.mxu0 0.0
    %90 = vmatmul.mubr.f32.gmra.mrb[0].mxu0 %v23
    %v91 = vpop.f32.mrb[0].mxu0
    %v92 = vadd.f32 %v20, %v91
    %v93 = vpop.f32.mrb[0].mxu0
    %94 = vdwg.mxu0
    %s95 = scalar_lea.vmem %s1, 32
    %v96 = vld [vmem:[%s95] sm:$0xff]
    %v97 = vld [vmem:[%s95 + $0x8] sm:$0xff]
    %v98 = vld [vmem:[%s95 + $0x10] sm:$0xff]
    %v99 = vld [vmem:[%s95 + $0x18] sm:$0xff]
    %s100 = scalar_lea.vmem %s2, 8
    %v101 = vld [vmem:[%s100] sm:$0xff]
    %v103 = vsel %vm21, %v92, 0
    %105 = vmatprep.subr.mxu0 0.0
    %106 = vmatpush1.msra.mxu0 %v96
    %107 = vmatprep.subr.mxu0 0.0
    %108 = vmatpush1.msra.mxu0 %v97
    %109 = vmatprep.subr.mxu0 0.0
    %110 = vmatpush1.msra.mxu0 %v98
    %111 = vmatprep.subr.mxu0 0.0
    %112 = vmatpush1.msra.mxu0 %v99
    %113 = vmatprep.subr.mxu0 0.0
    %114 = vmatpush1.msra.mxu0 0.0
    %115 = vmatprep.subr.mxu0 0.0
    %116 = vmatpush1.msra.mxu0 0.0
    %117 = vmatprep.subr.mxu0 0.0
    %118 = vmatpush1.msra.mxu0 0.0
    %119 = vmatprep.subr.mxu0 0.0
    %120 = vmatpush1.msra.mxu0 0.0
    %121 = vmatprep.subr.mxu0 0.0
    %122 = vmatpush1.msra.mxu0 0.0
    %123 = vmatprep.subr.mxu0 0.0
    %124 = vmatpush1.msra.mxu0 0.0
    %125 = vmatprep.subr.mxu0 0.0
    %126 = vmatpush1.msra.mxu0 0.0
    %127 = vmatprep.subr.mxu0 0.0
    %128 = vmatpush1.msra.mxu0 0.0
    %129 = vmatprep.subr.mxu0 0.0
    %130 = vmatpush1.msra.mxu0 0.0
    %131 = vmatprep.subr.mxu0 0.0
    %132 = vmatpush1.msra.mxu0 0.0
    %133 = vmatprep.subr.mxu0 0.0
    %134 = vmatpush1.msra.mxu0 0.0
    %135 = vmatprep.subr.mxu0 0.0
    %136 = vmatpush1.msra.mxu0 0.0
    %137 = vmatprep.subr.mxu0 0.0
    %138 = vmatpush1.msra.mxu0 0.0
    %139 = vmatprep.subr.mxu0 0.0
    %140 = vmatpush1.msra.mxu0 0.0
    %141 = vmatprep.subr.mxu0 0.0
    %142 = vmatpush1.msra.mxu0 0.0
    %143 = vmatprep.subr.mxu0 0.0
    %144 = vmatpush1.msra.mxu0 0.0
    %145 = vmatprep.subr.mxu0 0.0
    %146 = vmatpush1.msra.mxu0 0.0
    %147 = vmatprep.subr.mxu0 0.0
    %148 = vmatpush1.msra.mxu0 0.0
    %149 = vmatprep.subr.mxu0 0.0
    %150 = vmatpush1.msra.mxu0 0.0
    %151 = vmatprep.subr.mxu0 0.0
    %152 = vmatpush1.msra.mxu0 0.0
    %153 = vmatprep.subr.mxu0 0.0
    %154 = vmatpush1.msra.mxu0 0.0
    %155 = vmatprep.subr.mxu0 0.0
    %156 = vmatpush1.msra.mxu0 0.0
    %157 = vmatprep.subr.mxu0 0.0
    %158 = vmatpush1.msra.mxu0 0.0
    %159 = vmatprep.subr.mxu0 0.0
    %160 = vmatpush1.msra.mxu0 0.0
    %161 = vmatprep.subr.mxu0 0.0
    %162 = vmatpush1.msra.mxu0 0.0
    %163 = vmatprep.subr.mxu0 0.0
    %164 = vmatpush1.msra.mxu0 0.0
    %165 = vmatprep.subr.mxu0 0.0
    %166 = vmatpush1.msra.mxu0 0.0
    %167 = vmatprep.subr.mxu0 0.0
    %168 = vmatpush1.msra.mxu0 0.0
    %169 = vmatprep.mubr.f32.mxu0 0.0
    %170 = vmatmul.mubr.f32.gmra.mrb[0].mxu0 %v103
    %v171 = vpop.f32.mrb[0].mxu0
    %v172 = vadd.f32 %v101, %v171
    %v173 = vpop.f32.mrb[0].mxu0
    %174 = vdwg.mxu0
    %s175 = scalar_lea.vmem %s1, 64
    %v176 = vld [vmem:[%s175] sm:$0xff]
    %v177 = vld [vmem:[%s175 + $0x8] sm:$0xff]
    %v178 = vld [vmem:[%s175 + $0x10] sm:$0xff]
    %v179 = vld [vmem:[%s175 + $0x18] sm:$0xff]
    %s180 = scalar_lea.vmem %s2, 16
    %v181 = vld [vmem:[%s180] sm:$0xff]
    %182 = vmatprep.subr.mxu0 0.0
    %183 = vmatpush1.msra.mxu0 %v176
    %184 = vmatprep.subr.mxu0 0.0
    %185 = vmatpush1.msra.mxu0 %v177
    %186 = vmatprep.subr.mxu0 0.0
    %187 = vmatpush1.msra.mxu0 %v178
    %188 = vmatprep.subr.mxu0 0.0
    %189 = vmatpush1.msra.mxu0 %v179
    %190 = vmatprep.subr.mxu0 0.0
    %191 = vmatpush1.msra.mxu0 0.0
    %192 = vmatprep.subr.mxu0 0.0
    %193 = vmatpush1.msra.mxu0 0.0
    %194 = vmatprep.subr.mxu0 0.0
    %195 = vmatpush1.msra.mxu0 0.0
    %196 = vmatprep.subr.mxu0 0.0
    %197 = vmatpush1.msra.mxu0 0.0
    %198 = vmatprep.subr.mxu0 0.0
    %199 = vmatpush1.msra.mxu0 0.0
    %200 = vmatprep.subr.mxu0 0.0
    %201 = vmatpush1.msra.mxu0 0.0
    %202 = vmatprep.subr.mxu0 0.0
    %203 = vmatpush1.msra.mxu0 0.0
    %204 = vmatprep.subr.mxu0 0.0
    %205 = vmatpush1.msra.mxu0 0.0
    %206 = vmatprep.subr.mxu0 0.0
    %207 = vmatpush1.msra.mxu0 0.0
    %208 = vmatprep.subr.mxu0 0.0
    %209 = vmatpush1.msra.mxu0 0.0
    %210 = vmatprep.subr.mxu0 0.0
    %211 = vmatpush1.msra.mxu0 0.0
    %212 = vmatprep.subr.mxu0 0.0
    %213 = vmatpush1.msra.mxu0 0.0
    %214 = vmatprep.subr.mxu0 0.0
    %215 = vmatpush1.msra.mxu0 0.0
    %216 = vmatprep.subr.mxu0 0.0
    %217 = vmatpush1.msra.mxu0 0.0
    %218 = vmatprep.subr.mxu0 0.0
    %219 = vmatpush1.msra.mxu0 0.0
    %220 = vmatprep.subr.mxu0 0.0
    %221 = vmatpush1.msra.mxu0 0.0
    %222 = vmatprep.subr.mxu0 0.0
    %223 = vmatpush1.msra.mxu0 0.0
    %224 = vmatprep.subr.mxu0 0.0
    %225 = vmatpush1.msra.mxu0 0.0
    %226 = vmatprep.subr.mxu0 0.0
    %227 = vmatpush1.msra.mxu0 0.0
    %228 = vmatprep.subr.mxu0 0.0
    %229 = vmatpush1.msra.mxu0 0.0
    %230 = vmatprep.subr.mxu0 0.0
    %231 = vmatpush1.msra.mxu0 0.0
    %232 = vmatprep.subr.mxu0 0.0
    %233 = vmatpush1.msra.mxu0 0.0
    %234 = vmatprep.subr.mxu0 0.0
    %235 = vmatpush1.msra.mxu0 0.0
    %236 = vmatprep.subr.mxu0 0.0
    %237 = vmatpush1.msra.mxu0 0.0
    %238 = vmatprep.subr.mxu0 0.0
    %239 = vmatpush1.msra.mxu0 0.0
    %240 = vmatprep.subr.mxu0 0.0
    %241 = vmatpush1.msra.mxu0 0.0
    %242 = vmatprep.subr.mxu0 0.0
    %243 = vmatpush1.msra.mxu0 0.0
    %244 = vmatprep.subr.mxu0 0.0
    %245 = vmatpush1.msra.mxu0 0.0
    %246 = vmatprep.mubr.f32.mxu0 0.0
    %247 = vmatmul.mubr.f32.gmra.mrb[0].mxu0 %v103
    %v248 = vpop.f32.mrb[0].mxu0
    %v249 = vadd.f32 %v181, %v248
    %v250 = vpop.f32.mrb[0].mxu0
    %251 = vdwg.mxu0
    %v252 = vmul.f32 %v249, 0.5
    %v253 = vtanh.pop %v252
    %v254 = vadd.f32 %v253, 1.0
    %v255 = vmul.f32 %v254, 0.5
    %v256 = vmul.f32 %v172, %v255
    %s257 = scalar_lea.vmem %s1, 96
    %v258 = vld [vmem:[%s257] sm:$0xff]
    %v259 = vld [vmem:[%s257 + $0x8] sm:$0xff]
    %v260 = vld [vmem:[%s257 + $0x10] sm:$0xff]
    %v261 = vld [vmem:[%s257 + $0x18] sm:$0xff]
    %s262 = scalar_lea.vmem %s2, 24
    %v263 = vld [vmem:[%s262] sm:$0xff]
    %v265 = vsel %vm21, %v256, 0
    %267 = vmatprep.subr.mxu0 0.0
    %268 = vmatpush1.msra.mxu0 %v258
    %269 = vmatprep.subr.mxu0 0.0
    %270 = vmatpush1.msra.mxu0 %v259
    %271 = vmatprep.subr.mxu0 0.0
    %272 = vmatpush1.msra.mxu0 %v260
    %273 = vmatprep.subr.mxu0 0.0
    %274 = vmatpush1.msra.mxu0 %v261
    %275 = vmatprep.subr.mxu0 0.0
    %276 = vmatpush1.msra.mxu0 0.0
    %277 = vmatprep.subr.mxu0 0.0
    %278 = vmatpush1.msra.mxu0 0.0
    %279 = vmatprep.subr.mxu0 0.0
    %280 = vmatpush1.msra.mxu0 0.0
    %281 = vmatprep.subr.mxu0 0.0
    %282 = vmatpush1.msra.mxu0 0.0
    %283 = vmatprep.subr.mxu0 0.0
    %284 = vmatpush1.msra.mxu0 0.0
    %285 = vmatprep.subr.mxu0 0.0
    %286 = vmatpush1.msra.mxu0 0.0
    %287 = vmatprep.subr.mxu0 0.0
    %288 = vmatpush1.msra.mxu0 0.0
    %289 = vmatprep.subr.mxu0 0.0
    %290 = vmatpush1.msra.mxu0 0.0
    %291 = vmatprep.subr.mxu0 0.0
    %292 = vmatpush1.msra.mxu0 0.0
    %293 = vmatprep.subr.mxu0 0.0
    %294 = vmatpush1.msra.mxu0 0.0
    %295 = vmatprep.subr.mxu0 0.0
    %296 = vmatpush1.msra.mxu0 0.0
    %297 = vmatprep.subr.mxu0 0.0
    %298 = vmatpush1.msra.mxu0 0.0
    %299 = vmatprep.subr.mxu0 0.0
    %300 = vmatpush1.msra.mxu0 0.0
    %301 = vmatprep.subr.mxu0 0.0
    %302 = vmatpush1.msra.mxu0 0.0
    %303 = vmatprep.subr.mxu0 0.0
    %304 = vmatpush1.msra.mxu0 0.0
    %305 = vmatprep.subr.mxu0 0.0
    %306 = vmatpush1.msra.mxu0 0.0
    %307 = vmatprep.subr.mxu0 0.0
    %308 = vmatpush1.msra.mxu0 0.0
    %309 = vmatprep.subr.mxu0 0.0
    %310 = vmatpush1.msra.mxu0 0.0
    %311 = vmatprep.subr.mxu0 0.0
    %312 = vmatpush1.msra.mxu0 0.0
    %313 = vmatprep.subr.mxu0 0.0
    %314 = vmatpush1.msra.mxu0 0.0
    %315 = vmatprep.subr.mxu0 0.0
    %316 = vmatpush1.msra.mxu0 0.0
    %317 = vmatprep.subr.mxu0 0.0
    %318 = vmatpush1.msra.mxu0 0.0
    %319 = vmatprep.subr.mxu0 0.0
    %320 = vmatpush1.msra.mxu0 0.0
    %321 = vmatprep.subr.mxu0 0.0
    %322 = vmatpush1.msra.mxu0 0.0
    %323 = vmatprep.subr.mxu0 0.0
    %324 = vmatpush1.msra.mxu0 0.0
    %325 = vmatprep.subr.mxu0 0.0
    %326 = vmatpush1.msra.mxu0 0.0
    %327 = vmatprep.subr.mxu0 0.0
    %328 = vmatpush1.msra.mxu0 0.0
    %329 = vmatprep.subr.mxu0 0.0
    %330 = vmatpush1.msra.mxu0 0.0
    %331 = vmatprep.mubr.f32.mxu0 0.0
    %332 = vmatmul.mubr.f32.gmra.mrb[0].mxu0 %v265
    %v333 = vpop.f32.mrb[0].mxu0
    %v334 = vadd.f32 %v263, %v333
    %v335 = vpop.f32.mrb[0].mxu0
    %336 = vdwg.mxu0
    %s337 = scalar_lea.vmem %s1, 128
    %v338 = vld [vmem:[%s337] sm:$0xff]
    %v339 = vld [vmem:[%s337 + $0x8] sm:$0xff]
    %v340 = vld [vmem:[%s337 + $0x10] sm:$0xff]
    %v341 = vld [vmem:[%s337 + $0x18] sm:$0xff]
    %s342 = scalar_lea.vmem %s2, 32
    %v343 = vld [vmem:[%s342] sm:$0xff]
    %344 = vmatprep.subr.mxu0 0.0
    %345 = vmatpush1.msra.mxu0 %v338
    %346 = vmatprep.subr.mxu0 0.0
    %347 = vmatpush1.msra.mxu0 %v339
    %348 = vmatprep.subr.mxu0 0.0
    %349 = vmatpush1.msra.mxu0 %v340
    %350 = vmatprep.subr.mxu0 0.0
    %351 = vmatpush1.msra.mxu0 %v341
    %352 = vmatprep.subr.mxu0 0.0
    %353 = vmatpush1.msra.mxu0 0.0
    %354 = vmatprep.subr.mxu0 0.0
    %355 = vmatpush1.msra.mxu0 0.0
    %356 = vmatprep.subr.mxu0 0.0
    %357 = vmatpush1.msra.mxu0 0.0
    %358 = vmatprep.subr.mxu0 0.0
    %359 = vmatpush1.msra.mxu0 0.0
    %360 = vmatprep.subr.mxu0 0.0
    %361 = vmatpush1.msra.mxu0 0.0
    %362 = vmatprep.subr.mxu0 0.0
    %363 = vmatpush1.msra.mxu0 0.0
    %364 = vmatprep.subr.mxu0 0.0
    %365 = vmatpush1.msra.mxu0 0.0
    %366 = vmatprep.subr.mxu0 0.0
    %367 = vmatpush1.msra.mxu0 0.0
    %368 = vmatprep.subr.mxu0 0.0
    %369 = vmatpush1.msra.mxu0 0.0
    %370 = vmatprep.subr.mxu0 0.0
    %371 = vmatpush1.msra.mxu0 0.0
    %372 = vmatprep.subr.mxu0 0.0
    %373 = vmatpush1.msra.mxu0 0.0
    %374 = vmatprep.subr.mxu0 0.0
    %375 = vmatpush1.msra.mxu0 0.0
    %376 = vmatprep.subr.mxu0 0.0
    %377 = vmatpush1.msra.mxu0 0.0
    %378 = vmatprep.subr.mxu0 0.0
    %379 = vmatpush1.msra.mxu0 0.0
    %380 = vmatprep.subr.mxu0 0.0
    %381 = vmatpush1.msra.mxu0 0.0
    %382 = vmatprep.subr.mxu0 0.0
    %383 = vmatpush1.msra.mxu0 0.0
    %384 = vmatprep.subr.mxu0 0.0
    %385 = vmatpush1.msra.mxu0 0.0
    %386 = vmatprep.subr.mxu0 0.0
    %387 = vmatpush1.msra.mxu0 0.0
    %388 = vmatprep.subr.mxu0 0.0
    %389 = vmatpush1.msra.mxu0 0.0
    %390 = vmatprep.subr.mxu0 0.0
    %391 = vmatpush1.msra.mxu0 0.0
    %392 = vmatprep.subr.mxu0 0.0
    %393 = vmatpush1.msra.mxu0 0.0
    %394 = vmatprep.subr.mxu0 0.0
    %395 = vmatpush1.msra.mxu0 0.0
    %396 = vmatprep.subr.mxu0 0.0
    %397 = vmatpush1.msra.mxu0 0.0
    %398 = vmatprep.subr.mxu0 0.0
    %399 = vmatpush1.msra.mxu0 0.0
    %400 = vmatprep.subr.mxu0 0.0
    %401 = vmatpush1.msra.mxu0 0.0
    %402 = vmatprep.subr.mxu0 0.0
    %403 = vmatpush1.msra.mxu0 0.0
    %404 = vmatprep.subr.mxu0 0.0
    %405 = vmatpush1.msra.mxu0 0.0
    %406 = vmatprep.subr.mxu0 0.0
    %407 = vmatpush1.msra.mxu0 0.0
    %408 = vmatprep.mubr.f32.mxu0 0.0
    %409 = vmatmul.mubr.f32.gmra.mrb[0].mxu0 %v265
    %v410 = vpop.f32.mrb[0].mxu0
    %v411 = vadd.f32 %v343, %v410
    %v412 = vpop.f32.mrb[0].mxu0
    %413 = vdwg.mxu0
    %v414 = vmul.f32 %v411, 0.5
    %v415 = vtanh.pop %v414
    %v416 = vadd.f32 %v415, 1.0
    %v417 = vmul.f32 %v416, 0.5
    %v418 = vmul.f32 %v334, %v417
    %v419 = vadd.f32 %v418, %v256
    %v420 = vmul.f32 %v419, 0.70710677
    %s421 = scalar_lea.vmem %s1, 160
    %v422 = vld [vmem:[%s421] sm:$0xff]
    %v423 = vld [vmem:[%s421 + $0x8] sm:$0xff]
    %v424 = vld [vmem:[%s421 + $0x10] sm:$0xff]
    %v425 = vld [vmem:[%s421 + $0x18] sm:$0xff]
    %s426 = scalar_lea.vmem %s2, 40
    %v427 = vld [vmem:[%s426] sm:$0xff]
    %v429 = vsel %vm21, %v420, 0
    %431 = vmatprep.subr.mxu0 0.0
    %432 = vmatpush1.msra.mxu0 %v422
    %433 = vmatprep.subr.mxu0 0.0
    %434 = vmatpush1.msra.mxu0 %v423
    %435 = vmatprep.subr.mxu0 0.0
    %436 = vmatpush1.msra.mxu0 %v424
    %437 = vmatprep.subr.mxu0 0.0
    %438 = vmatpush1.msra.mxu0 %v425
    %439 = vmatprep.subr.mxu0 0.0
    %440 = vmatpush1.msra.mxu0 0.0
    %441 = vmatprep.subr.mxu0 0.0
    %442 = vmatpush1.msra.mxu0 0.0
    %443 = vmatprep.subr.mxu0 0.0
    %444 = vmatpush1.msra.mxu0 0.0
    %445 = vmatprep.subr.mxu0 0.0
    %446 = vmatpush1.msra.mxu0 0.0
    %447 = vmatprep.subr.mxu0 0.0
    %448 = vmatpush1.msra.mxu0 0.0
    %449 = vmatprep.subr.mxu0 0.0
    %450 = vmatpush1.msra.mxu0 0.0
    %451 = vmatprep.subr.mxu0 0.0
    %452 = vmatpush1.msra.mxu0 0.0
    %453 = vmatprep.subr.mxu0 0.0
    %454 = vmatpush1.msra.mxu0 0.0
    %455 = vmatprep.subr.mxu0 0.0
    %456 = vmatpush1.msra.mxu0 0.0
    %457 = vmatprep.subr.mxu0 0.0
    %458 = vmatpush1.msra.mxu0 0.0
    %459 = vmatprep.subr.mxu0 0.0
    %460 = vmatpush1.msra.mxu0 0.0
    %461 = vmatprep.subr.mxu0 0.0
    %462 = vmatpush1.msra.mxu0 0.0
    %463 = vmatprep.subr.mxu0 0.0
    %464 = vmatpush1.msra.mxu0 0.0
    %465 = vmatprep.subr.mxu0 0.0
    %466 = vmatpush1.msra.mxu0 0.0
    %467 = vmatprep.subr.mxu0 0.0
    %468 = vmatpush1.msra.mxu0 0.0
    %469 = vmatprep.subr.mxu0 0.0
    %470 = vmatpush1.msra.mxu0 0.0
    %471 = vmatprep.subr.mxu0 0.0
    %472 = vmatpush1.msra.mxu0 0.0
    %473 = vmatprep.subr.mxu0 0.0
    %474 = vmatpush1.msra.mxu0 0.0
    %475 = vmatprep.subr.mxu0 0.0
    %476 = vmatpush1.msra.mxu0 0.0
    %477 = vmatprep.subr.mxu0 0.0
    %478 = vmatpush1.msra.mxu0 0.0
    %479 = vmatprep.subr.mxu0 0.0
    %480 = vmatpush1.msra.mxu0 0.0
    %481 = vmatprep.subr.mxu0 0.0
    %482 = vmatpush1.msra.mxu0 0.0
    %483 = vmatprep.subr.mxu0 0.0
    %484 = vmatpush1.msra.mxu0 0.0
    %485 = vmatprep.subr.mxu0 0.0
    %486 = vmatpush1.msra.mxu0 0.0
    %487 = vmatprep.subr.mxu0 0.0
    %488 = vmatpush1.msra.mxu0 0.0
    %489 = vmatprep.subr.mxu0 0.0
    %490 = vmatpush1.msra.mxu0 0.0
    %491 = vmatprep.subr.mxu0 0.0
    %492 = vmatpush1.msra.mxu0 0.0
    %493 = vmatprep.subr.mxu0 0.0
    %494 = vmatpush1.msra.mxu0 0.0
    %495 = vmatprep.mubr.f32.mxu0 0.0
    %496 = vmatmul.mubr.f32.gmra.mrb[0].mxu0 %v429
    %v497 = vpop.f32.mrb[0].mxu0
    %v498 = vadd.f32 %v427, %v497
    %v499 = vpop.f32.mrb[0].mxu0
    %500 = vdwg.mxu0
    %s501 = scalar_lea.vmem %s1, 192
    %v502 = vld [vmem:[%s501] sm:$0xff]
    %v503 = vld [vmem:[%s501 + $0x8] sm:$0xff]
    %v504 = vld [vmem:[%s501 + $0x10] sm:$0xff]
    %v505 = vld [vmem:[%s501 + $0x18] sm:$0xff]
    %s506 = scalar_lea.vmem %s2, 48
    %v507 = vld [vmem:[%s506] sm:$0xff]
    %508 = vmatprep.subr.mxu0 0.0
    %509 = vmatpush1.msra.mxu0 %v502
    %510 = vmatprep.subr.mxu0 0.0
    %511 = vmatpush1.msra.mxu0 %v503
    %512 = vmatprep.subr.mxu0 0.0
    %513 = vmatpush1.msra.mxu0 %v504
    %514 = vmatprep.subr.mxu0 0.0
    %515 = vmatpush1.msra.mxu0 %v505
    %516 = vmatprep.subr.mxu0 0.0
    %517 = vmatpush1.msra.mxu0 0.0
    %518 = vmatprep.subr.mxu0 0.0
    %519 = vmatpush1.msra.mxu0 0.0
    %520 = vmatprep.subr.mxu0 0.0
    %521 = vmatpush1.msra.mxu0 0.0
    %522 = vmatprep.subr.mxu0 0.0
    %523 = vmatpush1.msra.mxu0 0.0
    %524 = vmatprep.subr.mxu0 0.0
    %525 = vmatpush1.msra.mxu0 0.0
    %526 = vmatprep.subr.mxu0 0.0
    %527 = vmatpush1.msra.mxu0 0.0
    %528 = vmatprep.subr.mxu0 0.0
    %529 = vmatpush1.msra.mxu0 0.0
    %530 = vmatprep.subr.mxu0 0.0
    %531 = vmatpush1.msra.mxu0 0.0
    %532 = vmatprep.subr.mxu0 0.0
    %533 = vmatpush1.msra.mxu0 0.0
    %534 = vmatprep.subr.mxu0 0.0
    %535 = vmatpush1.msra.mxu0 0.0
    %536 = vmatprep.subr.mxu0 0.0
    %537 = vmatpush1.msra.mxu0 0.0
    %538 = vmatprep.subr.mxu0 0.0
    %539 = vmatpush1.msra.mxu0 0.0
    %540 = vmatprep.subr.mxu0 0.0
    %541 = vmatpush1.msra.mxu0 0.0
    %542 = vmatprep.subr.mxu0 0.0
    %543 = vmatpush1.msra.mxu0 0.0
    %544 = vmatprep.subr.mxu0 0.0
    %545 = vmatpush1.msra.mxu0 0.0
    %546 = vmatprep.subr.mxu0 0.0
    %547 = vmatpush1.msra.mxu0 0.0
    %548 = vmatprep.subr.mxu0 0.0
    %549 = vmatpush1.msra.mxu0 0.0
    %550 = vmatprep.subr.mxu0 0.0
    %551 = vmatpush1.msra.mxu0 0.0
    %552 = vmatprep.subr.mxu0 0.0
    %553 = vmatpush1.msra.mxu0 0.0
    %554 = vmatprep.subr.mxu0 0.0
    %555 = vmatpush1.msra.mxu0 0.0
    %556 = vmatprep.subr.mxu0 0.0
    %557 = vmatpush1.msra.mxu0 0.0
    %558 = vmatprep.subr.mxu0 0.0
    %559 = vmatpush1.msra.mxu0 0.0
    %560 = vmatprep.subr.mxu0 0.0
    %561 = vmatpush1.msra.mxu0 0.0
    %562 = vmatprep.subr.mxu0 0.0
    %563 = vmatpush1.msra.mxu0 0.0
    %564 = vmatprep.subr.mxu0 0.0
    %565 = vmatpush1.msra.mxu0 0.0
    %566 = vmatprep.subr.mxu0 0.0
    %567 = vmatpush1.msra.mxu0 0.0
    %568 = vmatprep.subr.mxu0 0.0
    %569 = vmatpush1.msra.mxu0 0.0
    %570 = vmatprep.subr.mxu0 0.0
    %571 = vmatpush1.msra.mxu0 0.0
    %572 = vmatprep.mubr.f32.mxu0 0.0
    %573 = vmatmul.mubr.f32.gmra.mrb[0].mxu0 %v429
    %v574 = vpop.f32.mrb[0].mxu0
    %v575 = vadd.f32 %v507, %v574
    %v576 = vpop.f32.mrb[0].mxu0
    %577 = vdwg.mxu0
    %v578 = vmul.f32 %v575, 0.5
    %v579 = vtanh.pop %v578
    %v580 = vadd.f32 %v579, 1.0
    %v581 = vmul.f32 %v580, 0.5
    %v582 = vmul.f32 %v498, %v581
    %v583 = vadd.f32 %v582, %v420
    %v584 = vmul.f32 %v583, 0.70710677
    %s585 = scalar_lea.vmem %s1, 224
    %v586 = vld [vmem:[%s585] sm:$0xff]
    %v587 = vld [vmem:[%s585 + $0x8] sm:$0xff]
    %v588 = vld [vmem:[%s585 + $0x10] sm:$0xff]
    %v589 = vld [vmem:[%s585 + $0x18] sm:$0xff]
    %s590 = scalar_lea.vmem %s2, 56
    %v591 = vld [vmem:[%s590] sm:$0xff]
    %v593 = vsel %vm21, %v584, 0
    %595 = vmatprep.subr.mxu0 0.0
    %596 = vmatpush1.msra.mxu0 %v586
    %597 = vmatprep.subr.mxu0 0.0
    %598 = vmatpush1.msra.mxu0 %v587
    %599 = vmatprep.subr.mxu0 0.0
    %600 = vmatpush1.msra.mxu0 %v588
    %601 = vmatprep.subr.mxu0 0.0
    %602 = vmatpush1.msra.mxu0 %v589
    %603 = vmatprep.subr.mxu0 0.0
    %604 = vmatpush1.msra.mxu0 0.0
    %605 = vmatprep.subr.mxu0 0.0
    %606 = vmatpush1.msra.mxu0 0.0
    %607 = vmatprep.subr.mxu0 0.0
    %608 = vmatpush1.msra.mxu0 0.0
    %609 = vmatprep.subr.mxu0 0.0
    %610 = vmatpush1.msra.mxu0 0.0
    %611 = vmatprep.subr.mxu0 0.0
    %612 = vmatpush1.msra.mxu0 0.0
    %613 = vmatprep.subr.mxu0 0.0
    %614 = vmatpush1.msra.mxu0 0.0
    %615 = vmatprep.subr.mxu0 0.0
    %616 = vmatpush1.msra.mxu0 0.0
    %617 = vmatprep.subr.mxu0 0.0
    %618 = vmatpush1.msra.mxu0 0.0
    %619 = vmatprep.subr.mxu0 0.0
    %620 = vmatpush1.msra.mxu0 0.0
    %621 = vmatprep.subr.mxu0 0.0
    %622 = vmatpush1.msra.mxu0 0.0
    %623 = vmatprep.subr.mxu0 0.0
    %624 = vmatpush1.msra.mxu0 0.0
    %625 = vmatprep.subr.mxu0 0.0
    %626 = vmatpush1.msra.mxu0 0.0
    %627 = vmatprep.subr.mxu0 0.0
    %628 = vmatpush1.msra.mxu0 0.0
    %629 = vmatprep.subr.mxu0 0.0
    %630 = vmatpush1.msra.mxu0 0.0
    %631 = vmatprep.subr.mxu0 0.0
    %632 = vmatpush1.msra.mxu0 0.0
    %633 = vmatprep.subr.mxu0 0.0
    %634 = vmatpush1.msra.mxu0 0.0
    %635 = vmatprep.subr.mxu0 0.0
    %636 = vmatpush1.msra.mxu0 0.0
    %637 = vmatprep.subr.mxu0 0.0
    %638 = vmatpush1.msra.mxu0 0.0
    %639 = vmatprep.subr.mxu0 0.0
    %640 = vmatpush1.msra.mxu0 0.0
    %641 = vmatprep.subr.mxu0 0.0
    %642 = vmatpush1.msra.mxu0 0.0
    %643 = vmatprep.subr.mxu0 0.0
    %644 = vmatpush1.msra.mxu0 0.0
    %645 = vmatprep.subr.mxu0 0.0
    %646 = vmatpush1.msra.mxu0 0.0
    %647 = vmatprep.subr.mxu0 0.0
    %648 = vmatpush1.msra.mxu0 0.0
    %649 = vmatprep.subr.mxu0 0.0
    %650 = vmatpush1.msra.mxu0 0.0
    %651 = vmatprep.subr.mxu0 0.0
    %652 = vmatpush1.msra.mxu0 0.0
    %653 = vmatprep.subr.mxu0 0.0
    %654 = vmatpush1.msra.mxu0 0.0
    %655 = vmatprep.subr.mxu0 0.0
    %656 = vmatpush1.msra.mxu0 0.0
    %657 = vmatprep.subr.mxu0 0.0
    %658 = vmatpush1.msra.mxu0 0.0
    %659 = vmatprep.mubr.f32.mxu0 0.0
    %660 = vmatmul.mubr.f32.gmra.mrb[0].mxu0 %v593
    %v661 = vpop.f32.mrb[0].mxu0
    %v662 = vadd.f32 %v591, %v661
    %v663 = vpop.f32.mrb[0].mxu0
    %664 = vdwg.mxu0
    %s665 = scalar_lea.vmem %s1, 256
    %v666 = vld [vmem:[%s665] sm:$0xff]
    %v667 = vld [vmem:[%s665 + $0x8] sm:$0xff]
    %v668 = vld [vmem:[%s665 + $0x10] sm:$0xff]
    %v669 = vld [vmem:[%s665 + $0x18] sm:$0xff]
    %s670 = scalar_lea.vmem %s2, 64
    %v671 = vld [vmem:[%s670] sm:$0xff]
    %672 = vmatprep.subr.mxu0 0.0
    %673 = vmatpush1.msra.mxu0 %v666
    %674 = vmatprep.subr.mxu0 0.0
    %675 = vmatpush1.msra.mxu0 %v667
    %676 = vmatprep.subr.mxu0 0.0
    %677 = vmatpush1.msra.mxu0 %v668
    %678 = vmatprep.subr.mxu0 0.0
    %679 = vmatpush1.msra.mxu0 %v669
    %680 = vmatprep.subr.mxu0 0.0
    %681 = vmatpush1.msra.mxu0 0.0
    %682 = vmatprep.subr.mxu0 0.0
    %683 = vmatpush1.msra.mxu0 0.0
    %684 = vmatprep.subr.mxu0 0.0
    %685 = vmatpush1.msra.mxu0 0.0
    %686 = vmatprep.subr.mxu0 0.0
    %687 = vmatpush1.msra.mxu0 0.0
    %688 = vmatprep.subr.mxu0 0.0
    %689 = vmatpush1.msra.mxu0 0.0
    %690 = vmatprep.subr.mxu0 0.0
    %691 = vmatpush1.msra.mxu0 0.0
    %692 = vmatprep.subr.mxu0 0.0
    %693 = vmatpush1.msra.mxu0 0.0
    %694 = vmatprep.subr.mxu0 0.0
    %695 = vmatpush1.msra.mxu0 0.0
    %696 = vmatprep.subr.mxu0 0.0
    %697 = vmatpush1.msra.mxu0 0.0
    %698 = vmatprep.subr.mxu0 0.0
    %699 = vmatpush1.msra.mxu0 0.0
    %700 = vmatprep.subr.mxu0 0.0
    %701 = vmatpush1.msra.mxu0 0.0
    %702 = vmatprep.subr.mxu0 0.0
    %703 = vmatpush1.msra.mxu0 0.0
    %704 = vmatprep.subr.mxu0 0.0
    %705 = vmatpush1.msra.mxu0 0.0
    %706 = vmatprep.subr.mxu0 0.0
    %707 = vmatpush1.msra.mxu0 0.0
    %708 = vmatprep.subr.mxu0 0.0
    %709 = vmatpush1.msra.mxu0 0.0
    %710 = vmatprep.subr.mxu0 0.0
    %711 = vmatpush1.msra.mxu0 0.0
    %712 = vmatprep.subr.mxu0 0.0
    %713 = vmatpush1.msra.mxu0 0.0
    %714 = vmatprep.subr.mxu0 0.0
    %715 = vmatpush1.msra.mxu0 0.0
    %716 = vmatprep.subr.mxu0 0.0
    %717 = vmatpush1.msra.mxu0 0.0
    %718 = vmatprep.subr.mxu0 0.0
    %719 = vmatpush1.msra.mxu0 0.0
    %720 = vmatprep.subr.mxu0 0.0
    %721 = vmatpush1.msra.mxu0 0.0
    %722 = vmatprep.subr.mxu0 0.0
    %723 = vmatpush1.msra.mxu0 0.0
    %724 = vmatprep.subr.mxu0 0.0
    %725 = vmatpush1.msra.mxu0 0.0
    %726 = vmatprep.subr.mxu0 0.0
    %727 = vmatpush1.msra.mxu0 0.0
    %728 = vmatprep.subr.mxu0 0.0
    %729 = vmatpush1.msra.mxu0 0.0
    %730 = vmatprep.subr.mxu0 0.0
    %731 = vmatpush1.msra.mxu0 0.0
    %732 = vmatprep.subr.mxu0 0.0
    %733 = vmatpush1.msra.mxu0 0.0
    %734 = vmatprep.subr.mxu0 0.0
    %735 = vmatpush1.msra.mxu0 0.0
    %736 = vmatprep.mubr.f32.mxu0 0.0
    %737 = vmatmul.mubr.f32.gmra.mrb[0].mxu0 %v593
    %v738 = vpop.f32.mrb[0].mxu0
    %v739 = vadd.f32 %v671, %v738
    %v740 = vpop.f32.mrb[0].mxu0
    %741 = vdwg.mxu0
    %v742 = vmul.f32 %v739, 0.5
    %v743 = vtanh.pop %v742
    %v744 = vadd.f32 %v743, 1.0
    %v745 = vmul.f32 %v744, 0.5
    %v746 = vmul.f32 %v662, %v745
    %v747 = vadd.f32 %v746, %v584
    %v748 = vmul.f32 %v747, 0.70710677
    %s749 = scalar_lea.vmem %s1, 1056
    %v750 = vld [vmem:[%s749] sm:$0xff]
    %v751 = vld [vmem:[%s749 + $0x8] sm:$0xff]
    %v752 = vld [vmem:[%s749 + $0x10] sm:$0xff]
    %v753 = vld [vmem:[%s749 + $0x18] sm:$0xff]
    %s754 = scalar_lea.vmem %s2, 264
    %v755 = vld [vmem:[%s754] sm:$0xff]
    %v757 = vsel %vm21, %v748, 0
    %759 = vmatprep.subr.mxu0 0.0
    %760 = vmatpush1.msra.mxu0 %v750
    %761 = vmatprep.subr.mxu0 0.0
    %762 = vmatpush1.msra.mxu0 %v751
    %763 = vmatprep.subr.mxu0 0.0
    %764 = vmatpush1.msra.mxu0 %v752
    %765 = vmatprep.subr.mxu0 0.0
    %766 = vmatpush1.msra.mxu0 %v753
    %767 = vmatprep.subr.mxu0 0.0
    %768 = vmatpush1.msra.mxu0 0.0
    %769 = vmatprep.subr.mxu0 0.0
    %770 = vmatpush1.msra.mxu0 0.0
    %771 = vmatprep.subr.mxu0 0.0
    %772 = vmatpush1.msra.mxu0 0.0
    %773 = vmatprep.subr.mxu0 0.0
    %774 = vmatpush1.msra.mxu0 0.0
    %775 = vmatprep.subr.mxu0 0.0
    %776 = vmatpush1.msra.mxu0 0.0
    %777 = vmatprep.subr.mxu0 0.0
    %778 = vmatpush1.msra.mxu0 0.0
    %779 = vmatprep.subr.mxu0 0.0
    %780 = vmatpush1.msra.mxu0 0.0
    %781 = vmatprep.subr.mxu0 0.0
    %782 = vmatpush1.msra.mxu0 0.0
    %783 = vmatprep.subr.mxu0 0.0
    %784 = vmatpush1.msra.mxu0 0.0
    %785 = vmatprep.subr.mxu0 0.0
    %786 = vmatpush1.msra.mxu0 0.0
    %787 = vmatprep.subr.mxu0 0.0
    %788 = vmatpush1.msra.mxu0 0.0
    %789 = vmatprep.subr.mxu0 0.0
    %790 = vmatpush1.msra.mxu0 0.0
    %791 = vmatprep.subr.mxu0 0.0
    %792 = vmatpush1.msra.mxu0 0.0
    %793 = vmatprep.subr.mxu0 0.0
    %794 = vmatpush1.msra.mxu0 0.0
    %795 = vmatprep.subr.mxu0 0.0
    %796 = vmatpush1.msra.mxu0 0.0
    %797 = vmatprep.subr.mxu0 0.0
    %798 = vmatpush1.msra.mxu0 0.0
    %799 = vmatprep.subr.mxu0 0.0
    %800 = vmatpush1.msra.mxu0 0.0
    %801 = vmatprep.subr.mxu0 0.0
    %802 = vmatpush1.msra.mxu0 0.0
    %803 = vmatprep.subr.mxu0 0.0
    %804 = vmatpush1.msra.mxu0 0.0
    %805 = vmatprep.subr.mxu0 0.0
    %806 = vmatpush1.msra.mxu0 0.0
    %807 = vmatprep.subr.mxu0 0.0
    %808 = vmatpush1.msra.mxu0 0.0
    %809 = vmatprep.subr.mxu0 0.0
    %810 = vmatpush1.msra.mxu0 0.0
    %811 = vmatprep.subr.mxu0 0.0
    %812 = vmatpush1.msra.mxu0 0.0
    %813 = vmatprep.subr.mxu0 0.0
    %814 = vmatpush1.msra.mxu0 0.0
    %815 = vmatprep.subr.mxu0 0.0
    %816 = vmatpush1.msra.mxu0 0.0
    %817 = vmatprep.subr.mxu0 0.0
    %818 = vmatpush1.msra.mxu0 0.0
    %819 = vmatprep.subr.mxu0 0.0
    %820 = vmatpush1.msra.mxu0 0.0
    %821 = vmatprep.subr.mxu0 0.0
    %822 = vmatpush1.msra.mxu0 0.0
    %823 = vmatprep.mubr.f32.mxu0 0.0
    %824 = vmatmul.mubr.f32.gmra.mrb[0].mxu0 %v757
    %v825 = vpop.f32.mrb[0].mxu0
    %v826 = vadd.f32 %v755, %v825
    %v827 = vpop.f32.mrb[0].mxu0
    %828 = vdwg.mxu0
    %v829 = vsel %vm21, %v826, -inf
    %830 = vmax.xlane.f32.xlu0 %v829
    %v831 = vpop.xlane.xlu0 %830
    %v832 = vsub.f32 %v831, 1.0
    %v833 = vadd.f32 %v832, 0.5
    %v834 = vsub.f32 %v826, %v833
    %v835 = vmax.f32 %v834, 0.0
    %v836 = vsel %vm21, %v835, 0.0
    %837 = vadd.xlane.f32.xlu0 %v836
    %v838 = vpop.xlane.xlu0 %837
    %vm839 = vcmp.gt.f32.partialorder %v838, 1.0
    %v840 = vsel %vm839, 0.5, 0.0
    %v841 = vadd.f32 %v832, %v840
    %v842 = vadd.f32 %v841, 0.25
    %v843 = vsub.f32 %v826, %v842
    %v844 = vmax.f32 %v843, 0.0
    %v845 = vsel %vm21, %v844, 0.0
    %846 = vadd.xlane.f32.xlu0 %v845
    %v847 = vpop.xlane.xlu0 %846
    %vm848 = vcmp.gt.f32.partialorder %v847, 1.0
    %v849 = vsel %vm848, 0.25, 0.0
    %v850 = vadd.f32 %v841, %v849
    %v851 = vadd.f32 %v850, 0.125
    %v852 = vsub.f32 %v826, %v851
    %v853 = vmax.f32 %v852, 0.0
    %v854 = vsel %vm21, %v853, 0.0
    %855 = vadd.xlane.f32.xlu0 %v854
    %v856 = vpop.xlane.xlu0 %855
    %vm857 = vcmp.gt.f32.partialorder %v856, 1.0
    %v858 = vsel %vm857, 0.125, 0.0
    %v859 = vadd.f32 %v850, %v858
    %v860 = vadd.f32 %v859, 0.0625
    %v861 = vsub.f32 %v826, %v860
    %v862 = vmax.f32 %v861, 0.0
    %v863 = vsel %vm21, %v862, 0.0
    %864 = vadd.xlane.f32.xlu0 %v863
    %v865 = vpop.xlane.xlu0 %864
    %vm866 = vcmp.gt.f32.partialorder %v865, 1.0
    %v867 = vsel %vm866, 0.0625, 0.0
    %v868 = vadd.f32 %v859, %v867
    %v869 = vadd.f32 %v868, 0.03125
    %v870 = vsub.f32 %v826, %v869
    %v871 = vmax.f32 %v870, 0.0
    %v872 = vsel %vm21, %v871, 0.0
    %873 = vadd.xlane.f32.xlu0 %v872
    %v874 = vpop.xlane.xlu0 %873
    %vm875 = vcmp.gt.f32.partialorder %v874, 1.0
    %v876 = vsel %vm875, 0.03125, 0.0
    %v877 = vadd.f32 %v868, %v876
    %v878 = vadd.f32 %v877, 0.015625
    %v879 = vsub.f32 %v826, %v878
    %v880 = vmax.f32 %v879, 0.0
    %v881 = vsel %vm21, %v880, 0.0
    %882 = vadd.xlane.f32.xlu0 %v881
    %v883 = vpop.xlane.xlu0 %882
    %vm884 = vcmp.gt.f32.partialorder %v883, 1.0
    %v885 = vsel %vm884, 0.015625, 0.0
    %v886 = vadd.f32 %v877, %v885
    %v887 = vadd.f32 %v886, 0.0078125
    %v888 = vsub.f32 %v826, %v887
    %v889 = vmax.f32 %v888, 0.0
    %v890 = vsel %vm21, %v889, 0.0
    %891 = vadd.xlane.f32.xlu0 %v890
    %v892 = vpop.xlane.xlu0 %891
    %vm893 = vcmp.gt.f32.partialorder %v892, 1.0
    %v894 = vsel %vm893, 0.0078125, 0.0
    %v895 = vadd.f32 %v886, %v894
    %v896 = vadd.f32 %v895, 0.00390625
    %v897 = vsub.f32 %v826, %v896
    %v898 = vmax.f32 %v897, 0.0
    %v899 = vsel %vm21, %v898, 0.0
    %900 = vadd.xlane.f32.xlu0 %v899
    %v901 = vpop.xlane.xlu0 %900
    %vm902 = vcmp.gt.f32.partialorder %v901, 1.0
    %v903 = vsel %vm902, 0.00390625, 0.0
    %v904 = vadd.f32 %v895, %v903
    %v905 = vadd.f32 %v904, 0.001953125
    %v906 = vsub.f32 %v826, %v905
    %v907 = vmax.f32 %v906, 0.0
    %v908 = vsel %vm21, %v907, 0.0
    %909 = vadd.xlane.f32.xlu0 %v908
    %v910 = vpop.xlane.xlu0 %909
    %vm911 = vcmp.gt.f32.partialorder %v910, 1.0
    %v912 = vsel %vm911, 0.001953125, 0.0
    %v913 = vadd.f32 %v904, %v912
    %v914 = vadd.f32 %v913, 0.0009765625
    %v915 = vsub.f32 %v826, %v914
    %v916 = vmax.f32 %v915, 0.0
    %v917 = vsel %vm21, %v916, 0.0
    %918 = vadd.xlane.f32.xlu0 %v917
    %v919 = vpop.xlane.xlu0 %918
    %vm920 = vcmp.gt.f32.partialorder %v919, 1.0
    %v921 = vsel %vm920, 0.0009765625, 0.0
    %v922 = vadd.f32 %v913, %v921
    %v923 = vadd.f32 %v922, 0.00048828125
    %v924 = vsub.f32 %v826, %v923
    %v925 = vmax.f32 %v924, 0.0
    %v926 = vsel %vm21, %v925, 0.0
    %927 = vadd.xlane.f32.xlu0 %v926
    %v928 = vpop.xlane.xlu0 %927
    %vm929 = vcmp.gt.f32.partialorder %v928, 1.0
    %v930 = vsel %vm929, 0.00048828125, 0.0
    %v931 = vadd.f32 %v922, %v930
    %v932 = vadd.f32 %v931, 0.00024414063
    %v933 = vsub.f32 %v826, %v932
    %v934 = vmax.f32 %v933, 0.0
    %v935 = vsel %vm21, %v934, 0.0
    %936 = vadd.xlane.f32.xlu0 %v935
    %v937 = vpop.xlane.xlu0 %936
    %vm938 = vcmp.gt.f32.partialorder %v937, 1.0
    %v939 = vsel %vm938, 0.00024414063, 0.0
    %v940 = vadd.f32 %v931, %v939
    %v941 = vadd.f32 %v940, 0.00012207031
    %v942 = vsub.f32 %v826, %v941
    %v943 = vmax.f32 %v942, 0.0
    %v944 = vsel %vm21, %v943, 0.0
    %945 = vadd.xlane.f32.xlu0 %v944
    %v946 = vpop.xlane.xlu0 %945
    %vm947 = vcmp.gt.f32.partialorder %v946, 1.0
    %v948 = vsel %vm947, 0.00012207031, 0.0
    %v949 = vadd.f32 %v940, %v948
    %v950 = vadd.f32 %v949, 6.1035156e-05
    %v951 = vsub.f32 %v826, %v950
    %v952 = vmax.f32 %v951, 0.0
    %v953 = vsel %vm21, %v952, 0.0
    %954 = vadd.xlane.f32.xlu0 %v953
    %v955 = vpop.xlane.xlu0 %954
    %vm956 = vcmp.gt.f32.partialorder %v955, 1.0
    %v957 = vsel %vm956, 6.1035156e-05, 0.0
    %v958 = vadd.f32 %v949, %v957
    %v959 = vadd.f32 %v958, 3.0517578e-05
    %v960 = vsub.f32 %v826, %v959
    %v961 = vmax.f32 %v960, 0.0
    %v962 = vsel %vm21, %v961, 0.0
    %963 = vadd.xlane.f32.xlu0 %v962
    %v964 = vpop.xlane.xlu0 %963
    %vm965 = vcmp.gt.f32.partialorder %v964, 1.0
    %v966 = vsel %vm965, 3.0517578e-05, 0.0
    %v967 = vadd.f32 %v958, %v966
    %v968 = vadd.f32 %v967, 1.5258789e-05
    %v969 = vsub.f32 %v826, %v968
    %v970 = vmax.f32 %v969, 0.0
    %v971 = vsel %vm21, %v970, 0.0
    %972 = vadd.xlane.f32.xlu0 %v971
    %v973 = vpop.xlane.xlu0 %972
    %vm974 = vcmp.gt.f32.partialorder %v973, 1.0
    %v975 = vsel %vm974, 1.5258789e-05, 0.0
    %v976 = vadd.f32 %v967, %v975
    %v977 = vadd.f32 %v976, 7.6293945e-06
    %v978 = vsub.f32 %v826, %v977
    %v979 = vmax.f32 %v978, 0.0
    %v980 = vsel %vm21, %v979, 0.0
    %981 = vadd.xlane.f32.xlu0 %v980
    %v982 = vpop.xlane.xlu0 %981
    %vm983 = vcmp.gt.f32.partialorder %v982, 1.0
    %v984 = vsel %vm983, 7.6293945e-06, 0.0
    %v985 = vadd.f32 %v976, %v984
    %v986 = vadd.f32 %v985, 3.8146973e-06
    %v987 = vsub.f32 %v826, %v986
    %v988 = vmax.f32 %v987, 0.0
    %v989 = vsel %vm21, %v988, 0.0
    %990 = vadd.xlane.f32.xlu0 %v989
    %v991 = vpop.xlane.xlu0 %990
    %vm992 = vcmp.gt.f32.partialorder %v991, 1.0
    %v993 = vsel %vm992, 3.8146973e-06, 0.0
    %v994 = vadd.f32 %v985, %v993
    %v995 = vadd.f32 %v994, 1.9073486e-06
    %v996 = vsub.f32 %v826, %v995
    %v997 = vmax.f32 %v996, 0.0
    %v998 = vsel %vm21, %v997, 0.0
    %999 = vadd.xlane.f32.xlu0 %v998
    %v1000 = vpop.xlane.xlu0 %999
    %vm1001 = vcmp.gt.f32.partialorder %v1000, 1.0
    %v1002 = vsel %vm1001, 1.9073486e-06, 0.0
    %v1003 = vadd.f32 %v994, %v1002
    %v1004 = vadd.f32 %v1003, 9.536743e-07
    %v1005 = vsub.f32 %v826, %v1004
    %v1006 = vmax.f32 %v1005, 0.0
    %v1007 = vsel %vm21, %v1006, 0.0
    %1008 = vadd.xlane.f32.xlu0 %v1007
    %v1009 = vpop.xlane.xlu0 %1008
    %vm1010 = vcmp.gt.f32.partialorder %v1009, 1.0
    %v1011 = vsel %vm1010, 9.536743e-07, 0.0
    %v1012 = vadd.f32 %v1003, %v1011
    %v1013 = vadd.f32 %v1012, 4.7683716e-07
    %v1014 = vsub.f32 %v826, %v1013
    %v1015 = vmax.f32 %v1014, 0.0
    %v1016 = vsub.f32 1.3, %v1015
    %v1017 = vmul.f32 %v1015, %v92
    %s1018 = scalar_lea.vmem %s1, 288
    %v1019 = vld [vmem:[%s1018] sm:$0xff]
    %v1020 = vld [vmem:[%s1018 + $0x8] sm:$0xff]
    %v1021 = vld [vmem:[%s1018 + $0x10] sm:$0xff]
    %v1022 = vld [vmem:[%s1018 + $0x18] sm:$0xff]
    %s1023 = scalar_lea.vmem %s2, 72
    %v1024 = vld [vmem:[%s1023] sm:$0xff]
    %v1026 = vsel %vm21, %v1017, 0
    %1028 = vmatprep.subr.mxu0 0.0
    %1029 = vmatpush1.msra.mxu0 %v1019
    %1030 = vmatprep.subr.mxu0 0.0
    %1031 = vmatpush1.msra.mxu0 %v1020
    %1032 = vmatprep.subr.mxu0 0.0
    %1033 = vmatpush1.msra.mxu0 %v1021
    %1034 = vmatprep.subr.mxu0 0.0
    %1035 = vmatpush1.msra.mxu0 %v1022
    %1036 = vmatprep.subr.mxu0 0.0
    %1037 = vmatpush1.msra.mxu0 0.0
    %1038 = vmatprep.subr.mxu0 0.0
    %1039 = vmatpush1.msra.mxu0 0.0
    %1040 = vmatprep.subr.mxu0 0.0
    %1041 = vmatpush1.msra.mxu0 0.0
    %1042 = vmatprep.subr.mxu0 0.0
    %1043 = vmatpush1.msra.mxu0 0.0
    %1044 = vmatprep.subr.mxu0 0.0
    %1045 = vmatpush1.msra.mxu0 0.0
    %1046 = vmatprep.subr.mxu0 0.0
    %1047 = vmatpush1.msra.mxu0 0.0
    %1048 = vmatprep.subr.mxu0 0.0
    %1049 = vmatpush1.msra.mxu0 0.0
    %1050 = vmatprep.subr.mxu0 0.0
    %1051 = vmatpush1.msra.mxu0 0.0
    %1052 = vmatprep.subr.mxu0 0.0
    %1053 = vmatpush1.msra.mxu0 0.0
    %1054 = vmatprep.subr.mxu0 0.0
    %1055 = vmatpush1.msra.mxu0 0.0
    %1056 = vmatprep.subr.mxu0 0.0
    %1057 = vmatpush1.msra.mxu0 0.0
    %1058 = vmatprep.subr.mxu0 0.0
    %1059 = vmatpush1.msra.mxu0 0.0
    %1060 = vmatprep.subr.mxu0 0.0
    %1061 = vmatpush1.msra.mxu0 0.0
    %1062 = vmatprep.subr.mxu0 0.0
    %1063 = vmatpush1.msra.mxu0 0.0
    %1064 = vmatprep.subr.mxu0 0.0
    %1065 = vmatpush1.msra.mxu0 0.0
    %1066 = vmatprep.subr.mxu0 0.0
    %1067 = vmatpush1.msra.mxu0 0.0
    %1068 = vmatprep.subr.mxu0 0.0
    %1069 = vmatpush1.msra.mxu0 0.0
    %1070 = vmatprep.subr.mxu0 0.0
    %1071 = vmatpush1.msra.mxu0 0.0
    %1072 = vmatprep.subr.mxu0 0.0
    %1073 = vmatpush1.msra.mxu0 0.0
    %1074 = vmatprep.subr.mxu0 0.0
    %1075 = vmatpush1.msra.mxu0 0.0
    %1076 = vmatprep.subr.mxu0 0.0
    %1077 = vmatpush1.msra.mxu0 0.0
    %1078 = vmatprep.subr.mxu0 0.0
    %1079 = vmatpush1.msra.mxu0 0.0
    %1080 = vmatprep.subr.mxu0 0.0
    %1081 = vmatpush1.msra.mxu0 0.0
    %1082 = vmatprep.subr.mxu0 0.0
    %1083 = vmatpush1.msra.mxu0 0.0
    %1084 = vmatprep.subr.mxu0 0.0
    %1085 = vmatpush1.msra.mxu0 0.0
    %1086 = vmatprep.subr.mxu0 0.0
    %1087 = vmatpush1.msra.mxu0 0.0
    %1088 = vmatprep.subr.mxu0 0.0
    %1089 = vmatpush1.msra.mxu0 0.0
    %1090 = vmatprep.subr.mxu0 0.0
    %1091 = vmatpush1.msra.mxu0 0.0
    %1092 = vmatprep.mubr.f32.mxu0 0.0
    %1093 = vmatmul.mubr.f32.gmra.mrb[0].mxu0 %v1026
    %v1094 = vpop.f32.mrb[0].mxu0
    %v1095 = vadd.f32 %v1024, %v1094
    %v1096 = vpop.f32.mrb[0].mxu0
    %1097 = vdwg.mxu0
    %s1098 = scalar_lea.vmem %s1, 320
    %v1099 = vld [vmem:[%s1098] sm:$0xff]
    %v1100 = vld [vmem:[%s1098 + $0x8] sm:$0xff]
    %v1101 = vld [vmem:[%s1098 + $0x10] sm:$0xff]
    %v1102 = vld [vmem:[%s1098 + $0x18] sm:$0xff]
    %s1103 = scalar_lea.vmem %s2, 80
    %v1104 = vld [vmem:[%s1103] sm:$0xff]
    %1105 = vmatprep.subr.mxu0 0.0
    %1106 = vmatpush1.msra.mxu0 %v1099
    %1107 = vmatprep.subr.mxu0 0.0
    %1108 = vmatpush1.msra.mxu0 %v1100
    %1109 = vmatprep.subr.mxu0 0.0
    %1110 = vmatpush1.msra.mxu0 %v1101
    %1111 = vmatprep.subr.mxu0 0.0
    %1112 = vmatpush1.msra.mxu0 %v1102
    %1113 = vmatprep.subr.mxu0 0.0
    %1114 = vmatpush1.msra.mxu0 0.0
    %1115 = vmatprep.subr.mxu0 0.0
    %1116 = vmatpush1.msra.mxu0 0.0
    %1117 = vmatprep.subr.mxu0 0.0
    %1118 = vmatpush1.msra.mxu0 0.0
    %1119 = vmatprep.subr.mxu0 0.0
    %1120 = vmatpush1.msra.mxu0 0.0
    %1121 = vmatprep.subr.mxu0 0.0
    %1122 = vmatpush1.msra.mxu0 0.0
    %1123 = vmatprep.subr.mxu0 0.0
    %1124 = vmatpush1.msra.mxu0 0.0
    %1125 = vmatprep.subr.mxu0 0.0
    %1126 = vmatpush1.msra.mxu0 0.0
    %1127 = vmatprep.subr.mxu0 0.0
    %1128 = vmatpush1.msra.mxu0 0.0
    %1129 = vmatprep.subr.mxu0 0.0
    %1130 = vmatpush1.msra.mxu0 0.0
    %1131 = vmatprep.subr.mxu0 0.0
    %1132 = vmatpush1.msra.mxu0 0.0
    %1133 = vmatprep.subr.mxu0 0.0
    %1134 = vmatpush1.msra.mxu0 0.0
    %1135 = vmatprep.subr.mxu0 0.0
    %1136 = vmatpush1.msra.mxu0 0.0
    %1137 = vmatprep.subr.mxu0 0.0
    %1138 = vmatpush1.msra.mxu0 0.0
    %1139 = vmatprep.subr.mxu0 0.0
    %1140 = vmatpush1.msra.mxu0 0.0
    %1141 = vmatprep.subr.mxu0 0.0
    %1142 = vmatpush1.msra.mxu0 0.0
    %1143 = vmatprep.subr.mxu0 0.0
    %1144 = vmatpush1.msra.mxu0 0.0
    %1145 = vmatprep.subr.mxu0 0.0
    %1146 = vmatpush1.msra.mxu0 0.0
    %1147 = vmatprep.subr.mxu0 0.0
    %1148 = vmatpush1.msra.mxu0 0.0
    %1149 = vmatprep.subr.mxu0 0.0
    %1150 = vmatpush1.msra.mxu0 0.0
    %1151 = vmatprep.subr.mxu0 0.0
    %1152 = vmatpush1.msra.mxu0 0.0
    %1153 = vmatprep.subr.mxu0 0.0
    %1154 = vmatpush1.msra.mxu0 0.0
    %1155 = vmatprep.subr.mxu0 0.0
    %1156 = vmatpush1.msra.mxu0 0.0
    %1157 = vmatprep.subr.mxu0 0.0
    %1158 = vmatpush1.msra.mxu0 0.0
    %1159 = vmatprep.subr.mxu0 0.0
    %1160 = vmatpush1.msra.mxu0 0.0
    %1161 = vmatprep.subr.mxu0 0.0
    %1162 = vmatpush1.msra.mxu0 0.0
    %1163 = vmatprep.subr.mxu0 0.0
    %1164 = vmatpush1.msra.mxu0 0.0
    %1165 = vmatprep.subr.mxu0 0.0
    %1166 = vmatpush1.msra.mxu0 0.0
    %1167 = vmatprep.subr.mxu0 0.0
    %1168 = vmatpush1.msra.mxu0 0.0
    %1169 = vmatprep.mubr.f32.mxu0 0.0
    %1170 = vmatmul.mubr.f32.gmra.mrb[0].mxu0 %v1026
    %v1171 = vpop.f32.mrb[0].mxu0
    %v1172 = vadd.f32 %v1104, %v1171
    %v1173 = vpop.f32.mrb[0].mxu0
    %1174 = vdwg.mxu0
    %v1175 = vmul.f32 %v1172, 0.5
    %v1176 = vtanh.pop %v1175
    %v1177 = vadd.f32 %v1176, 1.0
    %v1178 = vmul.f32 %v1177, 0.5
    %v1179 = vmul.f32 %v1095, %v1178
    %s1180 = scalar_lea.vmem %s1, 352
    %v1181 = vld [vmem:[%s1180] sm:$0xff]
    %v1182 = vld [vmem:[%s1180 + $0x8] sm:$0xff]
    %v1183 = vld [vmem:[%s1180 + $0x10] sm:$0xff]
    %v1184 = vld [vmem:[%s1180 + $0x18] sm:$0xff]
    %s1185 = scalar_lea.vmem %s2, 88
    %v1186 = vld [vmem:[%s1185] sm:$0xff]
    %v1188 = vsel %vm21, %v1179, 0
    %1190 = vmatprep.subr.mxu0 0.0
    %1191 = vmatpush1.msra.mxu0 %v1181
    %1192 = vmatprep.subr.mxu0 0.0
    %1193 = vmatpush1.msra.mxu0 %v1182
    %1194 = vmatprep.subr.mxu0 0.0
    %1195 = vmatpush1.msra.mxu0 %v1183
    %1196 = vmatprep.subr.mxu0 0.0
    %1197 = vmatpush1.msra.mxu0 %v1184
    %1198 = vmatprep.subr.mxu0 0.0
    %1199 = vmatpush1.msra.mxu0 0.0
    %1200 = vmatprep.subr.mxu0 0.0
    %1201 = vmatpush1.msra.mxu0 0.0
    %1202 = vmatprep.subr.mxu0 0.0
    %1203 = vmatpush1.msra.mxu0 0.0
    %1204 = vmatprep.subr.mxu0 0.0
    %1205 = vmatpush1.msra.mxu0 0.0
    %1206 = vmatprep.subr.mxu0 0.0
    %1207 = vmatpush1.msra.mxu0 0.0
    %1208 = vmatprep.subr.mxu0 0.0
    %1209 = vmatpush1.msra.mxu0 0.0
    %1210 = vmatprep.subr.mxu0 0.0
    %1211 = vmatpush1.msra.mxu0 0.0
    %1212 = vmatprep.subr.mxu0 0.0
    %1213 = vmatpush1.msra.mxu0 0.0
    %1214 = vmatprep.subr.mxu0 0.0
    %1215 = vmatpush1.msra.mxu0 0.0
    %1216 = vmatprep.subr.mxu0 0.0
    %1217 = vmatpush1.msra.mxu0 0.0
    %1218 = vmatprep.subr.mxu0 0.0
    %1219 = vmatpush1.msra.mxu0 0.0
    %1220 = vmatprep.subr.mxu0 0.0
    %1221 = vmatpush1.msra.mxu0 0.0
    %1222 = vmatprep.subr.mxu0 0.0
    %1223 = vmatpush1.msra.mxu0 0.0
    %1224 = vmatprep.subr.mxu0 0.0
    %1225 = vmatpush1.msra.mxu0 0.0
    %1226 = vmatprep.subr.mxu0 0.0
    %1227 = vmatpush1.msra.mxu0 0.0
    %1228 = vmatprep.subr.mxu0 0.0
    %1229 = vmatpush1.msra.mxu0 0.0
    %1230 = vmatprep.subr.mxu0 0.0
    %1231 = vmatpush1.msra.mxu0 0.0
    %1232 = vmatprep.subr.mxu0 0.0
    %1233 = vmatpush1.msra.mxu0 0.0
    %1234 = vmatprep.subr.mxu0 0.0
    %1235 = vmatpush1.msra.mxu0 0.0
    %1236 = vmatprep.subr.mxu0 0.0
    %1237 = vmatpush1.msra.mxu0 0.0
    %1238 = vmatprep.subr.mxu0 0.0
    %1239 = vmatpush1.msra.mxu0 0.0
    %1240 = vmatprep.subr.mxu0 0.0
    %1241 = vmatpush1.msra.mxu0 0.0
    %1242 = vmatprep.subr.mxu0 0.0
    %1243 = vmatpush1.msra.mxu0 0.0
    %1244 = vmatprep.subr.mxu0 0.0
    %1245 = vmatpush1.msra.mxu0 0.0
    %1246 = vmatprep.subr.mxu0 0.0
    %1247 = vmatpush1.msra.mxu0 0.0
    %1248 = vmatprep.subr.mxu0 0.0
    %1249 = vmatpush1.msra.mxu0 0.0
    %1250 = vmatprep.subr.mxu0 0.0
    %1251 = vmatpush1.msra.mxu0 0.0
    %1252 = vmatprep.subr.mxu0 0.0
    %1253 = vmatpush1.msra.mxu0 0.0
    %1254 = vmatprep.mubr.f32.mxu0 0.0
    %1255 = vmatmul.mubr.f32.gmra.mrb[0].mxu0 %v1188
    %v1256 = vpop.f32.mrb[0].mxu0
    %v1257 = vadd.f32 %v1186, %v1256
    %v1258 = vpop.f32.mrb[0].mxu0
    %1259 = vdwg.mxu0
    %s1260 = scalar_lea.vmem %s1, 384
    %v1261 = vld [vmem:[%s1260] sm:$0xff]
    %v1262 = vld [vmem:[%s1260 + $0x8] sm:$0xff]
    %v1263 = vld [vmem:[%s1260 + $0x10] sm:$0xff]
    %v1264 = vld [vmem:[%s1260 + $0x18] sm:$0xff]
    %s1265 = scalar_lea.vmem %s2, 96
    %v1266 = vld [vmem:[%s1265] sm:$0xff]
    %1267 = vmatprep.subr.mxu0 0.0
    %1268 = vmatpush1.msra.mxu0 %v1261
    %1269 = vmatprep.subr.mxu0 0.0
    %1270 = vmatpush1.msra.mxu0 %v1262
    %1271 = vmatprep.subr.mxu0 0.0
    %1272 = vmatpush1.msra.mxu0 %v1263
    %1273 = vmatprep.subr.mxu0 0.0
    %1274 = vmatpush1.msra.mxu0 %v1264
    %1275 = vmatprep.subr.mxu0 0.0
    %1276 = vmatpush1.msra.mxu0 0.0
    %1277 = vmatprep.subr.mxu0 0.0
    %1278 = vmatpush1.msra.mxu0 0.0
    %1279 = vmatprep.subr.mxu0 0.0
    %1280 = vmatpush1.msra.mxu0 0.0
    %1281 = vmatprep.subr.mxu0 0.0
    %1282 = vmatpush1.msra.mxu0 0.0
    %1283 = vmatprep.subr.mxu0 0.0
    %1284 = vmatpush1.msra.mxu0 0.0
    %1285 = vmatprep.subr.mxu0 0.0
    %1286 = vmatpush1.msra.mxu0 0.0
    %1287 = vmatprep.subr.mxu0 0.0
    %1288 = vmatpush1.msra.mxu0 0.0
    %1289 = vmatprep.subr.mxu0 0.0
    %1290 = vmatpush1.msra.mxu0 0.0
    %1291 = vmatprep.subr.mxu0 0.0
    %1292 = vmatpush1.msra.mxu0 0.0
    %1293 = vmatprep.subr.mxu0 0.0
    %1294 = vmatpush1.msra.mxu0 0.0
    %1295 = vmatprep.subr.mxu0 0.0
    %1296 = vmatpush1.msra.mxu0 0.0
    %1297 = vmatprep.subr.mxu0 0.0
    %1298 = vmatpush1.msra.mxu0 0.0
    %1299 = vmatprep.subr.mxu0 0.0
    %1300 = vmatpush1.msra.mxu0 0.0
    %1301 = vmatprep.subr.mxu0 0.0
    %1302 = vmatpush1.msra.mxu0 0.0
    %1303 = vmatprep.subr.mxu0 0.0
    %1304 = vmatpush1.msra.mxu0 0.0
    %1305 = vmatprep.subr.mxu0 0.0
    %1306 = vmatpush1.msra.mxu0 0.0
    %1307 = vmatprep.subr.mxu0 0.0
    %1308 = vmatpush1.msra.mxu0 0.0
    %1309 = vmatprep.subr.mxu0 0.0
    %1310 = vmatpush1.msra.mxu0 0.0
    %1311 = vmatprep.subr.mxu0 0.0
    %1312 = vmatpush1.msra.mxu0 0.0
    %1313 = vmatprep.subr.mxu0 0.0
    %1314 = vmatpush1.msra.mxu0 0.0
    %1315 = vmatprep.subr.mxu0 0.0
    %1316 = vmatpush1.msra.mxu0 0.0
    %1317 = vmatprep.subr.mxu0 0.0
    %1318 = vmatpush1.msra.mxu0 0.0
    %1319 = vmatprep.subr.mxu0 0.0
    %1320 = vmatpush1.msra.mxu0 0.0
    %1321 = vmatprep.subr.mxu0 0.0
    %1322 = vmatpush1.msra.mxu0 0.0
    %1323 = vmatprep.subr.mxu0 0.0
    %1324 = vmatpush1.msra.mxu0 0.0
    %1325 = vmatprep.subr.mxu0 0.0
    %1326 = vmatpush1.msra.mxu0 0.0
    %1327 = vmatprep.subr.mxu0 0.0
    %1328 = vmatpush1.msra.mxu0 0.0
    %1329 = vmatprep.subr.mxu0 0.0
    %1330 = vmatpush1.msra.mxu0 0.0
    %1331 = vmatprep.mubr.f32.mxu0 0.0
    %1332 = vmatmul.mubr.f32.gmra.mrb[0].mxu0 %v1188
    %v1333 = vpop.f32.mrb[0].mxu0
    %v1334 = vadd.f32 %v1266, %v1333
    %v1335 = vpop.f32.mrb[0].mxu0
    %1336 = vdwg.mxu0
    %v1337 = vmul.f32 %v1334, 0.5
    %v1338 = vtanh.pop %v1337
    %v1339 = vadd.f32 %v1338, 1.0
    %v1340 = vmul.f32 %v1339, 0.5
    %v1341 = vmul.f32 %v1257, %v1340
    %v1342 = vadd.f32 %v1341, %v1179
    %v1343 = vmul.f32 %v1342, 0.70710677
    %s1344 = scalar_lea.vmem %s1, 416
    %v1345 = vld [vmem:[%s1344] sm:$0xff]
    %v1346 = vld [vmem:[%s1344 + $0x8] sm:$0xff]
    %v1347 = vld [vmem:[%s1344 + $0x10] sm:$0xff]
    %v1348 = vld [vmem:[%s1344 + $0x18] sm:$0xff]
    %s1349 = scalar_lea.vmem %s2, 104
    %v1350 = vld [vmem:[%s1349] sm:$0xff]
    %v1352 = vsel %vm21, %v1343, 0
    %1354 = vmatprep.subr.mxu0 0.0
    %1355 = vmatpush1.msra.mxu0 %v1345
    %1356 = vmatprep.subr.mxu0 0.0
    %1357 = vmatpush1.msra.mxu0 %v1346
    %1358 = vmatprep.subr.mxu0 0.0
    %1359 = vmatpush1.msra.mxu0 %v1347
    %1360 = vmatprep.subr.mxu0 0.0
    %1361 = vmatpush1.msra.mxu0 %v1348
    %1362 = vmatprep.subr.mxu0 0.0
    %1363 = vmatpush1.msra.mxu0 0.0
    %1364 = vmatprep.subr.mxu0 0.0
    %1365 = vmatpush1.msra.mxu0 0.0
    %1366 = vmatprep.subr.mxu0 0.0
    %1367 = vmatpush1.msra.mxu0 0.0
    %1368 = vmatprep.subr.mxu0 0.0
    %1369 = vmatpush1.msra.mxu0 0.0
    %1370 = vmatprep.subr.mxu0 0.0
    %1371 = vmatpush1.msra.mxu0 0.0
    %1372 = vmatprep.subr.mxu0 0.0
    %1373 = vmatpush1.msra.mxu0 0.0
    %1374 = vmatprep.subr.mxu0 0.0
    %1375 = vmatpush1.msra.mxu0 0.0
    %1376 = vmatprep.subr.mxu0 0.0
    %1377 = vmatpush1.msra.mxu0 0.0
    %1378 = vmatprep.subr.mxu0 0.0
    %1379 = vmatpush1.msra.mxu0 0.0
    %1380 = vmatprep.subr.mxu0 0.0
    %1381 = vmatpush1.msra.mxu0 0.0
    %1382 = vmatprep.subr.mxu0 0.0
    %1383 = vmatpush1.msra.mxu0 0.0
    %1384 = vmatprep.subr.mxu0 0.0
    %1385 = vmatpush1.msra.mxu0 0.0
    %1386 = vmatprep.subr.mxu0 0.0
    %1387 = vmatpush1.msra.mxu0 0.0
    %1388 = vmatprep.subr.mxu0 0.0
    %1389 = vmatpush1.msra.mxu0 0.0
    %1390 = vmatprep.subr.mxu0 0.0
    %1391 = vmatpush1.msra.mxu0 0.0
    %1392 = vmatprep.subr.mxu0 0.0
    %1393 = vmatpush1.msra.mxu0 0.0
    %1394 = vmatprep.subr.mxu0 0.0
    %1395 = vmatpush1.msra.mxu0 0.0
    %1396 = vmatprep.subr.mxu0 0.0
    %1397 = vmatpush1.msra.mxu0 0.0
    %1398 = vmatprep.subr.mxu0 0.0
    %1399 = vmatpush1.msra.mxu0 0.0
    %1400 = vmatprep.subr.mxu0 0.0
    %1401 = vmatpush1.msra.mxu0 0.0
    %1402 = vmatprep.subr.mxu0 0.0
    %1403 = vmatpush1.msra.mxu0 0.0
    %1404 = vmatprep.subr.mxu0 0.0
    %1405 = vmatpush1.msra.mxu0 0.0
    %1406 = vmatprep.subr.mxu0 0.0
    %1407 = vmatpush1.msra.mxu0 0.0
    %1408 = vmatprep.subr.mxu0 0.0
    %1409 = vmatpush1.msra.mxu0 0.0
    %1410 = vmatprep.subr.mxu0 0.0
    %1411 = vmatpush1.msra.mxu0 0.0
    %1412 = vmatprep.subr.mxu0 0.0
    %1413 = vmatpush1.msra.mxu0 0.0
    %1414 = vmatprep.subr.mxu0 0.0
    %1415 = vmatpush1.msra.mxu0 0.0
    %1416 = vmatprep.subr.mxu0 0.0
    %1417 = vmatpush1.msra.mxu0 0.0
    %1418 = vmatprep.mubr.f32.mxu0 0.0
    %1419 = vmatmul.mubr.f32.gmra.mrb[0].mxu0 %v1352
    %v1420 = vpop.f32.mrb[0].mxu0
    %v1421 = vadd.f32 %v1350, %v1420
    %v1422 = vpop.f32.mrb[0].mxu0
    %1423 = vdwg.mxu0
    %s1424 = scalar_lea.vmem %s1, 448
    %v1425 = vld [vmem:[%s1424] sm:$0xff]
    %v1426 = vld [vmem:[%s1424 + $0x8] sm:$0xff]
    %v1427 = vld [vmem:[%s1424 + $0x10] sm:$0xff]
    %v1428 = vld [vmem:[%s1424 + $0x18] sm:$0xff]
    %s1429 = scalar_lea.vmem %s2, 112
    %v1430 = vld [vmem:[%s1429] sm:$0xff]
    %1431 = vmatprep.subr.mxu0 0.0
    %1432 = vmatpush1.msra.mxu0 %v1425
    %1433 = vmatprep.subr.mxu0 0.0
    %1434 = vmatpush1.msra.mxu0 %v1426
    %1435 = vmatprep.subr.mxu0 0.0
    %1436 = vmatpush1.msra.mxu0 %v1427
    %1437 = vmatprep.subr.mxu0 0.0
    %1438 = vmatpush1.msra.mxu0 %v1428
    %1439 = vmatprep.subr.mxu0 0.0
    %1440 = vmatpush1.msra.mxu0 0.0
    %1441 = vmatprep.subr.mxu0 0.0
    %1442 = vmatpush1.msra.mxu0 0.0
    %1443 = vmatprep.subr.mxu0 0.0
    %1444 = vmatpush1.msra.mxu0 0.0
    %1445 = vmatprep.subr.mxu0 0.0
    %1446 = vmatpush1.msra.mxu0 0.0
    %1447 = vmatprep.subr.mxu0 0.0
    %1448 = vmatpush1.msra.mxu0 0.0
    %1449 = vmatprep.subr.mxu0 0.0
    %1450 = vmatpush1.msra.mxu0 0.0
    %1451 = vmatprep.subr.mxu0 0.0
    %1452 = vmatpush1.msra.mxu0 0.0
    %1453 = vmatprep.subr.mxu0 0.0
    %1454 = vmatpush1.msra.mxu0 0.0
    %1455 = vmatprep.subr.mxu0 0.0
    %1456 = vmatpush1.msra.mxu0 0.0
    %1457 = vmatprep.subr.mxu0 0.0
    %1458 = vmatpush1.msra.mxu0 0.0
    %1459 = vmatprep.subr.mxu0 0.0
    %1460 = vmatpush1.msra.mxu0 0.0
    %1461 = vmatprep.subr.mxu0 0.0
    %1462 = vmatpush1.msra.mxu0 0.0
    %1463 = vmatprep.subr.mxu0 0.0
    %1464 = vmatpush1.msra.mxu0 0.0
    %1465 = vmatprep.subr.mxu0 0.0
    %1466 = vmatpush1.msra.mxu0 0.0
    %1467 = vmatprep.subr.mxu0 0.0
    %1468 = vmatpush1.msra.mxu0 0.0
    %1469 = vmatprep.subr.mxu0 0.0
    %1470 = vmatpush1.msra.mxu0 0.0
    %1471 = vmatprep.subr.mxu0 0.0
    %1472 = vmatpush1.msra.mxu0 0.0
    %1473 = vmatprep.subr.mxu0 0.0
    %1474 = vmatpush1.msra.mxu0 0.0
    %1475 = vmatprep.subr.mxu0 0.0
    %1476 = vmatpush1.msra.mxu0 0.0
    %1477 = vmatprep.subr.mxu0 0.0
    %1478 = vmatpush1.msra.mxu0 0.0
    %1479 = vmatprep.subr.mxu0 0.0
    %1480 = vmatpush1.msra.mxu0 0.0
    %1481 = vmatprep.subr.mxu0 0.0
    %1482 = vmatpush1.msra.mxu0 0.0
    %1483 = vmatprep.subr.mxu0 0.0
    %1484 = vmatpush1.msra.mxu0 0.0
    %1485 = vmatprep.subr.mxu0 0.0
    %1486 = vmatpush1.msra.mxu0 0.0
    %1487 = vmatprep.subr.mxu0 0.0
    %1488 = vmatpush1.msra.mxu0 0.0
    %1489 = vmatprep.subr.mxu0 0.0
    %1490 = vmatpush1.msra.mxu0 0.0
    %1491 = vmatprep.subr.mxu0 0.0
    %1492 = vmatpush1.msra.mxu0 0.0
    %1493 = vmatprep.subr.mxu0 0.0
    %1494 = vmatpush1.msra.mxu0 0.0
    %1495 = vmatprep.mubr.f32.mxu0 0.0
    %1496 = vmatmul.mubr.f32.gmra.mrb[0].mxu0 %v1352
    %v1497 = vpop.f32.mrb[0].mxu0
    %v1498 = vadd.f32 %v1430, %v1497
    %v1499 = vpop.f32.mrb[0].mxu0
    %1500 = vdwg.mxu0
    %v1501 = vmul.f32 %v1498, 0.5
    %v1502 = vtanh.pop %v1501
    %v1503 = vadd.f32 %v1502, 1.0
    %v1504 = vmul.f32 %v1503, 0.5
    %v1505 = vmul.f32 %v1421, %v1504
    %v1506 = vadd.f32 %v1505, %v1343
    %v1507 = vmul.f32 %v1506, 0.70710677
    %s1508 = scalar_lea.vmem %s1, 480
    %v1509 = vld [vmem:[%s1508] sm:$0xff]
    %v1510 = vld [vmem:[%s1508 + $0x8] sm:$0xff]
    %v1511 = vld [vmem:[%s1508 + $0x10] sm:$0xff]
    %v1512 = vld [vmem:[%s1508 + $0x18] sm:$0xff]
    %s1513 = scalar_lea.vmem %s2, 120
    %v1514 = vld [vmem:[%s1513] sm:$0xff]
    %v1516 = vsel %vm21, %v1507, 0
    %1518 = vmatprep.subr.mxu0 0.0
    %1519 = vmatpush1.msra.mxu0 %v1509
    %1520 = vmatprep.subr.mxu0 0.0
    %1521 = vmatpush1.msra.mxu0 %v1510
    %1522 = vmatprep.subr.mxu0 0.0
    %1523 = vmatpush1.msra.mxu0 %v1511
    %1524 = vmatprep.subr.mxu0 0.0
    %1525 = vmatpush1.msra.mxu0 %v1512
    %1526 = vmatprep.subr.mxu0 0.0
    %1527 = vmatpush1.msra.mxu0 0.0
    %1528 = vmatprep.subr.mxu0 0.0
    %1529 = vmatpush1.msra.mxu0 0.0
    %1530 = vmatprep.subr.mxu0 0.0
    %1531 = vmatpush1.msra.mxu0 0.0
    %1532 = vmatprep.subr.mxu0 0.0
    %1533 = vmatpush1.msra.mxu0 0.0
    %1534 = vmatprep.subr.mxu0 0.0
    %1535 = vmatpush1.msra.mxu0 0.0
    %1536 = vmatprep.subr.mxu0 0.0
    %1537 = vmatpush1.msra.mxu0 0.0
    %1538 = vmatprep.subr.mxu0 0.0
    %1539 = vmatpush1.msra.mxu0 0.0
    %1540 = vmatprep.subr.mxu0 0.0
    %1541 = vmatpush1.msra.mxu0 0.0
    %1542 = vmatprep.subr.mxu0 0.0
    %1543 = vmatpush1.msra.mxu0 0.0
    %1544 = vmatprep.subr.mxu0 0.0
    %1545 = vmatpush1.msra.mxu0 0.0
    %1546 = vmatprep.subr.mxu0 0.0
    %1547 = vmatpush1.msra.mxu0 0.0
    %1548 = vmatprep.subr.mxu0 0.0
    %1549 = vmatpush1.msra.mxu0 0.0
    %1550 = vmatprep.subr.mxu0 0.0
    %1551 = vmatpush1.msra.mxu0 0.0
    %1552 = vmatprep.subr.mxu0 0.0
    %1553 = vmatpush1.msra.mxu0 0.0
    %1554 = vmatprep.subr.mxu0 0.0
    %1555 = vmatpush1.msra.mxu0 0.0
    %1556 = vmatprep.subr.mxu0 0.0
    %1557 = vmatpush1.msra.mxu0 0.0
    %1558 = vmatprep.subr.mxu0 0.0
    %1559 = vmatpush1.msra.mxu0 0.0
    %1560 = vmatprep.subr.mxu0 0.0
    %1561 = vmatpush1.msra.mxu0 0.0
    %1562 = vmatprep.subr.mxu0 0.0
    %1563 = vmatpush1.msra.mxu0 0.0
    %1564 = vmatprep.subr.mxu0 0.0
    %1565 = vmatpush1.msra.mxu0 0.0
    %1566 = vmatprep.subr.mxu0 0.0
    %1567 = vmatpush1.msra.mxu0 0.0
    %1568 = vmatprep.subr.mxu0 0.0
    %1569 = vmatpush1.msra.mxu0 0.0
    %1570 = vmatprep.subr.mxu0 0.0
    %1571 = vmatpush1.msra.mxu0 0.0
    %1572 = vmatprep.subr.mxu0 0.0
    %1573 = vmatpush1.msra.mxu0 0.0
    %1574 = vmatprep.subr.mxu0 0.0
    %1575 = vmatpush1.msra.mxu0 0.0
    %1576 = vmatprep.subr.mxu0 0.0
    %1577 = vmatpush1.msra.mxu0 0.0
    %1578 = vmatprep.subr.mxu0 0.0
    %1579 = vmatpush1.msra.mxu0 0.0
    %1580 = vmatprep.subr.mxu0 0.0
    %1581 = vmatpush1.msra.mxu0 0.0
    %1582 = vmatprep.mubr.f32.mxu0 0.0
    %1583 = vmatmul.mubr.f32.gmra.mrb[0].mxu0 %v1516
    %v1584 = vpop.f32.mrb[0].mxu0
    %v1585 = vadd.f32 %v1514, %v1584
    %v1586 = vpop.f32.mrb[0].mxu0
    %1587 = vdwg.mxu0
    %s1588 = scalar_lea.vmem %s1, 512
    %v1589 = vld [vmem:[%s1588] sm:$0xff]
    %v1590 = vld [vmem:[%s1588 + $0x8] sm:$0xff]
    %v1591 = vld [vmem:[%s1588 + $0x10] sm:$0xff]
    %v1592 = vld [vmem:[%s1588 + $0x18] sm:$0xff]
    %s1593 = scalar_lea.vmem %s2, 128
    %v1594 = vld [vmem:[%s1593] sm:$0xff]
    %1595 = vmatprep.subr.mxu0 0.0
    %1596 = vmatpush1.msra.mxu0 %v1589
    %1597 = vmatprep.subr.mxu0 0.0
    %1598 = vmatpush1.msra.mxu0 %v1590
    %1599 = vmatprep.subr.mxu0 0.0
    %1600 = vmatpush1.msra.mxu0 %v1591
    %1601 = vmatprep.subr.mxu0 0.0
    %1602 = vmatpush1.msra.mxu0 %v1592
    %1603 = vmatprep.subr.mxu0 0.0
    %1604 = vmatpush1.msra.mxu0 0.0
    %1605 = vmatprep.subr.mxu0 0.0
    %1606 = vmatpush1.msra.mxu0 0.0
    %1607 = vmatprep.subr.mxu0 0.0
    %1608 = vmatpush1.msra.mxu0 0.0
    %1609 = vmatprep.subr.mxu0 0.0
    %1610 = vmatpush1.msra.mxu0 0.0
    %1611 = vmatprep.subr.mxu0 0.0
    %1612 = vmatpush1.msra.mxu0 0.0
    %1613 = vmatprep.subr.mxu0 0.0
    %1614 = vmatpush1.msra.mxu0 0.0
    %1615 = vmatprep.subr.mxu0 0.0
    %1616 = vmatpush1.msra.mxu0 0.0
    %1617 = vmatprep.subr.mxu0 0.0
    %1618 = vmatpush1.msra.mxu0 0.0
    %1619 = vmatprep.subr.mxu0 0.0
    %1620 = vmatpush1.msra.mxu0 0.0
    %1621 = vmatprep.subr.mxu0 0.0
    %1622 = vmatpush1.msra.mxu0 0.0
    %1623 = vmatprep.subr.mxu0 0.0
    %1624 = vmatpush1.msra.mxu0 0.0
    %1625 = vmatprep.subr.mxu0 0.0
    %1626 = vmatpush1.msra.mxu0 0.0
    %1627 = vmatprep.subr.mxu0 0.0
    %1628 = vmatpush1.msra.mxu0 0.0
    %1629 = vmatprep.subr.mxu0 0.0
    %1630 = vmatpush1.msra.mxu0 0.0
    %1631 = vmatprep.subr.mxu0 0.0
    %1632 = vmatpush1.msra.mxu0 0.0
    %1633 = vmatprep.subr.mxu0 0.0
    %1634 = vmatpush1.msra.mxu0 0.0
    %1635 = vmatprep.subr.mxu0 0.0
    %1636 = vmatpush1.msra.mxu0 0.0
    %1637 = vmatprep.subr.mxu0 0.0
    %1638 = vmatpush1.msra.mxu0 0.0
    %1639 = vmatprep.subr.mxu0 0.0
    %1640 = vmatpush1.msra.mxu0 0.0
    %1641 = vmatprep.subr.mxu0 0.0
    %1642 = vmatpush1.msra.mxu0 0.0
    %1643 = vmatprep.subr.mxu0 0.0
    %1644 = vmatpush1.msra.mxu0 0.0
    %1645 = vmatprep.subr.mxu0 0.0
    %1646 = vmatpush1.msra.mxu0 0.0
    %1647 = vmatprep.subr.mxu0 0.0
    %1648 = vmatpush1.msra.mxu0 0.0
    %1649 = vmatprep.subr.mxu0 0.0
    %1650 = vmatpush1.msra.mxu0 0.0
    %1651 = vmatprep.subr.mxu0 0.0
    %1652 = vmatpush1.msra.mxu0 0.0
    %1653 = vmatprep.subr.mxu0 0.0
    %1654 = vmatpush1.msra.mxu0 0.0
    %1655 = vmatprep.subr.mxu0 0.0
    %1656 = vmatpush1.msra.mxu0 0.0
    %1657 = vmatprep.subr.mxu0 0.0
    %1658 = vmatpush1.msra.mxu0 0.0
    %1659 = vmatprep.mubr.f32.mxu0 0.0
    %1660 = vmatmul.mubr.f32.gmra.mrb[0].mxu0 %v1516
    %v1661 = vpop.f32.mrb[0].mxu0
    %v1662 = vadd.f32 %v1594, %v1661
    %v1663 = vpop.f32.mrb[0].mxu0
    %1664 = vdwg.mxu0
    %v1665 = vmul.f32 %v1662, 0.5
    %v1666 = vtanh.pop %v1665
    %v1667 = vadd.f32 %v1666, 1.0
    %v1668 = vmul.f32 %v1667, 0.5
    %v1669 = vmul.f32 %v1585, %v1668
    %v1670 = vadd.f32 %v1669, %v1507
    %v1671 = vmul.f32 %v1670, 0.70710677
    %v1672 = vmax.f32 %v1671, 0.0
    %v1673 = vadd.f32 %v1672, 0.0
    %s1674 = scalar_lea.vmem %s1, 1088
    %v1675 = vld [vmem:[%s1674] sm:$0xff]
    %v1676 = vld [vmem:[%s1674 + $0x8] sm:$0xff]
    %v1677 = vld [vmem:[%s1674 + $0x10] sm:$0xff]
    %v1678 = vld [vmem:[%s1674 + $0x18] sm:$0xff]
    %s1679 = scalar_lea.vmem %s2, 272
    %v1680 = vld [vmem:[%s1679] sm:$0xff]
    %v1682 = vsel %vm21, %v1671, 0
    %1684 = vmatprep.subr.mxu0 0.0
    %1685 = vmatpush1.msra.mxu0 %v1675
    %1686 = vmatprep.subr.mxu0 0.0
    %1687 = vmatpush1.msra.mxu0 %v1676
    %1688 = vmatprep.subr.mxu0 0.0
    %1689 = vmatpush1.msra.mxu0 %v1677
    %1690 = vmatprep.subr.mxu0 0.0
    %1691 = vmatpush1.msra.mxu0 %v1678
    %1692 = vmatprep.subr.mxu0 0.0
    %1693 = vmatpush1.msra.mxu0 0.0
    %1694 = vmatprep.subr.mxu0 0.0
    %1695 = vmatpush1.msra.mxu0 0.0
    %1696 = vmatprep.subr.mxu0 0.0
    %1697 = vmatpush1.msra.mxu0 0.0
    %1698 = vmatprep.subr.mxu0 0.0
    %1699 = vmatpush1.msra.mxu0 0.0
    %1700 = vmatprep.subr.mxu0 0.0
    %1701 = vmatpush1.msra.mxu0 0.0
    %1702 = vmatprep.subr.mxu0 0.0
    %1703 = vmatpush1.msra.mxu0 0.0
    %1704 = vmatprep.subr.mxu0 0.0
    %1705 = vmatpush1.msra.mxu0 0.0
    %1706 = vmatprep.subr.mxu0 0.0
    %1707 = vmatpush1.msra.mxu0 0.0
    %1708 = vmatprep.subr.mxu0 0.0
    %1709 = vmatpush1.msra.mxu0 0.0
    %1710 = vmatprep.subr.mxu0 0.0
    %1711 = vmatpush1.msra.mxu0 0.0
    %1712 = vmatprep.subr.mxu0 0.0
    %1713 = vmatpush1.msra.mxu0 0.0
    %1714 = vmatprep.subr.mxu0 0.0
    %1715 = vmatpush1.msra.mxu0 0.0
    %1716 = vmatprep.subr.mxu0 0.0
    %1717 = vmatpush1.msra.mxu0 0.0
    %1718 = vmatprep.subr.mxu0 0.0
    %1719 = vmatpush1.msra.mxu0 0.0
    %1720 = vmatprep.subr.mxu0 0.0
    %1721 = vmatpush1.msra.mxu0 0.0
    %1722 = vmatprep.subr.mxu0 0.0
    %1723 = vmatpush1.msra.mxu0 0.0
    %1724 = vmatprep.subr.mxu0 0.0
    %1725 = vmatpush1.msra.mxu0 0.0
    %1726 = vmatprep.subr.mxu0 0.0
    %1727 = vmatpush1.msra.mxu0 0.0
    %1728 = vmatprep.subr.mxu0 0.0
    %1729 = vmatpush1.msra.mxu0 0.0
    %1730 = vmatprep.subr.mxu0 0.0
    %1731 = vmatpush1.msra.mxu0 0.0
    %1732 = vmatprep.subr.mxu0 0.0
    %1733 = vmatpush1.msra.mxu0 0.0
    %1734 = vmatprep.subr.mxu0 0.0
    %1735 = vmatpush1.msra.mxu0 0.0
    %1736 = vmatprep.subr.mxu0 0.0
    %1737 = vmatpush1.msra.mxu0 0.0
    %1738 = vmatprep.subr.mxu0 0.0
    %1739 = vmatpush1.msra.mxu0 0.0
    %1740 = vmatprep.subr.mxu0 0.0
    %1741 = vmatpush1.msra.mxu0 0.0
    %1742 = vmatprep.subr.mxu0 0.0
    %1743 = vmatpush1.msra.mxu0 0.0
    %1744 = vmatprep.subr.mxu0 0.0
    %1745 = vmatpush1.msra.mxu0 0.0
    %1746 = vmatprep.subr.mxu0 0.0
    %1747 = vmatpush1.msra.mxu0 0.0
    %1748 = vmatprep.mubr.f32.mxu0 0.0
    %1749 = vmatmul.mubr.f32.gmra.mrb[0].mxu0 %v1682
    %v1750 = vpop.f32.mrb[0].mxu0
    %v1751 = vadd.f32 %v1680, %v1750
    %v1752 = vpop.f32.mrb[0].mxu0
    %1753 = vdwg.mxu0
    %v1754 = vmul.f32 %v1751, %v1016
    %v1755 = vsel %vm21, %v1754, -inf
    %1756 = vmax.xlane.f32.xlu0 %v1755
    %v1757 = vpop.xlane.xlu0 %1756
    %v1758 = vsub.f32 %v1757, 1.0
    %v1759 = vadd.f32 %v1758, 0.5
    %v1760 = vsub.f32 %v1754, %v1759
    %v1761 = vmax.f32 %v1760, 0.0
    %v1762 = vsel %vm21, %v1761, 0.0
    %1763 = vadd.xlane.f32.xlu0 %v1762
    %v1764 = vpop.xlane.xlu0 %1763
    %vm1765 = vcmp.gt.f32.partialorder %v1764, 1.0
    %v1766 = vsel %vm1765, 0.5, 0.0
    %v1767 = vadd.f32 %v1758, %v1766
    %v1768 = vadd.f32 %v1767, 0.25
    %v1769 = vsub.f32 %v1754, %v1768
    %v1770 = vmax.f32 %v1769, 0.0
    %v1771 = vsel %vm21, %v1770, 0.0
    %1772 = vadd.xlane.f32.xlu0 %v1771
    %v1773 = vpop.xlane.xlu0 %1772
    %vm1774 = vcmp.gt.f32.partialorder %v1773, 1.0
    %v1775 = vsel %vm1774, 0.25, 0.0
    %v1776 = vadd.f32 %v1767, %v1775
    %v1777 = vadd.f32 %v1776, 0.125
    %v1778 = vsub.f32 %v1754, %v1777
    %v1779 = vmax.f32 %v1778, 0.0
    %v1780 = vsel %vm21, %v1779, 0.0
    %1781 = vadd.xlane.f32.xlu0 %v1780
    %v1782 = vpop.xlane.xlu0 %1781
    %vm1783 = vcmp.gt.f32.partialorder %v1782, 1.0
    %v1784 = vsel %vm1783, 0.125, 0.0
    %v1785 = vadd.f32 %v1776, %v1784
    %v1786 = vadd.f32 %v1785, 0.0625
    %v1787 = vsub.f32 %v1754, %v1786
    %v1788 = vmax.f32 %v1787, 0.0
    %v1789 = vsel %vm21, %v1788, 0.0
    %1790 = vadd.xlane.f32.xlu0 %v1789
    %v1791 = vpop.xlane.xlu0 %1790
    %vm1792 = vcmp.gt.f32.partialorder %v1791, 1.0
    %v1793 = vsel %vm1792, 0.0625, 0.0
    %v1794 = vadd.f32 %v1785, %v1793
    %v1795 = vadd.f32 %v1794, 0.03125
    %v1796 = vsub.f32 %v1754, %v1795
    %v1797 = vmax.f32 %v1796, 0.0
    %v1798 = vsel %vm21, %v1797, 0.0
    %1799 = vadd.xlane.f32.xlu0 %v1798
    %v1800 = vpop.xlane.xlu0 %1799
    %vm1801 = vcmp.gt.f32.partialorder %v1800, 1.0
    %v1802 = vsel %vm1801, 0.03125, 0.0
    %v1803 = vadd.f32 %v1794, %v1802
    %v1804 = vadd.f32 %v1803, 0.015625
    %v1805 = vsub.f32 %v1754, %v1804
    %v1806 = vmax.f32 %v1805, 0.0
    %v1807 = vsel %vm21, %v1806, 0.0
    %1808 = vadd.xlane.f32.xlu0 %v1807
    %v1809 = vpop.xlane.xlu0 %1808
    %vm1810 = vcmp.gt.f32.partialorder %v1809, 1.0
    %v1811 = vsel %vm1810, 0.015625, 0.0
    %v1812 = vadd.f32 %v1803, %v1811
    %v1813 = vadd.f32 %v1812, 0.0078125
    %v1814 = vsub.f32 %v1754, %v1813
    %v1815 = vmax.f32 %v1814, 0.0
    %v1816 = vsel %vm21, %v1815, 0.0
    %1817 = vadd.xlane.f32.xlu0 %v1816
    %v1818 = vpop.xlane.xlu0 %1817
    %vm1819 = vcmp.gt.f32.partialorder %v1818, 1.0
    %v1820 = vsel %vm1819, 0.0078125, 0.0
    %v1821 = vadd.f32 %v1812, %v1820
    %v1822 = vadd.f32 %v1821, 0.00390625
    %v1823 = vsub.f32 %v1754, %v1822
    %v1824 = vmax.f32 %v1823, 0.0
    %v1825 = vsel %vm21, %v1824, 0.0
    %1826 = vadd.xlane.f32.xlu0 %v1825
    %v1827 = vpop.xlane.xlu0 %1826
    %vm1828 = vcmp.gt.f32.partialorder %v1827, 1.0
    %v1829 = vsel %vm1828, 0.00390625, 0.0
    %v1830 = vadd.f32 %v1821, %v1829
    %v1831 = vadd.f32 %v1830, 0.001953125
    %v1832 = vsub.f32 %v1754, %v1831
    %v1833 = vmax.f32 %v1832, 0.0
    %v1834 = vsel %vm21, %v1833, 0.0
    %1835 = vadd.xlane.f32.xlu0 %v1834
    %v1836 = vpop.xlane.xlu0 %1835
    %vm1837 = vcmp.gt.f32.partialorder %v1836, 1.0
    %v1838 = vsel %vm1837, 0.001953125, 0.0
    %v1839 = vadd.f32 %v1830, %v1838
    %v1840 = vadd.f32 %v1839, 0.0009765625
    %v1841 = vsub.f32 %v1754, %v1840
    %v1842 = vmax.f32 %v1841, 0.0
    %v1843 = vsel %vm21, %v1842, 0.0
    %1844 = vadd.xlane.f32.xlu0 %v1843
    %v1845 = vpop.xlane.xlu0 %1844
    %vm1846 = vcmp.gt.f32.partialorder %v1845, 1.0
    %v1847 = vsel %vm1846, 0.0009765625, 0.0
    %v1848 = vadd.f32 %v1839, %v1847
    %v1849 = vadd.f32 %v1848, 0.00048828125
    %v1850 = vsub.f32 %v1754, %v1849
    %v1851 = vmax.f32 %v1850, 0.0
    %v1852 = vsel %vm21, %v1851, 0.0
    %1853 = vadd.xlane.f32.xlu0 %v1852
    %v1854 = vpop.xlane.xlu0 %1853
    %vm1855 = vcmp.gt.f32.partialorder %v1854, 1.0
    %v1856 = vsel %vm1855, 0.00048828125, 0.0
    %v1857 = vadd.f32 %v1848, %v1856
    %v1858 = vadd.f32 %v1857, 0.00024414063
    %v1859 = vsub.f32 %v1754, %v1858
    %v1860 = vmax.f32 %v1859, 0.0
    %v1861 = vsel %vm21, %v1860, 0.0
    %1862 = vadd.xlane.f32.xlu0 %v1861
    %v1863 = vpop.xlane.xlu0 %1862
    %vm1864 = vcmp.gt.f32.partialorder %v1863, 1.0
    %v1865 = vsel %vm1864, 0.00024414063, 0.0
    %v1866 = vadd.f32 %v1857, %v1865
    %v1867 = vadd.f32 %v1866, 0.00012207031
    %v1868 = vsub.f32 %v1754, %v1867
    %v1869 = vmax.f32 %v1868, 0.0
    %v1870 = vsel %vm21, %v1869, 0.0
    %1871 = vadd.xlane.f32.xlu0 %v1870
    %v1872 = vpop.xlane.xlu0 %1871
    %vm1873 = vcmp.gt.f32.partialorder %v1872, 1.0
    %v1874 = vsel %vm1873, 0.00012207031, 0.0
    %v1875 = vadd.f32 %v1866, %v1874
    %v1876 = vadd.f32 %v1875, 6.1035156e-05
    %v1877 = vsub.f32 %v1754, %v1876
    %v1878 = vmax.f32 %v1877, 0.0
    %v1879 = vsel %vm21, %v1878, 0.0
    %1880 = vadd.xlane.f32.xlu0 %v1879
    %v1881 = vpop.xlane.xlu0 %1880
    %vm1882 = vcmp.gt.f32.partialorder %v1881, 1.0
    %v1883 = vsel %vm1882, 6.1035156e-05, 0.0
    %v1884 = vadd.f32 %v1875, %v1883
    %v1885 = vadd.f32 %v1884, 3.0517578e-05
    %v1886 = vsub.f32 %v1754, %v1885
    %v1887 = vmax.f32 %v1886, 0.0
    %v1888 = vsel %vm21, %v1887, 0.0
    %1889 = vadd.xlane.f32.xlu0 %v1888
    %v1890 = vpop.xlane.xlu0 %1889
    %vm1891 = vcmp.gt.f32.partialorder %v1890, 1.0
    %v1892 = vsel %vm1891, 3.0517578e-05, 0.0
    %v1893 = vadd.f32 %v1884, %v1892
    %v1894 = vadd.f32 %v1893, 1.5258789e-05
    %v1895 = vsub.f32 %v1754, %v1894
    %v1896 = vmax.f32 %v1895, 0.0
    %v1897 = vsel %vm21, %v1896, 0.0
    %1898 = vadd.xlane.f32.xlu0 %v1897
    %v1899 = vpop.xlane.xlu0 %1898
    %vm1900 = vcmp.gt.f32.partialorder %v1899, 1.0
    %v1901 = vsel %vm1900, 1.5258789e-05, 0.0
    %v1902 = vadd.f32 %v1893, %v1901
    %v1903 = vadd.f32 %v1902, 7.6293945e-06
    %v1904 = vsub.f32 %v1754, %v1903
    %v1905 = vmax.f32 %v1904, 0.0
    %v1906 = vsel %vm21, %v1905, 0.0
    %1907 = vadd.xlane.f32.xlu0 %v1906
    %v1908 = vpop.xlane.xlu0 %1907
    %vm1909 = vcmp.gt.f32.partialorder %v1908, 1.0
    %v1910 = vsel %vm1909, 7.6293945e-06, 0.0
    %v1911 = vadd.f32 %v1902, %v1910
    %v1912 = vadd.f32 %v1911, 3.8146973e-06
    %v1913 = vsub.f32 %v1754, %v1912
    %v1914 = vmax.f32 %v1913, 0.0
    %v1915 = vsel %vm21, %v1914, 0.0
    %1916 = vadd.xlane.f32.xlu0 %v1915
    %v1917 = vpop.xlane.xlu0 %1916
    %vm1918 = vcmp.gt.f32.partialorder %v1917, 1.0
    %v1919 = vsel %vm1918, 3.8146973e-06, 0.0
    %v1920 = vadd.f32 %v1911, %v1919
    %v1921 = vadd.f32 %v1920, 1.9073486e-06
    %v1922 = vsub.f32 %v1754, %v1921
    %v1923 = vmax.f32 %v1922, 0.0
    %v1924 = vsel %vm21, %v1923, 0.0
    %1925 = vadd.xlane.f32.xlu0 %v1924
    %v1926 = vpop.xlane.xlu0 %1925
    %vm1927 = vcmp.gt.f32.partialorder %v1926, 1.0
    %v1928 = vsel %vm1927, 1.9073486e-06, 0.0
    %v1929 = vadd.f32 %v1920, %v1928
    %v1930 = vadd.f32 %v1929, 9.536743e-07
    %v1931 = vsub.f32 %v1754, %v1930
    %v1932 = vmax.f32 %v1931, 0.0
    %v1933 = vsel %vm21, %v1932, 0.0
    %1934 = vadd.xlane.f32.xlu0 %v1933
    %v1935 = vpop.xlane.xlu0 %1934
    %vm1936 = vcmp.gt.f32.partialorder %v1935, 1.0
    %v1937 = vsel %vm1936, 9.536743e-07, 0.0
    %v1938 = vadd.f32 %v1929, %v1937
    %v1939 = vadd.f32 %v1938, 4.7683716e-07
    %v1940 = vsub.f32 %v1754, %v1939
    %v1941 = vmax.f32 %v1940, 0.0
    %v1942 = vsub.f32 1.3, %v1941
    %v1943 = vmul.f32 %v1942, %v1016
    %v1944 = vmul.f32 %v1941, %v92
    %s1945 = scalar_lea.vmem %s1, 544
    %v1946 = vld [vmem:[%s1945] sm:$0xff]
    %v1947 = vld [vmem:[%s1945 + $0x8] sm:$0xff]
    %v1948 = vld [vmem:[%s1945 + $0x10] sm:$0xff]
    %v1949 = vld [vmem:[%s1945 + $0x18] sm:$0xff]
    %s1950 = scalar_lea.vmem %s2, 136
    %v1951 = vld [vmem:[%s1950] sm:$0xff]
    %v1953 = vsel %vm21, %v1944, 0
    %1955 = vmatprep.subr.mxu0 0.0
    %1956 = vmatpush1.msra.mxu0 %v1946
    %1957 = vmatprep.subr.mxu0 0.0
    %1958 = vmatpush1.msra.mxu0 %v1947
    %1959 = vmatprep.subr.mxu0 0.0
    %1960 = vmatpush1.msra.mxu0 %v1948
    %1961 = vmatprep.subr.mxu0 0.0
    %1962 = vmatpush1.msra.mxu0 %v1949
    %1963 = vmatprep.subr.mxu0 0.0
    %1964 = vmatpush1.msra.mxu0 0.0
    %1965 = vmatprep.subr.mxu0 0.0
    %1966 = vmatpush1.msra.mxu0 0.0
    %1967 = vmatprep.subr.mxu0 0.0
    %1968 = vmatpush1.msra.mxu0 0.0
    %1969 = vmatprep.subr.mxu0 0.0
    %1970 = vmatpush1.msra.mxu0 0.0
    %1971 = vmatprep.subr.mxu0 0.0
    %1972 = vmatpush1.msra.mxu0 0.0
    %1973 = vmatprep.subr.mxu0 0.0
    %1974 = vmatpush1.msra.mxu0 0.0
    %1975 = vmatprep.subr.mxu0 0.0
    %1976 = vmatpush1.msra.mxu0 0.0
    %1977 = vmatprep.subr.mxu0 0.0
    %1978 = vmatpush1.msra.mxu0 0.0
    %1979 = vmatprep.subr.mxu0 0.0
    %1980 = vmatpush1.msra.mxu0 0.0
    %1981 = vmatprep.subr.mxu0 0.0
    %1982 = vmatpush1.msra.mxu0 0.0
    %1983 = vmatprep.subr.mxu0 0.0
    %1984 = vmatpush1.msra.mxu0 0.0
    %1985 = vmatprep.subr.mxu0 0.0
    %1986 = vmatpush1.msra.mxu0 0.0
    %1987 = vmatprep.subr.mxu0 0.0
    %1988 = vmatpush1.msra.mxu0 0.0
    %1989 = vmatprep.subr.mxu0 0.0
    %1990 = vmatpush1.msra.mxu0 0.0
    %1991 = vmatprep.subr.mxu0 0.0
    %1992 = vmatpush1.msra.mxu0 0.0
    %1993 = vmatprep.subr.mxu0 0.0
    %1994 = vmatpush1.msra.mxu0 0.0
    %1995 = vmatprep.subr.mxu0 0.0
    %1996 = vmatpush1.msra.mxu0 0.0
    %1997 = vmatprep.subr.mxu0 0.0
    %1998 = vmatpush1.msra.mxu0 0.0
    %1999 = vmatprep.subr.mxu0 0.0
    %2000 = vmatpush1.msra.mxu0 0.0
    %2001 = vmatprep.subr.mxu0 0.0
    %2002 = vmatpush1.msra.mxu0 0.0
    %2003 = vmatprep.subr.mxu0 0.0
    %2004 = vmatpush1.msra.mxu0 0.0
    %2005 = vmatprep.subr.mxu0 0.0
    %2006 = vmatpush1.msra.mxu0 0.0
    %2007 = vmatprep.subr.mxu0 0.0
    %2008 = vmatpush1.msra.mxu0 0.0
    %2009 = vmatprep.subr.mxu0 0.0
    %2010 = vmatpush1.msra.mxu0 0.0
    %2011 = vmatprep.subr.mxu0 0.0
    %2012 = vmatpush1.msra.mxu0 0.0
    %2013 = vmatprep.subr.mxu0 0.0
    %2014 = vmatpush1.msra.mxu0 0.0
    %2015 = vmatprep.subr.mxu0 0.0
    %2016 = vmatpush1.msra.mxu0 0.0
    %2017 = vmatprep.subr.mxu0 0.0
    %2018 = vmatpush1.msra.mxu0 0.0
    %2019 = vmatprep.mubr.f32.mxu0 0.0
    %2020 = vmatmul.mubr.f32.gmra.mrb[0].mxu0 %v1953
    %v2021 = vpop.f32.mrb[0].mxu0
    %v2022 = vadd.f32 %v1951, %v2021
    %v2023 = vpop.f32.mrb[0].mxu0
    %2024 = vdwg.mxu0
    %s2025 = scalar_lea.vmem %s1, 576
    %v2026 = vld [vmem:[%s2025] sm:$0xff]
    %v2027 = vld [vmem:[%s2025 + $0x8] sm:$0xff]
    %v2028 = vld [vmem:[%s2025 + $0x10] sm:$0xff]
    %v2029 = vld [vmem:[%s2025 + $0x18] sm:$0xff]
    %s2030 = scalar_lea.vmem %s2, 144
    %v2031 = vld [vmem:[%s2030] sm:$0xff]
    %2032 = vmatprep.subr.mxu0 0.0
    %2033 = vmatpush1.msra.mxu0 %v2026
    %2034 = vmatprep.subr.mxu0 0.0
    %2035 = vmatpush1.msra.mxu0 %v2027
    %2036 = vmatprep.subr.mxu0 0.0
    %2037 = vmatpush1.msra.mxu0 %v2028
    %2038 = vmatprep.subr.mxu0 0.0
    %2039 = vmatpush1.msra.mxu0 %v2029
    %2040 = vmatprep.subr.mxu0 0.0
    %2041 = vmatpush1.msra.mxu0 0.0
    %2042 = vmatprep.subr.mxu0 0.0
    %2043 = vmatpush1.msra.mxu0 0.0
    %2044 = vmatprep.subr.mxu0 0.0
    %2045 = vmatpush1.msra.mxu0 0.0
    %2046 = vmatprep.subr.mxu0 0.0
    %2047 = vmatpush1.msra.mxu0 0.0
    %2048 = vmatprep.subr.mxu0 0.0
    %2049 = vmatpush1.msra.mxu0 0.0
    %2050 = vmatprep.subr.mxu0 0.0
    %2051 = vmatpush1.msra.mxu0 0.0
    %2052 = vmatprep.subr.mxu0 0.0
    %2053 = vmatpush1.msra.mxu0 0.0
    %2054 = vmatprep.subr.mxu0 0.0
    %2055 = vmatpush1.msra.mxu0 0.0
    %2056 = vmatprep.subr.mxu0 0.0
    %2057 = vmatpush1.msra.mxu0 0.0
    %2058 = vmatprep.subr.mxu0 0.0
    %2059 = vmatpush1.msra.mxu0 0.0
    %2060 = vmatprep.subr.mxu0 0.0
    %2061 = vmatpush1.msra.mxu0 0.0
    %2062 = vmatprep.subr.mxu0 0.0
    %2063 = vmatpush1.msra.mxu0 0.0
    %2064 = vmatprep.subr.mxu0 0.0
    %2065 = vmatpush1.msra.mxu0 0.0
    %2066 = vmatprep.subr.mxu0 0.0
    %2067 = vmatpush1.msra.mxu0 0.0
    %2068 = vmatprep.subr.mxu0 0.0
    %2069 = vmatpush1.msra.mxu0 0.0
    %2070 = vmatprep.subr.mxu0 0.0
    %2071 = vmatpush1.msra.mxu0 0.0
    %2072 = vmatprep.subr.mxu0 0.0
    %2073 = vmatpush1.msra.mxu0 0.0
    %2074 = vmatprep.subr.mxu0 0.0
    %2075 = vmatpush1.msra.mxu0 0.0
    %2076 = vmatprep.subr.mxu0 0.0
    %2077 = vmatpush1.msra.mxu0 0.0
    %2078 = vmatprep.subr.mxu0 0.0
    %2079 = vmatpush1.msra.mxu0 0.0
    %2080 = vmatprep.subr.mxu0 0.0
    %2081 = vmatpush1.msra.mxu0 0.0
    %2082 = vmatprep.subr.mxu0 0.0
    %2083 = vmatpush1.msra.mxu0 0.0
    %2084 = vmatprep.subr.mxu0 0.0
    %2085 = vmatpush1.msra.mxu0 0.0
    %2086 = vmatprep.subr.mxu0 0.0
    %2087 = vmatpush1.msra.mxu0 0.0
    %2088 = vmatprep.subr.mxu0 0.0
    %2089 = vmatpush1.msra.mxu0 0.0
    %2090 = vmatprep.subr.mxu0 0.0
    %2091 = vmatpush1.msra.mxu0 0.0
    %2092 = vmatprep.subr.mxu0 0.0
    %2093 = vmatpush1.msra.mxu0 0.0
    %2094 = vmatprep.subr.mxu0 0.0
    %2095 = vmatpush1.msra.mxu0 0.0
    %2096 = vmatprep.mubr.f32.mxu0 0.0
    %2097 = vmatmul.mubr.f32.gmra.mrb[0].mxu0 %v1953
    %v2098 = vpop.f32.mrb[0].mxu0
    %v2099 = vadd.f32 %v2031, %v2098
    %v2100 = vpop.f32.mrb[0].mxu0
    %2101 = vdwg.mxu0
    %v2102 = vmul.f32 %v2099, 0.5
    %v2103 = vtanh.pop %v2102
    %v2104 = vadd.f32 %v2103, 1.0
    %v2105 = vmul.f32 %v2104, 0.5
    %v2106 = vmul.f32 %v2022, %v2105
    %s2107 = scalar_lea.vmem %s1, 608
    %v2108 = vld [vmem:[%s2107] sm:$0xff]
    %v2109 = vld [vmem:[%s2107 + $0x8] sm:$0xff]
    %v2110 = vld [vmem:[%s2107 + $0x10] sm:$0xff]
    %v2111 = vld [vmem:[%s2107 + $0x18] sm:$0xff]
    %s2112 = scalar_lea.vmem %s2, 152
    %v2113 = vld [vmem:[%s2112] sm:$0xff]
    %v2115 = vsel %vm21, %v2106, 0
    %2117 = vmatprep.subr.mxu0 0.0
    %2118 = vmatpush1.msra.mxu0 %v2108
    %2119 = vmatprep.subr.mxu0 0.0
    %2120 = vmatpush1.msra.mxu0 %v2109
    %2121 = vmatprep.subr.mxu0 0.0
    %2122 = vmatpush1.msra.mxu0 %v2110
    %2123 = vmatprep.subr.mxu0 0.0
    %2124 = vmatpush1.msra.mxu0 %v2111
    %2125 = vmatprep.subr.mxu0 0.0
    %2126 = vmatpush1.msra.mxu0 0.0
    %2127 = vmatprep.subr.mxu0 0.0
    %2128 = vmatpush1.msra.mxu0 0.0
    %2129 = vmatprep.subr.mxu0 0.0
    %2130 = vmatpush1.msra.mxu0 0.0
    %2131 = vmatprep.subr.mxu0 0.0
    %2132 = vmatpush1.msra.mxu0 0.0
    %2133 = vmatprep.subr.mxu0 0.0
    %2134 = vmatpush1.msra.mxu0 0.0
    %2135 = vmatprep.subr.mxu0 0.0
    %2136 = vmatpush1.msra.mxu0 0.0
    %2137 = vmatprep.subr.mxu0 0.0
    %2138 = vmatpush1.msra.mxu0 0.0
    %2139 = vmatprep.subr.mxu0 0.0
    %2140 = vmatpush1.msra.mxu0 0.0
    %2141 = vmatprep.subr.mxu0 0.0
    %2142 = vmatpush1.msra.mxu0 0.0
    %2143 = vmatprep.subr.mxu0 0.0
    %2144 = vmatpush1.msra.mxu0 0.0
    %2145 = vmatprep.subr.mxu0 0.0
    %2146 = vmatpush1.msra.mxu0 0.0
    %2147 = vmatprep.subr.mxu0 0.0
    %2148 = vmatpush1.msra.mxu0 0.0
    %2149 = vmatprep.subr.mxu0 0.0
    %2150 = vmatpush1.msra.mxu0 0.0
    %2151 = vmatprep.subr.mxu0 0.0
    %2152 = vmatpush1.msra.mxu0 0.0
    %2153 = vmatprep.subr.mxu0 0.0
    %2154 = vmatpush1.msra.mxu0 0.0
    %2155 = vmatprep.subr.mxu0 0.0
    %2156 = vmatpush1.msra.mxu0 0.0
    %2157 = vmatprep.subr.mxu0 0.0
    %2158 = vmatpush1.msra.mxu0 0.0
    %2159 = vmatprep.subr.mxu0 0.0
    %2160 = vmatpush1.msra.mxu0 0.0
    %2161 = vmatprep.subr.mxu0 0.0
    %2162 = vmatpush1.msra.mxu0 0.0
    %2163 = vmatprep.subr.mxu0 0.0
    %2164 = vmatpush1.msra.mxu0 0.0
    %2165 = vmatprep.subr.mxu0 0.0
    %2166 = vmatpush1.msra.mxu0 0.0
    %2167 = vmatprep.subr.mxu0 0.0
    %2168 = vmatpush1.msra.mxu0 0.0
    %2169 = vmatprep.subr.mxu0 0.0
    %2170 = vmatpush1.msra.mxu0 0.0
    %2171 = vmatprep.subr.mxu0 0.0
    %2172 = vmatpush1.msra.mxu0 0.0
    %2173 = vmatprep.subr.mxu0 0.0
    %2174 = vmatpush1.msra.mxu0 0.0
    %2175 = vmatprep.subr.mxu0 0.0
    %2176 = vmatpush1.msra.mxu0 0.0
    %2177 = vmatprep.subr.mxu0 0.0
    %2178 = vmatpush1.msra.mxu0 0.0
    %2179 = vmatprep.subr.mxu0 0.0
    %2180 = vmatpush1.msra.mxu0 0.0
    %2181 = vmatprep.mubr.f32.mxu0 0.0
    %2182 = vmatmul.mubr.f32.gmra.mrb[0].mxu0 %v2115
    %v2183 = vpop.f32.mrb[0].mxu0
    %v2184 = vadd.f32 %v2113, %v2183
    %v2185 = vpop.f32.mrb[0].mxu0
    %2186 = vdwg.mxu0
    %s2187 = scalar_lea.vmem %s1, 640
    %v2188 = vld [vmem:[%s2187] sm:$0xff]
    %v2189 = vld [vmem:[%s2187 + $0x8] sm:$0xff]
    %v2190 = vld [vmem:[%s2187 + $0x10] sm:$0xff]
    %v2191 = vld [vmem:[%s2187 + $0x18] sm:$0xff]
    %s2192 = scalar_lea.vmem %s2, 160
    %v2193 = vld [vmem:[%s2192] sm:$0xff]
    %2194 = vmatprep.subr.mxu0 0.0
    %2195 = vmatpush1.msra.mxu0 %v2188
    %2196 = vmatprep.subr.mxu0 0.0
    %2197 = vmatpush1.msra.mxu0 %v2189
    %2198 = vmatprep.subr.mxu0 0.0
    %2199 = vmatpush1.msra.mxu0 %v2190
    %2200 = vmatprep.subr.mxu0 0.0
    %2201 = vmatpush1.msra.mxu0 %v2191
    %2202 = vmatprep.subr.mxu0 0.0
    %2203 = vmatpush1.msra.mxu0 0.0
    %2204 = vmatprep.subr.mxu0 0.0
    %2205 = vmatpush1.msra.mxu0 0.0
    %2206 = vmatprep.subr.mxu0 0.0
    %2207 = vmatpush1.msra.mxu0 0.0
    %2208 = vmatprep.subr.mxu0 0.0
    %2209 = vmatpush1.msra.mxu0 0.0
    %2210 = vmatprep.subr.mxu0 0.0
    %2211 = vmatpush1.msra.mxu0 0.0
    %2212 = vmatprep.subr.mxu0 0.0
    %2213 = vmatpush1.msra.mxu0 0.0
    %2214 = vmatprep.subr.mxu0 0.0
    %2215 = vmatpush1.msra.mxu0 0.0
    %2216 = vmatprep.subr.mxu0 0.0
    %2217 = vmatpush1.msra.mxu0 0.0
    %2218 = vmatprep.subr.mxu0 0.0
    %2219 = vmatpush1.msra.mxu0 0.0
    %2220 = vmatprep.subr.mxu0 0.0
    %2221 = vmatpush1.msra.mxu0 0.0
    %2222 = vmatprep.subr.mxu0 0.0
    %2223 = vmatpush1.msra.mxu0 0.0
    %2224 = vmatprep.subr.mxu0 0.0
    %2225 = vmatpush1.msra.mxu0 0.0
    %2226 = vmatprep.subr.mxu0 0.0
    %2227 = vmatpush1.msra.mxu0 0.0
    %2228 = vmatprep.subr.mxu0 0.0
    %2229 = vmatpush1.msra.mxu0 0.0
    %2230 = vmatprep.subr.mxu0 0.0
    %2231 = vmatpush1.msra.mxu0 0.0
    %2232 = vmatprep.subr.mxu0 0.0
    %2233 = vmatpush1.msra.mxu0 0.0
    %2234 = vmatprep.subr.mxu0 0.0
    %2235 = vmatpush1.msra.mxu0 0.0
    %2236 = vmatprep.subr.mxu0 0.0
    %2237 = vmatpush1.msra.mxu0 0.0
    %2238 = vmatprep.subr.mxu0 0.0
    %2239 = vmatpush1.msra.mxu0 0.0
    %2240 = vmatprep.subr.mxu0 0.0
    %2241 = vmatpush1.msra.mxu0 0.0
    %2242 = vmatprep.subr.mxu0 0.0
    %2243 = vmatpush1.msra.mxu0 0.0
    %2244 = vmatprep.subr.mxu0 0.0
    %2245 = vmatpush1.msra.mxu0 0.0
    %2246 = vmatprep.subr.mxu0 0.0
    %2247 = vmatpush1.msra.mxu0 0.0
    %2248 = vmatprep.subr.mxu0 0.0
    %2249 = vmatpush1.msra.mxu0 0.0
    %2250 = vmatprep.subr.mxu0 0.0
    %2251 = vmatpush1.msra.mxu0 0.0
    %2252 = vmatprep.subr.mxu0 0.0
    %2253 = vmatpush1.msra.mxu0 0.0
    %2254 = vmatprep.subr.mxu0 0.0
    %2255 = vmatpush1.msra.mxu0 0.0
    %2256 = vmatprep.subr.mxu0 0.0
    %2257 = vmatpush1.msra.mxu0 0.0
    %2258 = vmatprep.mubr.f32.mxu0 0.0
    %2259 = vmatmul.mubr.f32.gmra.mrb[0].mxu0 %v2115
    %v2260 = vpop.f32.mrb[0].mxu0
    %v2261 = vadd.f32 %v2193, %v2260
    %v2262 = vpop.f32.mrb[0].mxu0
    %2263 = vdwg.mxu0
    %v2264 = vmul.f32 %v2261, 0.5
    %v2265 = vtanh.pop %v2264
    %v2266 = vadd.f32 %v2265, 1.0
    %v2267 = vmul.f32 %v2266, 0.5
    %v2268 = vmul.f32 %v2184, %v2267
    %v2269 = vadd.f32 %v2268, %v2106
    %v2270 = vmul.f32 %v2269, 0.70710677
    %s2271 = scalar_lea.vmem %s1, 672
    %v2272 = vld [vmem:[%s2271] sm:$0xff]
    %v2273 = vld [vmem:[%s2271 + $0x8] sm:$0xff]
    %v2274 = vld [vmem:[%s2271 + $0x10] sm:$0xff]
    %v2275 = vld [vmem:[%s2271 + $0x18] sm:$0xff]
    %s2276 = scalar_lea.vmem %s2, 168
    %v2277 = vld [vmem:[%s2276] sm:$0xff]
    %v2279 = vsel %vm21, %v2270, 0
    %2281 = vmatprep.subr.mxu0 0.0
    %2282 = vmatpush1.msra.mxu0 %v2272
    %2283 = vmatprep.subr.mxu0 0.0
    %2284 = vmatpush1.msra.mxu0 %v2273
    %2285 = vmatprep.subr.mxu0 0.0
    %2286 = vmatpush1.msra.mxu0 %v2274
    %2287 = vmatprep.subr.mxu0 0.0
    %2288 = vmatpush1.msra.mxu0 %v2275
    %2289 = vmatprep.subr.mxu0 0.0
    %2290 = vmatpush1.msra.mxu0 0.0
    %2291 = vmatprep.subr.mxu0 0.0
    %2292 = vmatpush1.msra.mxu0 0.0
    %2293 = vmatprep.subr.mxu0 0.0
    %2294 = vmatpush1.msra.mxu0 0.0
    %2295 = vmatprep.subr.mxu0 0.0
    %2296 = vmatpush1.msra.mxu0 0.0
    %2297 = vmatprep.subr.mxu0 0.0
    %2298 = vmatpush1.msra.mxu0 0.0
    %2299 = vmatprep.subr.mxu0 0.0
    %2300 = vmatpush1.msra.mxu0 0.0
    %2301 = vmatprep.subr.mxu0 0.0
    %2302 = vmatpush1.msra.mxu0 0.0
    %2303 = vmatprep.subr.mxu0 0.0
    %2304 = vmatpush1.msra.mxu0 0.0
    %2305 = vmatprep.subr.mxu0 0.0
    %2306 = vmatpush1.msra.mxu0 0.0
    %2307 = vmatprep.subr.mxu0 0.0
    %2308 = vmatpush1.msra.mxu0 0.0
    %2309 = vmatprep.subr.mxu0 0.0
    %2310 = vmatpush1.msra.mxu0 0.0
    %2311 = vmatprep.subr.mxu0 0.0
    %2312 = vmatpush1.msra.mxu0 0.0
    %2313 = vmatprep.subr.mxu0 0.0
    %2314 = vmatpush1.msra.mxu0 0.0
    %2315 = vmatprep.subr.mxu0 0.0
    %2316 = vmatpush1.msra.mxu0 0.0
    %2317 = vmatprep.subr.mxu0 0.0
    %2318 = vmatpush1.msra.mxu0 0.0
    %2319 = vmatprep.subr.mxu0 0.0
    %2320 = vmatpush1.msra.mxu0 0.0
    %2321 = vmatprep.subr.mxu0 0.0
    %2322 = vmatpush1.msra.mxu0 0.0
    %2323 = vmatprep.subr.mxu0 0.0
    %2324 = vmatpush1.msra.mxu0 0.0
    %2325 = vmatprep.subr.mxu0 0.0
    %2326 = vmatpush1.msra.mxu0 0.0
    %2327 = vmatprep.subr.mxu0 0.0
    %2328 = vmatpush1.msra.mxu0 0.0
    %2329 = vmatprep.subr.mxu0 0.0
    %2330 = vmatpush1.msra.mxu0 0.0
    %2331 = vmatprep.subr.mxu0 0.0
    %2332 = vmatpush1.msra.mxu0 0.0
    %2333 = vmatprep.subr.mxu0 0.0
    %2334 = vmatpush1.msra.mxu0 0.0
    %2335 = vmatprep.subr.mxu0 0.0
    %2336 = vmatpush1.msra.mxu0 0.0
    %2337 = vmatprep.subr.mxu0 0.0
    %2338 = vmatpush1.msra.mxu0 0.0
    %2339 = vmatprep.subr.mxu0 0.0
    %2340 = vmatpush1.msra.mxu0 0.0
    %2341 = vmatprep.subr.mxu0 0.0
    %2342 = vmatpush1.msra.mxu0 0.0
    %2343 = vmatprep.subr.mxu0 0.0
    %2344 = vmatpush1.msra.mxu0 0.0
    %2345 = vmatprep.mubr.f32.mxu0 0.0
    %2346 = vmatmul.mubr.f32.gmra.mrb[0].mxu0 %v2279
    %v2347 = vpop.f32.mrb[0].mxu0
    %v2348 = vadd.f32 %v2277, %v2347
    %v2349 = vpop.f32.mrb[0].mxu0
    %2350 = vdwg.mxu0
    %s2351 = scalar_lea.vmem %s1, 704
    %v2352 = vld [vmem:[%s2351] sm:$0xff]
    %v2353 = vld [vmem:[%s2351 + $0x8] sm:$0xff]
    %v2354 = vld [vmem:[%s2351 + $0x10] sm:$0xff]
    %v2355 = vld [vmem:[%s2351 + $0x18] sm:$0xff]
    %s2356 = scalar_lea.vmem %s2, 176
    %v2357 = vld [vmem:[%s2356] sm:$0xff]
    %2358 = vmatprep.subr.mxu0 0.0
    %2359 = vmatpush1.msra.mxu0 %v2352
    %2360 = vmatprep.subr.mxu0 0.0
    %2361 = vmatpush1.msra.mxu0 %v2353
    %2362 = vmatprep.subr.mxu0 0.0
    %2363 = vmatpush1.msra.mxu0 %v2354
    %2364 = vmatprep.subr.mxu0 0.0
    %2365 = vmatpush1.msra.mxu0 %v2355
    %2366 = vmatprep.subr.mxu0 0.0
    %2367 = vmatpush1.msra.mxu0 0.0
    %2368 = vmatprep.subr.mxu0 0.0
    %2369 = vmatpush1.msra.mxu0 0.0
    %2370 = vmatprep.subr.mxu0 0.0
    %2371 = vmatpush1.msra.mxu0 0.0
    %2372 = vmatprep.subr.mxu0 0.0
    %2373 = vmatpush1.msra.mxu0 0.0
    %2374 = vmatprep.subr.mxu0 0.0
    %2375 = vmatpush1.msra.mxu0 0.0
    %2376 = vmatprep.subr.mxu0 0.0
    %2377 = vmatpush1.msra.mxu0 0.0
    %2378 = vmatprep.subr.mxu0 0.0
    %2379 = vmatpush1.msra.mxu0 0.0
    %2380 = vmatprep.subr.mxu0 0.0
    %2381 = vmatpush1.msra.mxu0 0.0
    %2382 = vmatprep.subr.mxu0 0.0
    %2383 = vmatpush1.msra.mxu0 0.0
    %2384 = vmatprep.subr.mxu0 0.0
    %2385 = vmatpush1.msra.mxu0 0.0
    %2386 = vmatprep.subr.mxu0 0.0
    %2387 = vmatpush1.msra.mxu0 0.0
    %2388 = vmatprep.subr.mxu0 0.0
    %2389 = vmatpush1.msra.mxu0 0.0
    %2390 = vmatprep.subr.mxu0 0.0
    %2391 = vmatpush1.msra.mxu0 0.0
    %2392 = vmatprep.subr.mxu0 0.0
    %2393 = vmatpush1.msra.mxu0 0.0
    %2394 = vmatprep.subr.mxu0 0.0
    %2395 = vmatpush1.msra.mxu0 0.0
    %2396 = vmatprep.subr.mxu0 0.0
    %2397 = vmatpush1.msra.mxu0 0.0
    %2398 = vmatprep.subr.mxu0 0.0
    %2399 = vmatpush1.msra.mxu0 0.0
    %2400 = vmatprep.subr.mxu0 0.0
    %2401 = vmatpush1.msra.mxu0 0.0
    %2402 = vmatprep.subr.mxu0 0.0
    %2403 = vmatpush1.msra.mxu0 0.0
    %2404 = vmatprep.subr.mxu0 0.0
    %2405 = vmatpush1.msra.mxu0 0.0
    %2406 = vmatprep.subr.mxu0 0.0
    %2407 = vmatpush1.msra.mxu0 0.0
    %2408 = vmatprep.subr.mxu0 0.0
    %2409 = vmatpush1.msra.mxu0 0.0
    %2410 = vmatprep.subr.mxu0 0.0
    %2411 = vmatpush1.msra.mxu0 0.0
    %2412 = vmatprep.subr.mxu0 0.0
    %2413 = vmatpush1.msra.mxu0 0.0
    %2414 = vmatprep.subr.mxu0 0.0
    %2415 = vmatpush1.msra.mxu0 0.0
    %2416 = vmatprep.subr.mxu0 0.0
    %2417 = vmatpush1.msra.mxu0 0.0
    %2418 = vmatprep.subr.mxu0 0.0
    %2419 = vmatpush1.msra.mxu0 0.0
    %2420 = vmatprep.subr.mxu0 0.0
    %2421 = vmatpush1.msra.mxu0 0.0
    %2422 = vmatprep.mubr.f32.mxu0 0.0
    %2423 = vmatmul.mubr.f32.gmra.mrb[0].mxu0 %v2279
    %v2424 = vpop.f32.mrb[0].mxu0
    %v2425 = vadd.f32 %v2357, %v2424
    %v2426 = vpop.f32.mrb[0].mxu0
    %2427 = vdwg.mxu0
    %v2428 = vmul.f32 %v2425, 0.5
    %v2429 = vtanh.pop %v2428
    %v2430 = vadd.f32 %v2429, 1.0
    %v2431 = vmul.f32 %v2430, 0.5
    %v2432 = vmul.f32 %v2348, %v2431
    %v2433 = vadd.f32 %v2432, %v2270
    %v2434 = vmul.f32 %v2433, 0.70710677
    %s2435 = scalar_lea.vmem %s1, 736
    %v2436 = vld [vmem:[%s2435] sm:$0xff]
    %v2437 = vld [vmem:[%s2435 + $0x8] sm:$0xff]
    %v2438 = vld [vmem:[%s2435 + $0x10] sm:$0xff]
    %v2439 = vld [vmem:[%s2435 + $0x18] sm:$0xff]
    %s2440 = scalar_lea.vmem %s2, 184
    %v2441 = vld [vmem:[%s2440] sm:$0xff]
    %v2443 = vsel %vm21, %v2434, 0
    %2445 = vmatprep.subr.mxu0 0.0
    %2446 = vmatpush1.msra.mxu0 %v2436
    %2447 = vmatprep.subr.mxu0 0.0
    %2448 = vmatpush1.msra.mxu0 %v2437
    %2449 = vmatprep.subr.mxu0 0.0
    %2450 = vmatpush1.msra.mxu0 %v2438
    %2451 = vmatprep.subr.mxu0 0.0
    %2452 = vmatpush1.msra.mxu0 %v2439
    %2453 = vmatprep.subr.mxu0 0.0
    %2454 = vmatpush1.msra.mxu0 0.0
    %2455 = vmatprep.subr.mxu0 0.0
    %2456 = vmatpush1.msra.mxu0 0.0
    %2457 = vmatprep.subr.mxu0 0.0
    %2458 = vmatpush1.msra.mxu0 0.0
    %2459 = vmatprep.subr.mxu0 0.0
    %2460 = vmatpush1.msra.mxu0 0.0
    %2461 = vmatprep.subr.mxu0 0.0
    %2462 = vmatpush1.msra.mxu0 0.0
    %2463 = vmatprep.subr.mxu0 0.0
    %2464 = vmatpush1.msra.mxu0 0.0
    %2465 = vmatprep.subr.mxu0 0.0
    %2466 = vmatpush1.msra.mxu0 0.0
    %2467 = vmatprep.subr.mxu0 0.0
    %2468 = vmatpush1.msra.mxu0 0.0
    %2469 = vmatprep.subr.mxu0 0.0
    %2470 = vmatpush1.msra.mxu0 0.0
    %2471 = vmatprep.subr.mxu0 0.0
    %2472 = vmatpush1.msra.mxu0 0.0
    %2473 = vmatprep.subr.mxu0 0.0
    %2474 = vmatpush1.msra.mxu0 0.0
    %2475 = vmatprep.subr.mxu0 0.0
    %2476 = vmatpush1.msra.mxu0 0.0
    %2477 = vmatprep.subr.mxu0 0.0
    %2478 = vmatpush1.msra.mxu0 0.0
    %2479 = vmatprep.subr.mxu0 0.0
    %2480 = vmatpush1.msra.mxu0 0.0
    %2481 = vmatprep.subr.mxu0 0.0
    %2482 = vmatpush1.msra.mxu0 0.0
    %2483 = vmatprep.subr.mxu0 0.0
    %2484 = vmatpush1.msra.mxu0 0.0
    %2485 = vmatprep.subr.mxu0 0.0
    %2486 = vmatpush1.msra.mxu0 0.0
    %2487 = vmatprep.subr.mxu0 0.0
    %2488 = vmatpush1.msra.mxu0 0.0
    %2489 = vmatprep.subr.mxu0 0.0
    %2490 = vmatpush1.msra.mxu0 0.0
    %2491 = vmatprep.subr.mxu0 0.0
    %2492 = vmatpush1.msra.mxu0 0.0
    %2493 = vmatprep.subr.mxu0 0.0
    %2494 = vmatpush1.msra.mxu0 0.0
    %2495 = vmatprep.subr.mxu0 0.0
    %2496 = vmatpush1.msra.mxu0 0.0
    %2497 = vmatprep.subr.mxu0 0.0
    %2498 = vmatpush1.msra.mxu0 0.0
    %2499 = vmatprep.subr.mxu0 0.0
    %2500 = vmatpush1.msra.mxu0 0.0
    %2501 = vmatprep.subr.mxu0 0.0
    %2502 = vmatpush1.msra.mxu0 0.0
    %2503 = vmatprep.subr.mxu0 0.0
    %2504 = vmatpush1.msra.mxu0 0.0
    %2505 = vmatprep.subr.mxu0 0.0
    %2506 = vmatpush1.msra.mxu0 0.0
    %2507 = vmatprep.subr.mxu0 0.0
    %2508 = vmatpush1.msra.mxu0 0.0
    %2509 = vmatprep.mubr.f32.mxu0 0.0
    %2510 = vmatmul.mubr.f32.gmra.mrb[0].mxu0 %v2443
    %v2511 = vpop.f32.mrb[0].mxu0
    %v2512 = vadd.f32 %v2441, %v2511
    %v2513 = vpop.f32.mrb[0].mxu0
    %2514 = vdwg.mxu0
    %s2515 = scalar_lea.vmem %s1, 768
    %v2516 = vld [vmem:[%s2515] sm:$0xff]
    %v2517 = vld [vmem:[%s2515 + $0x8] sm:$0xff]
    %v2518 = vld [vmem:[%s2515 + $0x10] sm:$0xff]
    %v2519 = vld [vmem:[%s2515 + $0x18] sm:$0xff]
    %s2520 = scalar_lea.vmem %s2, 192
    %v2521 = vld [vmem:[%s2520] sm:$0xff]
    %2522 = vmatprep.subr.mxu0 0.0
    %2523 = vmatpush1.msra.mxu0 %v2516
    %2524 = vmatprep.subr.mxu0 0.0
    %2525 = vmatpush1.msra.mxu0 %v2517
    %2526 = vmatprep.subr.mxu0 0.0
    %2527 = vmatpush1.msra.mxu0 %v2518
    %2528 = vmatprep.subr.mxu0 0.0
    %2529 = vmatpush1.msra.mxu0 %v2519
    %2530 = vmatprep.subr.mxu0 0.0
    %2531 = vmatpush1.msra.mxu0 0.0
    %2532 = vmatprep.subr.mxu0 0.0
    %2533 = vmatpush1.msra.mxu0 0.0
    %2534 = vmatprep.subr.mxu0 0.0
    %2535 = vmatpush1.msra.mxu0 0.0
    %2536 = vmatprep.subr.mxu0 0.0
    %2537 = vmatpush1.msra.mxu0 0.0
    %2538 = vmatprep.subr.mxu0 0.0
    %2539 = vmatpush1.msra.mxu0 0.0
    %2540 = vmatprep.subr.mxu0 0.0
    %2541 = vmatpush1.msra.mxu0 0.0
    %2542 = vmatprep.subr.mxu0 0.0
    %2543 = vmatpush1.msra.mxu0 0.0
    %2544 = vmatprep.subr.mxu0 0.0
    %2545 = vmatpush1.msra.mxu0 0.0
    %2546 = vmatprep.subr.mxu0 0.0
    %2547 = vmatpush1.msra.mxu0 0.0
    %2548 = vmatprep.subr.mxu0 0.0
    %2549 = vmatpush1.msra.mxu0 0.0
    %2550 = vmatprep.subr.mxu0 0.0
    %2551 = vmatpush1.msra.mxu0 0.0
    %2552 = vmatprep.subr.mxu0 0.0
    %2553 = vmatpush1.msra.mxu0 0.0
    %2554 = vmatprep.subr.mxu0 0.0
    %2555 = vmatpush1.msra.mxu0 0.0
    %2556 = vmatprep.subr.mxu0 0.0
    %2557 = vmatpush1.msra.mxu0 0.0
    %2558 = vmatprep.subr.mxu0 0.0
    %2559 = vmatpush1.msra.mxu0 0.0
    %2560 = vmatprep.subr.mxu0 0.0
    %2561 = vmatpush1.msra.mxu0 0.0
    %2562 = vmatprep.subr.mxu0 0.0
    %2563 = vmatpush1.msra.mxu0 0.0
    %2564 = vmatprep.subr.mxu0 0.0
    %2565 = vmatpush1.msra.mxu0 0.0
    %2566 = vmatprep.subr.mxu0 0.0
    %2567 = vmatpush1.msra.mxu0 0.0
    %2568 = vmatprep.subr.mxu0 0.0
    %2569 = vmatpush1.msra.mxu0 0.0
    %2570 = vmatprep.subr.mxu0 0.0
    %2571 = vmatpush1.msra.mxu0 0.0
    %2572 = vmatprep.subr.mxu0 0.0
    %2573 = vmatpush1.msra.mxu0 0.0
    %2574 = vmatprep.subr.mxu0 0.0
    %2575 = vmatpush1.msra.mxu0 0.0
    %2576 = vmatprep.subr.mxu0 0.0
    %2577 = vmatpush1.msra.mxu0 0.0
    %2578 = vmatprep.subr.mxu0 0.0
    %2579 = vmatpush1.msra.mxu0 0.0
    %2580 = vmatprep.subr.mxu0 0.0
    %2581 = vmatpush1.msra.mxu0 0.0
    %2582 = vmatprep.subr.mxu0 0.0
    %2583 = vmatpush1.msra.mxu0 0.0
    %2584 = vmatprep.subr.mxu0 0.0
    %2585 = vmatpush1.msra.mxu0 0.0
    %2586 = vmatprep.mubr.f32.mxu0 0.0
    %2587 = vmatmul.mubr.f32.gmra.mrb[0].mxu0 %v2443
    %v2588 = vpop.f32.mrb[0].mxu0
    %v2589 = vadd.f32 %v2521, %v2588
    %v2590 = vpop.f32.mrb[0].mxu0
    %2591 = vdwg.mxu0
    %v2592 = vmul.f32 %v2589, 0.5
    %v2593 = vtanh.pop %v2592
    %v2594 = vadd.f32 %v2593, 1.0
    %v2595 = vmul.f32 %v2594, 0.5
    %v2596 = vmul.f32 %v2512, %v2595
    %v2597 = vadd.f32 %v2596, %v2434
    %v2598 = vmul.f32 %v2597, 0.70710677
    %v2599 = vmax.f32 %v2598, 0.0
    %v2600 = vadd.f32 %v1673, %v2599
    %s2601 = scalar_lea.vmem %s1, 1120
    %v2602 = vld [vmem:[%s2601] sm:$0xff]
    %v2603 = vld [vmem:[%s2601 + $0x8] sm:$0xff]
    %v2604 = vld [vmem:[%s2601 + $0x10] sm:$0xff]
    %v2605 = vld [vmem:[%s2601 + $0x18] sm:$0xff]
    %s2606 = scalar_lea.vmem %s2, 280
    %v2607 = vld [vmem:[%s2606] sm:$0xff]
    %v2609 = vsel %vm21, %v2598, 0
    %2611 = vmatprep.subr.mxu0 0.0
    %2612 = vmatpush1.msra.mxu0 %v2602
    %2613 = vmatprep.subr.mxu0 0.0
    %2614 = vmatpush1.msra.mxu0 %v2603
    %2615 = vmatprep.subr.mxu0 0.0
    %2616 = vmatpush1.msra.mxu0 %v2604
    %2617 = vmatprep.subr.mxu0 0.0
    %2618 = vmatpush1.msra.mxu0 %v2605
    %2619 = vmatprep.subr.mxu0 0.0
    %2620 = vmatpush1.msra.mxu0 0.0
    %2621 = vmatprep.subr.mxu0 0.0
    %2622 = vmatpush1.msra.mxu0 0.0
    %2623 = vmatprep.subr.mxu0 0.0
    %2624 = vmatpush1.msra.mxu0 0.0
    %2625 = vmatprep.subr.mxu0 0.0
    %2626 = vmatpush1.msra.mxu0 0.0
    %2627 = vmatprep.subr.mxu0 0.0
    %2628 = vmatpush1.msra.mxu0 0.0
    %2629 = vmatprep.subr.mxu0 0.0
    %2630 = vmatpush1.msra.mxu0 0.0
    %2631 = vmatprep.subr.mxu0 0.0
    %2632 = vmatpush1.msra.mxu0 0.0
    %2633 = vmatprep.subr.mxu0 0.0
    %2634 = vmatpush1.msra.mxu0 0.0
    %2635 = vmatprep.subr.mxu0 0.0
    %2636 = vmatpush1.msra.mxu0 0.0
    %2637 = vmatprep.subr.mxu0 0.0
    %2638 = vmatpush1.msra.mxu0 0.0
    %2639 = vmatprep.subr.mxu0 0.0
    %2640 = vmatpush1.msra.mxu0 0.0
    %2641 = vmatprep.subr.mxu0 0.0
    %2642 = vmatpush1.msra.mxu0 0.0
    %2643 = vmatprep.subr.mxu0 0.0
    %2644 = vmatpush1.msra.mxu0 0.0
    %2645 = vmatprep.subr.mxu0 0.0
    %2646 = vmatpush1.msra.mxu0 0.0
    %2647 = vmatprep.subr.mxu0 0.0
    %2648 = vmatpush1.msra.mxu0 0.0
    %2649 = vmatprep.subr.mxu0 0.0
    %2650 = vmatpush1.msra.mxu0 0.0
    %2651 = vmatprep.subr.mxu0 0.0
    %2652 = vmatpush1.msra.mxu0 0.0
    %2653 = vmatprep.subr.mxu0 0.0
    %2654 = vmatpush1.msra.mxu0 0.0
    %2655 = vmatprep.subr.mxu0 0.0
    %2656 = vmatpush1.msra.mxu0 0.0
    %2657 = vmatprep.subr.mxu0 0.0
    %2658 = vmatpush1.msra.mxu0 0.0
    %2659 = vmatprep.subr.mxu0 0.0
    %2660 = vmatpush1.msra.mxu0 0.0
    %2661 = vmatprep.subr.mxu0 0.0
    %2662 = vmatpush1.msra.mxu0 0.0
    %2663 = vmatprep.subr.mxu0 0.0
    %2664 = vmatpush1.msra.mxu0 0.0
    %2665 = vmatprep.subr.mxu0 0.0
    %2666 = vmatpush1.msra.mxu0 0.0
    %2667 = vmatprep.subr.mxu0 0.0
    %2668 = vmatpush1.msra.mxu0 0.0
    %2669 = vmatprep.subr.mxu0 0.0
    %2670 = vmatpush1.msra.mxu0 0.0
    %2671 = vmatprep.subr.mxu0 0.0
    %2672 = vmatpush1.msra.mxu0 0.0
    %2673 = vmatprep.subr.mxu0 0.0
    %2674 = vmatpush1.msra.mxu0 0.0
    %2675 = vmatprep.mubr.f32.mxu0 0.0
    %2676 = vmatmul.mubr.f32.gmra.mrb[0].mxu0 %v2609
    %v2677 = vpop.f32.mrb[0].mxu0
    %v2678 = vadd.f32 %v2607, %v2677
    %v2679 = vpop.f32.mrb[0].mxu0
    %2680 = vdwg.mxu0
    %v2681 = vmul.f32 %v2678, %v1943
    %v2682 = vsel %vm21, %v2681, -inf
    %2683 = vmax.xlane.f32.xlu0 %v2682
    %v2684 = vpop.xlane.xlu0 %2683
    %v2685 = vsub.f32 %v2684, 1.0
    %v2686 = vadd.f32 %v2685, 0.5
    %v2687 = vsub.f32 %v2681, %v2686
    %v2688 = vmax.f32 %v2687, 0.0
    %v2689 = vsel %vm21, %v2688, 0.0
    %2690 = vadd.xlane.f32.xlu0 %v2689
    %v2691 = vpop.xlane.xlu0 %2690
    %vm2692 = vcmp.gt.f32.partialorder %v2691, 1.0
    %v2693 = vsel %vm2692, 0.5, 0.0
    %v2694 = vadd.f32 %v2685, %v2693
    %v2695 = vadd.f32 %v2694, 0.25
    %v2696 = vsub.f32 %v2681, %v2695
    %v2697 = vmax.f32 %v2696, 0.0
    %v2698 = vsel %vm21, %v2697, 0.0
    %2699 = vadd.xlane.f32.xlu0 %v2698
    %v2700 = vpop.xlane.xlu0 %2699
    %vm2701 = vcmp.gt.f32.partialorder %v2700, 1.0
    %v2702 = vsel %vm2701, 0.25, 0.0
    %v2703 = vadd.f32 %v2694, %v2702
    %v2704 = vadd.f32 %v2703, 0.125
    %v2705 = vsub.f32 %v2681, %v2704
    %v2706 = vmax.f32 %v2705, 0.0
    %v2707 = vsel %vm21, %v2706, 0.0
    %2708 = vadd.xlane.f32.xlu0 %v2707
    %v2709 = vpop.xlane.xlu0 %2708
    %vm2710 = vcmp.gt.f32.partialorder %v2709, 1.0
    %v2711 = vsel %vm2710, 0.125, 0.0
    %v2712 = vadd.f32 %v2703, %v2711
    %v2713 = vadd.f32 %v2712, 0.0625
    %v2714 = vsub.f32 %v2681, %v2713
    %v2715 = vmax.f32 %v2714, 0.0
    %v2716 = vsel %vm21, %v2715, 0.0
    %2717 = vadd.xlane.f32.xlu0 %v2716
    %v2718 = vpop.xlane.xlu0 %2717
    %vm2719 = vcmp.gt.f32.partialorder %v2718, 1.0
    %v2720 = vsel %vm2719, 0.0625, 0.0
    %v2721 = vadd.f32 %v2712, %v2720
    %v2722 = vadd.f32 %v2721, 0.03125
    %v2723 = vsub.f32 %v2681, %v2722
    %v2724 = vmax.f32 %v2723, 0.0
    %v2725 = vsel %vm21, %v2724, 0.0
    %2726 = vadd.xlane.f32.xlu0 %v2725
    %v2727 = vpop.xlane.xlu0 %2726
    %vm2728 = vcmp.gt.f32.partialorder %v2727, 1.0
    %v2729 = vsel %vm2728, 0.03125, 0.0
    %v2730 = vadd.f32 %v2721, %v2729
    %v2731 = vadd.f32 %v2730, 0.015625
    %v2732 = vsub.f32 %v2681, %v2731
    %v2733 = vmax.f32 %v2732, 0.0
    %v2734 = vsel %vm21, %v2733, 0.0
    %2735 = vadd.xlane.f32.xlu0 %v2734
    %v2736 = vpop.xlane.xlu0 %2735
    %vm2737 = vcmp.gt.f32.partialorder %v2736, 1.0
    %v2738 = vsel %vm2737, 0.015625, 0.0
    %v2739 = vadd.f32 %v2730, %v2738
    %v2740 = vadd.f32 %v2739, 0.0078125
    %v2741 = vsub.f32 %v2681, %v2740
    %v2742 = vmax.f32 %v2741, 0.0
    %v2743 = vsel %vm21, %v2742, 0.0
    %2744 = vadd.xlane.f32.xlu0 %v2743
    %v2745 = vpop.xlane.xlu0 %2744
    %vm2746 = vcmp.gt.f32.partialorder %v2745, 1.0
    %v2747 = vsel %vm2746, 0.0078125, 0.0
    %v2748 = vadd.f32 %v2739, %v2747
    %v2749 = vadd.f32 %v2748, 0.00390625
    %v2750 = vsub.f32 %v2681, %v2749
    %v2751 = vmax.f32 %v2750, 0.0
    %v2752 = vsel %vm21, %v2751, 0.0
    %2753 = vadd.xlane.f32.xlu0 %v2752
    %v2754 = vpop.xlane.xlu0 %2753
    %vm2755 = vcmp.gt.f32.partialorder %v2754, 1.0
    %v2756 = vsel %vm2755, 0.00390625, 0.0
    %v2757 = vadd.f32 %v2748, %v2756
    %v2758 = vadd.f32 %v2757, 0.001953125
    %v2759 = vsub.f32 %v2681, %v2758
    %v2760 = vmax.f32 %v2759, 0.0
    %v2761 = vsel %vm21, %v2760, 0.0
    %2762 = vadd.xlane.f32.xlu0 %v2761
    %v2763 = vpop.xlane.xlu0 %2762
    %vm2764 = vcmp.gt.f32.partialorder %v2763, 1.0
    %v2765 = vsel %vm2764, 0.001953125, 0.0
    %v2766 = vadd.f32 %v2757, %v2765
    %v2767 = vadd.f32 %v2766, 0.0009765625
    %v2768 = vsub.f32 %v2681, %v2767
    %v2769 = vmax.f32 %v2768, 0.0
    %v2770 = vsel %vm21, %v2769, 0.0
    %2771 = vadd.xlane.f32.xlu0 %v2770
    %v2772 = vpop.xlane.xlu0 %2771
    %vm2773 = vcmp.gt.f32.partialorder %v2772, 1.0
    %v2774 = vsel %vm2773, 0.0009765625, 0.0
    %v2775 = vadd.f32 %v2766, %v2774
    %v2776 = vadd.f32 %v2775, 0.00048828125
    %v2777 = vsub.f32 %v2681, %v2776
    %v2778 = vmax.f32 %v2777, 0.0
    %v2779 = vsel %vm21, %v2778, 0.0
    %2780 = vadd.xlane.f32.xlu0 %v2779
    %v2781 = vpop.xlane.xlu0 %2780
    %vm2782 = vcmp.gt.f32.partialorder %v2781, 1.0
    %v2783 = vsel %vm2782, 0.00048828125, 0.0
    %v2784 = vadd.f32 %v2775, %v2783
    %v2785 = vadd.f32 %v2784, 0.00024414063
    %v2786 = vsub.f32 %v2681, %v2785
    %v2787 = vmax.f32 %v2786, 0.0
    %v2788 = vsel %vm21, %v2787, 0.0
    %2789 = vadd.xlane.f32.xlu0 %v2788
    %v2790 = vpop.xlane.xlu0 %2789
    %vm2791 = vcmp.gt.f32.partialorder %v2790, 1.0
    %v2792 = vsel %vm2791, 0.00024414063, 0.0
    %v2793 = vadd.f32 %v2784, %v2792
    %v2794 = vadd.f32 %v2793, 0.00012207031
    %v2795 = vsub.f32 %v2681, %v2794
    %v2796 = vmax.f32 %v2795, 0.0
    %v2797 = vsel %vm21, %v2796, 0.0
    %2798 = vadd.xlane.f32.xlu0 %v2797
    %v2799 = vpop.xlane.xlu0 %2798
    %vm2800 = vcmp.gt.f32.partialorder %v2799, 1.0
    %v2801 = vsel %vm2800, 0.00012207031, 0.0
    %v2802 = vadd.f32 %v2793, %v2801
    %v2803 = vadd.f32 %v2802, 6.1035156e-05
    %v2804 = vsub.f32 %v2681, %v2803
    %v2805 = vmax.f32 %v2804, 0.0
    %v2806 = vsel %vm21, %v2805, 0.0
    %2807 = vadd.xlane.f32.xlu0 %v2806
    %v2808 = vpop.xlane.xlu0 %2807
    %vm2809 = vcmp.gt.f32.partialorder %v2808, 1.0
    %v2810 = vsel %vm2809, 6.1035156e-05, 0.0
    %v2811 = vadd.f32 %v2802, %v2810
    %v2812 = vadd.f32 %v2811, 3.0517578e-05
    %v2813 = vsub.f32 %v2681, %v2812
    %v2814 = vmax.f32 %v2813, 0.0
    %v2815 = vsel %vm21, %v2814, 0.0
    %2816 = vadd.xlane.f32.xlu0 %v2815
    %v2817 = vpop.xlane.xlu0 %2816
    %vm2818 = vcmp.gt.f32.partialorder %v2817, 1.0
    %v2819 = vsel %vm2818, 3.0517578e-05, 0.0
    %v2820 = vadd.f32 %v2811, %v2819
    %v2821 = vadd.f32 %v2820, 1.5258789e-05
    %v2822 = vsub.f32 %v2681, %v2821
    %v2823 = vmax.f32 %v2822, 0.0
    %v2824 = vsel %vm21, %v2823, 0.0
    %2825 = vadd.xlane.f32.xlu0 %v2824
    %v2826 = vpop.xlane.xlu0 %2825
    %vm2827 = vcmp.gt.f32.partialorder %v2826, 1.0
    %v2828 = vsel %vm2827, 1.5258789e-05, 0.0
    %v2829 = vadd.f32 %v2820, %v2828
    %v2830 = vadd.f32 %v2829, 7.6293945e-06
    %v2831 = vsub.f32 %v2681, %v2830
    %v2832 = vmax.f32 %v2831, 0.0
    %v2833 = vsel %vm21, %v2832, 0.0
    %2834 = vadd.xlane.f32.xlu0 %v2833
    %v2835 = vpop.xlane.xlu0 %2834
    %vm2836 = vcmp.gt.f32.partialorder %v2835, 1.0
    %v2837 = vsel %vm2836, 7.6293945e-06, 0.0
    %v2838 = vadd.f32 %v2829, %v2837
    %v2839 = vadd.f32 %v2838, 3.8146973e-06
    %v2840 = vsub.f32 %v2681, %v2839
    %v2841 = vmax.f32 %v2840, 0.0
    %v2842 = vsel %vm21, %v2841, 0.0
    %2843 = vadd.xlane.f32.xlu0 %v2842
    %v2844 = vpop.xlane.xlu0 %2843
    %vm2845 = vcmp.gt.f32.partialorder %v2844, 1.0
    %v2846 = vsel %vm2845, 3.8146973e-06, 0.0
    %v2847 = vadd.f32 %v2838, %v2846
    %v2848 = vadd.f32 %v2847, 1.9073486e-06
    %v2849 = vsub.f32 %v2681, %v2848
    %v2850 = vmax.f32 %v2849, 0.0
    %v2851 = vsel %vm21, %v2850, 0.0
    %2852 = vadd.xlane.f32.xlu0 %v2851
    %v2853 = vpop.xlane.xlu0 %2852
    %vm2854 = vcmp.gt.f32.partialorder %v2853, 1.0
    %v2855 = vsel %vm2854, 1.9073486e-06, 0.0
    %v2856 = vadd.f32 %v2847, %v2855
    %v2857 = vadd.f32 %v2856, 9.536743e-07
    %v2858 = vsub.f32 %v2681, %v2857
    %v2859 = vmax.f32 %v2858, 0.0
    %v2860 = vsel %vm21, %v2859, 0.0
    %2861 = vadd.xlane.f32.xlu0 %v2860
    %v2862 = vpop.xlane.xlu0 %2861
    %vm2863 = vcmp.gt.f32.partialorder %v2862, 1.0
    %v2864 = vsel %vm2863, 9.536743e-07, 0.0
    %v2865 = vadd.f32 %v2856, %v2864
    %v2866 = vadd.f32 %v2865, 4.7683716e-07
    %v2867 = vsub.f32 %v2681, %v2866
    %v2868 = vmax.f32 %v2867, 0.0
    %v2869 = vmul.f32 %v2868, %v92
    %s2870 = scalar_lea.vmem %s1, 800
    %v2871 = vld [vmem:[%s2870] sm:$0xff]
    %v2872 = vld [vmem:[%s2870 + $0x8] sm:$0xff]
    %v2873 = vld [vmem:[%s2870 + $0x10] sm:$0xff]
    %v2874 = vld [vmem:[%s2870 + $0x18] sm:$0xff]
    %s2875 = scalar_lea.vmem %s2, 200
    %v2876 = vld [vmem:[%s2875] sm:$0xff]
    %v2878 = vsel %vm21, %v2869, 0
    %2880 = vmatprep.subr.mxu0 0.0
    %2881 = vmatpush1.msra.mxu0 %v2871
    %2882 = vmatprep.subr.mxu0 0.0
    %2883 = vmatpush1.msra.mxu0 %v2872
    %2884 = vmatprep.subr.mxu0 0.0
    %2885 = vmatpush1.msra.mxu0 %v2873
    %2886 = vmatprep.subr.mxu0 0.0
    %2887 = vmatpush1.msra.mxu0 %v2874
    %2888 = vmatprep.subr.mxu0 0.0
    %2889 = vmatpush1.msra.mxu0 0.0
    %2890 = vmatprep.subr.mxu0 0.0
    %2891 = vmatpush1.msra.mxu0 0.0
    %2892 = vmatprep.subr.mxu0 0.0
    %2893 = vmatpush1.msra.mxu0 0.0
    %2894 = vmatprep.subr.mxu0 0.0
    %2895 = vmatpush1.msra.mxu0 0.0
    %2896 = vmatprep.subr.mxu0 0.0
    %2897 = vmatpush1.msra.mxu0 0.0
    %2898 = vmatprep.subr.mxu0 0.0
    %2899 = vmatpush1.msra.mxu0 0.0
    %2900 = vmatprep.subr.mxu0 0.0
    %2901 = vmatpush1.msra.mxu0 0.0
    %2902 = vmatprep.subr.mxu0 0.0
    %2903 = vmatpush1.msra.mxu0 0.0
    %2904 = vmatprep.subr.mxu0 0.0
    %2905 = vmatpush1.msra.mxu0 0.0
    %2906 = vmatprep.subr.mxu0 0.0
    %2907 = vmatpush1.msra.mxu0 0.0
    %2908 = vmatprep.subr.mxu0 0.0
    %2909 = vmatpush1.msra.mxu0 0.0
    %2910 = vmatprep.subr.mxu0 0.0
    %2911 = vmatpush1.msra.mxu0 0.0
    %2912 = vmatprep.subr.mxu0 0.0
    %2913 = vmatpush1.msra.mxu0 0.0
    %2914 = vmatprep.subr.mxu0 0.0
    %2915 = vmatpush1.msra.mxu0 0.0
    %2916 = vmatprep.subr.mxu0 0.0
    %2917 = vmatpush1.msra.mxu0 0.0
    %2918 = vmatprep.subr.mxu0 0.0
    %2919 = vmatpush1.msra.mxu0 0.0
    %2920 = vmatprep.subr.mxu0 0.0
    %2921 = vmatpush1.msra.mxu0 0.0
    %2922 = vmatprep.subr.mxu0 0.0
    %2923 = vmatpush1.msra.mxu0 0.0
    %2924 = vmatprep.subr.mxu0 0.0
    %2925 = vmatpush1.msra.mxu0 0.0
    %2926 = vmatprep.subr.mxu0 0.0
    %2927 = vmatpush1.msra.mxu0 0.0
    %2928 = vmatprep.subr.mxu0 0.0
    %2929 = vmatpush1.msra.mxu0 0.0
    %2930 = vmatprep.subr.mxu0 0.0
    %2931 = vmatpush1.msra.mxu0 0.0
    %2932 = vmatprep.subr.mxu0 0.0
    %2933 = vmatpush1.msra.mxu0 0.0
    %2934 = vmatprep.subr.mxu0 0.0
    %2935 = vmatpush1.msra.mxu0 0.0
    %2936 = vmatprep.subr.mxu0 0.0
    %2937 = vmatpush1.msra.mxu0 0.0
    %2938 = vmatprep.subr.mxu0 0.0
    %2939 = vmatpush1.msra.mxu0 0.0
    %2940 = vmatprep.subr.mxu0 0.0
    %2941 = vmatpush1.msra.mxu0 0.0
    %2942 = vmatprep.subr.mxu0 0.0
    %2943 = vmatpush1.msra.mxu0 0.0
    %2944 = vmatprep.mubr.f32.mxu0 0.0
    %2945 = vmatmul.mubr.f32.gmra.mrb[0].mxu0 %v2878
    %v2946 = vpop.f32.mrb[0].mxu0
    %v2947 = vadd.f32 %v2876, %v2946
    %v2948 = vpop.f32.mrb[0].mxu0
    %2949 = vdwg.mxu0
    %s2950 = scalar_lea.vmem %s1, 832
    %v2951 = vld [vmem:[%s2950] sm:$0xff]
    %v2952 = vld [vmem:[%s2950 + $0x8] sm:$0xff]
    %v2953 = vld [vmem:[%s2950 + $0x10] sm:$0xff]
    %v2954 = vld [vmem:[%s2950 + $0x18] sm:$0xff]
    %s2955 = scalar_lea.vmem %s2, 208
    %v2956 = vld [vmem:[%s2955] sm:$0xff]
    %2957 = vmatprep.subr.mxu0 0.0
    %2958 = vmatpush1.msra.mxu0 %v2951
    %2959 = vmatprep.subr.mxu0 0.0
    %2960 = vmatpush1.msra.mxu0 %v2952
    %2961 = vmatprep.subr.mxu0 0.0
    %2962 = vmatpush1.msra.mxu0 %v2953
    %2963 = vmatprep.subr.mxu0 0.0
    %2964 = vmatpush1.msra.mxu0 %v2954
    %2965 = vmatprep.subr.mxu0 0.0
    %2966 = vmatpush1.msra.mxu0 0.0
    %2967 = vmatprep.subr.mxu0 0.0
    %2968 = vmatpush1.msra.mxu0 0.0
    %2969 = vmatprep.subr.mxu0 0.0
    %2970 = vmatpush1.msra.mxu0 0.0
    %2971 = vmatprep.subr.mxu0 0.0
    %2972 = vmatpush1.msra.mxu0 0.0
    %2973 = vmatprep.subr.mxu0 0.0
    %2974 = vmatpush1.msra.mxu0 0.0
    %2975 = vmatprep.subr.mxu0 0.0
    %2976 = vmatpush1.msra.mxu0 0.0
    %2977 = vmatprep.subr.mxu0 0.0
    %2978 = vmatpush1.msra.mxu0 0.0
    %2979 = vmatprep.subr.mxu0 0.0
    %2980 = vmatpush1.msra.mxu0 0.0
    %2981 = vmatprep.subr.mxu0 0.0
    %2982 = vmatpush1.msra.mxu0 0.0
    %2983 = vmatprep.subr.mxu0 0.0
    %2984 = vmatpush1.msra.mxu0 0.0
    %2985 = vmatprep.subr.mxu0 0.0
    %2986 = vmatpush1.msra.mxu0 0.0
    %2987 = vmatprep.subr.mxu0 0.0
    %2988 = vmatpush1.msra.mxu0 0.0
    %2989 = vmatprep.subr.mxu0 0.0
    %2990 = vmatpush1.msra.mxu0 0.0
    %2991 = vmatprep.subr.mxu0 0.0
    %2992 = vmatpush1.msra.mxu0 0.0
    %2993 = vmatprep.subr.mxu0 0.0
    %2994 = vmatpush1.msra.mxu0 0.0
    %2995 = vmatprep.subr.mxu0 0.0
    %2996 = vmatpush1.msra.mxu0 0.0
    %2997 = vmatprep.subr.mxu0 0.0
    %2998 = vmatpush1.msra.mxu0 0.0
    %2999 = vmatprep.subr.mxu0 0.0
    %3000 = vmatpush1.msra.mxu0 0.0
    %3001 = vmatprep.subr.mxu0 0.0
    %3002 = vmatpush1.msra.mxu0 0.0
    %3003 = vmatprep.subr.mxu0 0.0
    %3004 = vmatpush1.msra.mxu0 0.0
    %3005 = vmatprep.subr.mxu0 0.0
    %3006 = vmatpush1.msra.mxu0 0.0
    %3007 = vmatprep.subr.mxu0 0.0
    %3008 = vmatpush1.msra.mxu0 0.0
    %3009 = vmatprep.subr.mxu0 0.0
    %3010 = vmatpush1.msra.mxu0 0.0
    %3011 = vmatprep.subr.mxu0 0.0
    %3012 = vmatpush1.msra.mxu0 0.0
    %3013 = vmatprep.subr.mxu0 0.0
    %3014 = vmatpush1.msra.mxu0 0.0
    %3015 = vmatprep.subr.mxu0 0.0
    %3016 = vmatpush1.msra.mxu0 0.0
    %3017 = vmatprep.subr.mxu0 0.0
    %3018 = vmatpush1.msra.mxu0 0.0
    %3019 = vmatprep.subr.mxu0 0.0
    %3020 = vmatpush1.msra.mxu0 0.0
    %3021 = vmatprep.mubr.f32.mxu0 0.0
    %3022 = vmatmul.mubr.f32.gmra.mrb[0].mxu0 %v2878
    %v3023 = vpop.f32.mrb[0].mxu0
    %v3024 = vadd.f32 %v2956, %v3023
    %v3025 = vpop.f32.mrb[0].mxu0
    %3026 = vdwg.mxu0
    %v3027 = vmul.f32 %v3024, 0.5
    %v3028 = vtanh.pop %v3027
    %v3029 = vadd.f32 %v3028, 1.0
    %v3030 = vmul.f32 %v3029, 0.5
    %v3031 = vmul.f32 %v2947, %v3030
    %s3032 = scalar_lea.vmem %s1, 864
    %v3033 = vld [vmem:[%s3032] sm:$0xff]
    %v3034 = vld [vmem:[%s3032 + $0x8] sm:$0xff]
    %v3035 = vld [vmem:[%s3032 + $0x10] sm:$0xff]
    %v3036 = vld [vmem:[%s3032 + $0x18] sm:$0xff]
    %s3037 = scalar_lea.vmem %s2, 216
    %v3038 = vld [vmem:[%s3037] sm:$0xff]
    %v3040 = vsel %vm21, %v3031, 0
    %3042 = vmatprep.subr.mxu0 0.0
    %3043 = vmatpush1.msra.mxu0 %v3033
    %3044 = vmatprep.subr.mxu0 0.0
    %3045 = vmatpush1.msra.mxu0 %v3034
    %3046 = vmatprep.subr.mxu0 0.0
    %3047 = vmatpush1.msra.mxu0 %v3035
    %3048 = vmatprep.subr.mxu0 0.0
    %3049 = vmatpush1.msra.mxu0 %v3036
    %3050 = vmatprep.subr.mxu0 0.0
    %3051 = vmatpush1.msra.mxu0 0.0
    %3052 = vmatprep.subr.mxu0 0.0
    %3053 = vmatpush1.msra.mxu0 0.0
    %3054 = vmatprep.subr.mxu0 0.0
    %3055 = vmatpush1.msra.mxu0 0.0
    %3056 = vmatprep.subr.mxu0 0.0
    %3057 = vmatpush1.msra.mxu0 0.0
    %3058 = vmatprep.subr.mxu0 0.0
    %3059 = vmatpush1.msra.mxu0 0.0
    %3060 = vmatprep.subr.mxu0 0.0
    %3061 = vmatpush1.msra.mxu0 0.0
    %3062 = vmatprep.subr.mxu0 0.0
    %3063 = vmatpush1.msra.mxu0 0.0
    %3064 = vmatprep.subr.mxu0 0.0
    %3065 = vmatpush1.msra.mxu0 0.0
    %3066 = vmatprep.subr.mxu0 0.0
    %3067 = vmatpush1.msra.mxu0 0.0
    %3068 = vmatprep.subr.mxu0 0.0
    %3069 = vmatpush1.msra.mxu0 0.0
    %3070 = vmatprep.subr.mxu0 0.0
    %3071 = vmatpush1.msra.mxu0 0.0
    %3072 = vmatprep.subr.mxu0 0.0
    %3073 = vmatpush1.msra.mxu0 0.0
    %3074 = vmatprep.subr.mxu0 0.0
    %3075 = vmatpush1.msra.mxu0 0.0
    %3076 = vmatprep.subr.mxu0 0.0
    %3077 = vmatpush1.msra.mxu0 0.0
    %3078 = vmatprep.subr.mxu0 0.0
    %3079 = vmatpush1.msra.mxu0 0.0
    %3080 = vmatprep.subr.mxu0 0.0
    %3081 = vmatpush1.msra.mxu0 0.0
    %3082 = vmatprep.subr.mxu0 0.0
    %3083 = vmatpush1.msra.mxu0 0.0
    %3084 = vmatprep.subr.mxu0 0.0
    %3085 = vmatpush1.msra.mxu0 0.0
    %3086 = vmatprep.subr.mxu0 0.0
    %3087 = vmatpush1.msra.mxu0 0.0
    %3088 = vmatprep.subr.mxu0 0.0
    %3089 = vmatpush1.msra.mxu0 0.0
    %3090 = vmatprep.subr.mxu0 0.0
    %3091 = vmatpush1.msra.mxu0 0.0
    %3092 = vmatprep.subr.mxu0 0.0
    %3093 = vmatpush1.msra.mxu0 0.0
    %3094 = vmatprep.subr.mxu0 0.0
    %3095 = vmatpush1.msra.mxu0 0.0
    %3096 = vmatprep.subr.mxu0 0.0
    %3097 = vmatpush1.msra.mxu0 0.0
    %3098 = vmatprep.subr.mxu0 0.0
    %3099 = vmatpush1.msra.mxu0 0.0
    %3100 = vmatprep.subr.mxu0 0.0
    %3101 = vmatpush1.msra.mxu0 0.0
    %3102 = vmatprep.subr.mxu0 0.0
    %3103 = vmatpush1.msra.mxu0 0.0
    %3104 = vmatprep.subr.mxu0 0.0
    %3105 = vmatpush1.msra.mxu0 0.0
    %3106 = vmatprep.mubr.f32.mxu0 0.0
    %3107 = vmatmul.mubr.f32.gmra.mrb[0].mxu0 %v3040
    %v3108 = vpop.f32.mrb[0].mxu0
    %v3109 = vadd.f32 %v3038, %v3108
    %v3110 = vpop.f32.mrb[0].mxu0
    %3111 = vdwg.mxu0
    %s3112 = scalar_lea.vmem %s1, 896
    %v3113 = vld [vmem:[%s3112] sm:$0xff]
    %v3114 = vld [vmem:[%s3112 + $0x8] sm:$0xff]
    %v3115 = vld [vmem:[%s3112 + $0x10] sm:$0xff]
    %v3116 = vld [vmem:[%s3112 + $0x18] sm:$0xff]
    %s3117 = scalar_lea.vmem %s2, 224
    %v3118 = vld [vmem:[%s3117] sm:$0xff]
    %3119 = vmatprep.subr.mxu0 0.0
    %3120 = vmatpush1.msra.mxu0 %v3113
    %3121 = vmatprep.subr.mxu0 0.0
    %3122 = vmatpush1.msra.mxu0 %v3114
    %3123 = vmatprep.subr.mxu0 0.0
    %3124 = vmatpush1.msra.mxu0 %v3115
    %3125 = vmatprep.subr.mxu0 0.0
    %3126 = vmatpush1.msra.mxu0 %v3116
    %3127 = vmatprep.subr.mxu0 0.0
    %3128 = vmatpush1.msra.mxu0 0.0
    %3129 = vmatprep.subr.mxu0 0.0
    %3130 = vmatpush1.msra.mxu0 0.0
    %3131 = vmatprep.subr.mxu0 0.0
    %3132 = vmatpush1.msra.mxu0 0.0
    %3133 = vmatprep.subr.mxu0 0.0
    %3134 = vmatpush1.msra.mxu0 0.0
    %3135 = vmatprep.subr.mxu0 0.0
    %3136 = vmatpush1.msra.mxu0 0.0
    %3137 = vmatprep.subr.mxu0 0.0
    %3138 = vmatpush1.msra.mxu0 0.0
    %3139 = vmatprep.subr.mxu0 0.0
    %3140 = vmatpush1.msra.mxu0 0.0
    %3141 = vmatprep.subr.mxu0 0.0
    %3142 = vmatpush1.msra.mxu0 0.0
    %3143 = vmatprep.subr.mxu0 0.0
    %3144 = vmatpush1.msra.mxu0 0.0
    %3145 = vmatprep.subr.mxu0 0.0
    %3146 = vmatpush1.msra.mxu0 0.0
    %3147 = vmatprep.subr.mxu0 0.0
    %3148 = vmatpush1.msra.mxu0 0.0
    %3149 = vmatprep.subr.mxu0 0.0
    %3150 = vmatpush1.msra.mxu0 0.0
    %3151 = vmatprep.subr.mxu0 0.0
    %3152 = vmatpush1.msra.mxu0 0.0
    %3153 = vmatprep.subr.mxu0 0.0
    %3154 = vmatpush1.msra.mxu0 0.0
    %3155 = vmatprep.subr.mxu0 0.0
    %3156 = vmatpush1.msra.mxu0 0.0
    %3157 = vmatprep.subr.mxu0 0.0
    %3158 = vmatpush1.msra.mxu0 0.0
    %3159 = vmatprep.subr.mxu0 0.0
    %3160 = vmatpush1.msra.mxu0 0.0
    %3161 = vmatprep.subr.mxu0 0.0
    %3162 = vmatpush1.msra.mxu0 0.0
    %3163 = vmatprep.subr.mxu0 0.0
    %3164 = vmatpush1.msra.mxu0 0.0
    %3165 = vmatprep.subr.mxu0 0.0
    %3166 = vmatpush1.msra.mxu0 0.0
    %3167 = vmatprep.subr.mxu0 0.0
    %3168 = vmatpush1.msra.mxu0 0.0
    %3169 = vmatprep.subr.mxu0 0.0
    %3170 = vmatpush1.msra.mxu0 0.0
    %3171 = vmatprep.subr.mxu0 0.0
    %3172 = vmatpush1.msra.mxu0 0.0
    %3173 = vmatprep.subr.mxu0 0.0
    %3174 = vmatpush1.msra.mxu0 0.0
    %3175 = vmatprep.subr.mxu0 0.0
    %3176 = vmatpush1.msra.mxu0 0.0
    %3177 = vmatprep.subr.mxu0 0.0
    %3178 = vmatpush1.msra.mxu0 0.0
    %3179 = vmatprep.subr.mxu0 0.0
    %3180 = vmatpush1.msra.mxu0 0.0
    %3181 = vmatprep.subr.mxu0 0.0
    %3182 = vmatpush1.msra.mxu0 0.0
    %3183 = vmatprep.mubr.f32.mxu0 0.0
    %3184 = vmatmul.mubr.f32.gmra.mrb[0].mxu0 %v3040
    %v3185 = vpop.f32.mrb[0].mxu0
    %v3186 = vadd.f32 %v3118, %v3185
    %v3187 = vpop.f32.mrb[0].mxu0
    %3188 = vdwg.mxu0
    %v3189 = vmul.f32 %v3186, 0.5
    %v3190 = vtanh.pop %v3189
    %v3191 = vadd.f32 %v3190, 1.0
    %v3192 = vmul.f32 %v3191, 0.5
    %v3193 = vmul.f32 %v3109, %v3192
    %v3194 = vadd.f32 %v3193, %v3031
    %v3195 = vmul.f32 %v3194, 0.70710677
    %s3196 = scalar_lea.vmem %s1, 928
    %v3197 = vld [vmem:[%s3196] sm:$0xff]
    %v3198 = vld [vmem:[%s3196 + $0x8] sm:$0xff]
    %v3199 = vld [vmem:[%s3196 + $0x10] sm:$0xff]
    %v3200 = vld [vmem:[%s3196 + $0x18] sm:$0xff]
    %s3201 = scalar_lea.vmem %s2, 232
    %v3202 = vld [vmem:[%s3201] sm:$0xff]
    %v3204 = vsel %vm21, %v3195, 0
    %3206 = vmatprep.subr.mxu0 0.0
    %3207 = vmatpush1.msra.mxu0 %v3197
    %3208 = vmatprep.subr.mxu0 0.0
    %3209 = vmatpush1.msra.mxu0 %v3198
    %3210 = vmatprep.subr.mxu0 0.0
    %3211 = vmatpush1.msra.mxu0 %v3199
    %3212 = vmatprep.subr.mxu0 0.0
    %3213 = vmatpush1.msra.mxu0 %v3200
    %3214 = vmatprep.subr.mxu0 0.0
    %3215 = vmatpush1.msra.mxu0 0.0
    %3216 = vmatprep.subr.mxu0 0.0
    %3217 = vmatpush1.msra.mxu0 0.0
    %3218 = vmatprep.subr.mxu0 0.0
    %3219 = vmatpush1.msra.mxu0 0.0
    %3220 = vmatprep.subr.mxu0 0.0
    %3221 = vmatpush1.msra.mxu0 0.0
    %3222 = vmatprep.subr.mxu0 0.0
    %3223 = vmatpush1.msra.mxu0 0.0
    %3224 = vmatprep.subr.mxu0 0.0
    %3225 = vmatpush1.msra.mxu0 0.0
    %3226 = vmatprep.subr.mxu0 0.0
    %3227 = vmatpush1.msra.mxu0 0.0
    %3228 = vmatprep.subr.mxu0 0.0
    %3229 = vmatpush1.msra.mxu0 0.0
    %3230 = vmatprep.subr.mxu0 0.0
    %3231 = vmatpush1.msra.mxu0 0.0
    %3232 = vmatprep.subr.mxu0 0.0
    %3233 = vmatpush1.msra.mxu0 0.0
    %3234 = vmatprep.subr.mxu0 0.0
    %3235 = vmatpush1.msra.mxu0 0.0
    %3236 = vmatprep.subr.mxu0 0.0
    %3237 = vmatpush1.msra.mxu0 0.0
    %3238 = vmatprep.subr.mxu0 0.0
    %3239 = vmatpush1.msra.mxu0 0.0
    %3240 = vmatprep.subr.mxu0 0.0
    %3241 = vmatpush1.msra.mxu0 0.0
    %3242 = vmatprep.subr.mxu0 0.0
    %3243 = vmatpush1.msra.mxu0 0.0
    %3244 = vmatprep.subr.mxu0 0.0
    %3245 = vmatpush1.msra.mxu0 0.0
    %3246 = vmatprep.subr.mxu0 0.0
    %3247 = vmatpush1.msra.mxu0 0.0
    %3248 = vmatprep.subr.mxu0 0.0
    %3249 = vmatpush1.msra.mxu0 0.0
    %3250 = vmatprep.subr.mxu0 0.0
    %3251 = vmatpush1.msra.mxu0 0.0
    %3252 = vmatprep.subr.mxu0 0.0
    %3253 = vmatpush1.msra.mxu0 0.0
    %3254 = vmatprep.subr.mxu0 0.0
    %3255 = vmatpush1.msra.mxu0 0.0
    %3256 = vmatprep.subr.mxu0 0.0
    %3257 = vmatpush1.msra.mxu0 0.0
    %3258 = vmatprep.subr.mxu0 0.0
    %3259 = vmatpush1.msra.mxu0 0.0
    %3260 = vmatprep.subr.mxu0 0.0
    %3261 = vmatpush1.msra.mxu0 0.0
    %3262 = vmatprep.subr.mxu0 0.0
    %3263 = vmatpush1.msra.mxu0 0.0
    %3264 = vmatprep.subr.mxu0 0.0
    %3265 = vmatpush1.msra.mxu0 0.0
    %3266 = vmatprep.subr.mxu0 0.0
    %3267 = vmatpush1.msra.mxu0 0.0
    %3268 = vmatprep.subr.mxu0 0.0
    %3269 = vmatpush1.msra.mxu0 0.0
    %3270 = vmatprep.mubr.f32.mxu0 0.0
    %3271 = vmatmul.mubr.f32.gmra.mrb[0].mxu0 %v3204
    %v3272 = vpop.f32.mrb[0].mxu0
    %v3273 = vadd.f32 %v3202, %v3272
    %v3274 = vpop.f32.mrb[0].mxu0
    %3275 = vdwg.mxu0
    %s3276 = scalar_lea.vmem %s1, 960
    %v3277 = vld [vmem:[%s3276] sm:$0xff]
    %v3278 = vld [vmem:[%s3276 + $0x8] sm:$0xff]
    %v3279 = vld [vmem:[%s3276 + $0x10] sm:$0xff]
    %v3280 = vld [vmem:[%s3276 + $0x18] sm:$0xff]
    %s3281 = scalar_lea.vmem %s2, 240
    %v3282 = vld [vmem:[%s3281] sm:$0xff]
    %3283 = vmatprep.subr.mxu0 0.0
    %3284 = vmatpush1.msra.mxu0 %v3277
    %3285 = vmatprep.subr.mxu0 0.0
    %3286 = vmatpush1.msra.mxu0 %v3278
    %3287 = vmatprep.subr.mxu0 0.0
    %3288 = vmatpush1.msra.mxu0 %v3279
    %3289 = vmatprep.subr.mxu0 0.0
    %3290 = vmatpush1.msra.mxu0 %v3280
    %3291 = vmatprep.subr.mxu0 0.0
    %3292 = vmatpush1.msra.mxu0 0.0
    %3293 = vmatprep.subr.mxu0 0.0
    %3294 = vmatpush1.msra.mxu0 0.0
    %3295 = vmatprep.subr.mxu0 0.0
    %3296 = vmatpush1.msra.mxu0 0.0
    %3297 = vmatprep.subr.mxu0 0.0
    %3298 = vmatpush1.msra.mxu0 0.0
    %3299 = vmatprep.subr.mxu0 0.0
    %3300 = vmatpush1.msra.mxu0 0.0
    %3301 = vmatprep.subr.mxu0 0.0
    %3302 = vmatpush1.msra.mxu0 0.0
    %3303 = vmatprep.subr.mxu0 0.0
    %3304 = vmatpush1.msra.mxu0 0.0
    %3305 = vmatprep.subr.mxu0 0.0
    %3306 = vmatpush1.msra.mxu0 0.0
    %3307 = vmatprep.subr.mxu0 0.0
    %3308 = vmatpush1.msra.mxu0 0.0
    %3309 = vmatprep.subr.mxu0 0.0
    %3310 = vmatpush1.msra.mxu0 0.0
    %3311 = vmatprep.subr.mxu0 0.0
    %3312 = vmatpush1.msra.mxu0 0.0
    %3313 = vmatprep.subr.mxu0 0.0
    %3314 = vmatpush1.msra.mxu0 0.0
    %3315 = vmatprep.subr.mxu0 0.0
    %3316 = vmatpush1.msra.mxu0 0.0
    %3317 = vmatprep.subr.mxu0 0.0
    %3318 = vmatpush1.msra.mxu0 0.0
    %3319 = vmatprep.subr.mxu0 0.0
    %3320 = vmatpush1.msra.mxu0 0.0
    %3321 = vmatprep.subr.mxu0 0.0
    %3322 = vmatpush1.msra.mxu0 0.0
    %3323 = vmatprep.subr.mxu0 0.0
    %3324 = vmatpush1.msra.mxu0 0.0
    %3325 = vmatprep.subr.mxu0 0.0
    %3326 = vmatpush1.msra.mxu0 0.0
    %3327 = vmatprep.subr.mxu0 0.0
    %3328 = vmatpush1.msra.mxu0 0.0
    %3329 = vmatprep.subr.mxu0 0.0
    %3330 = vmatpush1.msra.mxu0 0.0
    %3331 = vmatprep.subr.mxu0 0.0
    %3332 = vmatpush1.msra.mxu0 0.0
    %3333 = vmatprep.subr.mxu0 0.0
    %3334 = vmatpush1.msra.mxu0 0.0
    %3335 = vmatprep.subr.mxu0 0.0
    %3336 = vmatpush1.msra.mxu0 0.0
    %3337 = vmatprep.subr.mxu0 0.0
    %3338 = vmatpush1.msra.mxu0 0.0
    %3339 = vmatprep.subr.mxu0 0.0
    %3340 = vmatpush1.msra.mxu0 0.0
    %3341 = vmatprep.subr.mxu0 0.0
    %3342 = vmatpush1.msra.mxu0 0.0
    %3343 = vmatprep.subr.mxu0 0.0
    %3344 = vmatpush1.msra.mxu0 0.0
    %3345 = vmatprep.subr.mxu0 0.0
    %3346 = vmatpush1.msra.mxu0 0.0
    %3347 = vmatprep.mubr.f32.mxu0 0.0
    %3348 = vmatmul.mubr.f32.gmra.mrb[0].mxu0 %v3204
    %v3349 = vpop.f32.mrb[0].mxu0
    %v3350 = vadd.f32 %v3282, %v3349
    %v3351 = vpop.f32.mrb[0].mxu0
    %3352 = vdwg.mxu0
    %v3353 = vmul.f32 %v3350, 0.5
    %v3354 = vtanh.pop %v3353
    %v3355 = vadd.f32 %v3354, 1.0
    %v3356 = vmul.f32 %v3355, 0.5
    %v3357 = vmul.f32 %v3273, %v3356
    %v3358 = vadd.f32 %v3357, %v3195
    %v3359 = vmul.f32 %v3358, 0.70710677
    %s3360 = scalar_lea.vmem %s1, 992
    %v3361 = vld [vmem:[%s3360] sm:$0xff]
    %v3362 = vld [vmem:[%s3360 + $0x8] sm:$0xff]
    %v3363 = vld [vmem:[%s3360 + $0x10] sm:$0xff]
    %v3364 = vld [vmem:[%s3360 + $0x18] sm:$0xff]
    %s3365 = scalar_lea.vmem %s2, 248
    %v3366 = vld [vmem:[%s3365] sm:$0xff]
    %v3368 = vsel %vm21, %v3359, 0
    %3370 = vmatprep.subr.mxu0 0.0
    %3371 = vmatpush1.msra.mxu0 %v3361
    %3372 = vmatprep.subr.mxu0 0.0
    %3373 = vmatpush1.msra.mxu0 %v3362
    %3374 = vmatprep.subr.mxu0 0.0
    %3375 = vmatpush1.msra.mxu0 %v3363
    %3376 = vmatprep.subr.mxu0 0.0
    %3377 = vmatpush1.msra.mxu0 %v3364
    %3378 = vmatprep.subr.mxu0 0.0
    %3379 = vmatpush1.msra.mxu0 0.0
    %3380 = vmatprep.subr.mxu0 0.0
    %3381 = vmatpush1.msra.mxu0 0.0
    %3382 = vmatprep.subr.mxu0 0.0
    %3383 = vmatpush1.msra.mxu0 0.0
    %3384 = vmatprep.subr.mxu0 0.0
    %3385 = vmatpush1.msra.mxu0 0.0
    %3386 = vmatprep.subr.mxu0 0.0
    %3387 = vmatpush1.msra.mxu0 0.0
    %3388 = vmatprep.subr.mxu0 0.0
    %3389 = vmatpush1.msra.mxu0 0.0
    %3390 = vmatprep.subr.mxu0 0.0
    %3391 = vmatpush1.msra.mxu0 0.0
    %3392 = vmatprep.subr.mxu0 0.0
    %3393 = vmatpush1.msra.mxu0 0.0
    %3394 = vmatprep.subr.mxu0 0.0
    %3395 = vmatpush1.msra.mxu0 0.0
    %3396 = vmatprep.subr.mxu0 0.0
    %3397 = vmatpush1.msra.mxu0 0.0
    %3398 = vmatprep.subr.mxu0 0.0
    %3399 = vmatpush1.msra.mxu0 0.0
    %3400 = vmatprep.subr.mxu0 0.0
    %3401 = vmatpush1.msra.mxu0 0.0
    %3402 = vmatprep.subr.mxu0 0.0
    %3403 = vmatpush1.msra.mxu0 0.0
    %3404 = vmatprep.subr.mxu0 0.0
    %3405 = vmatpush1.msra.mxu0 0.0
    %3406 = vmatprep.subr.mxu0 0.0
    %3407 = vmatpush1.msra.mxu0 0.0
    %3408 = vmatprep.subr.mxu0 0.0
    %3409 = vmatpush1.msra.mxu0 0.0
    %3410 = vmatprep.subr.mxu0 0.0
    %3411 = vmatpush1.msra.mxu0 0.0
    %3412 = vmatprep.subr.mxu0 0.0
    %3413 = vmatpush1.msra.mxu0 0.0
    %3414 = vmatprep.subr.mxu0 0.0
    %3415 = vmatpush1.msra.mxu0 0.0
    %3416 = vmatprep.subr.mxu0 0.0
    %3417 = vmatpush1.msra.mxu0 0.0
    %3418 = vmatprep.subr.mxu0 0.0
    %3419 = vmatpush1.msra.mxu0 0.0
    %3420 = vmatprep.subr.mxu0 0.0
    %3421 = vmatpush1.msra.mxu0 0.0
    %3422 = vmatprep.subr.mxu0 0.0
    %3423 = vmatpush1.msra.mxu0 0.0
    %3424 = vmatprep.subr.mxu0 0.0
    %3425 = vmatpush1.msra.mxu0 0.0
    %3426 = vmatprep.subr.mxu0 0.0
    %3427 = vmatpush1.msra.mxu0 0.0
    %3428 = vmatprep.subr.mxu0 0.0
    %3429 = vmatpush1.msra.mxu0 0.0
    %3430 = vmatprep.subr.mxu0 0.0
    %3431 = vmatpush1.msra.mxu0 0.0
    %3432 = vmatprep.subr.mxu0 0.0
    %3433 = vmatpush1.msra.mxu0 0.0
    %3434 = vmatprep.mubr.f32.mxu0 0.0
    %3435 = vmatmul.mubr.f32.gmra.mrb[0].mxu0 %v3368
    %v3436 = vpop.f32.mrb[0].mxu0
    %v3437 = vadd.f32 %v3366, %v3436
    %v3438 = vpop.f32.mrb[0].mxu0
    %3439 = vdwg.mxu0
    %s3440 = scalar_lea.vmem %s1, 1024
    %v3441 = vld [vmem:[%s3440] sm:$0xff]
    %v3442 = vld [vmem:[%s3440 + $0x8] sm:$0xff]
    %v3443 = vld [vmem:[%s3440 + $0x10] sm:$0xff]
    %v3444 = vld [vmem:[%s3440 + $0x18] sm:$0xff]
    %s3445 = scalar_lea.vmem %s2, 256
    %v3446 = vld [vmem:[%s3445] sm:$0xff]
    %3447 = vmatprep.subr.mxu0 0.0
    %3448 = vmatpush1.msra.mxu0 %v3441
    %3449 = vmatprep.subr.mxu0 0.0
    %3450 = vmatpush1.msra.mxu0 %v3442
    %3451 = vmatprep.subr.mxu0 0.0
    %3452 = vmatpush1.msra.mxu0 %v3443
    %3453 = vmatprep.subr.mxu0 0.0
    %3454 = vmatpush1.msra.mxu0 %v3444
    %3455 = vmatprep.subr.mxu0 0.0
    %3456 = vmatpush1.msra.mxu0 0.0
    %3457 = vmatprep.subr.mxu0 0.0
    %3458 = vmatpush1.msra.mxu0 0.0
    %3459 = vmatprep.subr.mxu0 0.0
    %3460 = vmatpush1.msra.mxu0 0.0
    %3461 = vmatprep.subr.mxu0 0.0
    %3462 = vmatpush1.msra.mxu0 0.0
    %3463 = vmatprep.subr.mxu0 0.0
    %3464 = vmatpush1.msra.mxu0 0.0
    %3465 = vmatprep.subr.mxu0 0.0
    %3466 = vmatpush1.msra.mxu0 0.0
    %3467 = vmatprep.subr.mxu0 0.0
    %3468 = vmatpush1.msra.mxu0 0.0
    %3469 = vmatprep.subr.mxu0 0.0
    %3470 = vmatpush1.msra.mxu0 0.0
    %3471 = vmatprep.subr.mxu0 0.0
    %3472 = vmatpush1.msra.mxu0 0.0
    %3473 = vmatprep.subr.mxu0 0.0
    %3474 = vmatpush1.msra.mxu0 0.0
    %3475 = vmatprep.subr.mxu0 0.0
    %3476 = vmatpush1.msra.mxu0 0.0
    %3477 = vmatprep.subr.mxu0 0.0
    %3478 = vmatpush1.msra.mxu0 0.0
    %3479 = vmatprep.subr.mxu0 0.0
    %3480 = vmatpush1.msra.mxu0 0.0
    %3481 = vmatprep.subr.mxu0 0.0
    %3482 = vmatpush1.msra.mxu0 0.0
    %3483 = vmatprep.subr.mxu0 0.0
    %3484 = vmatpush1.msra.mxu0 0.0
    %3485 = vmatprep.subr.mxu0 0.0
    %3486 = vmatpush1.msra.mxu0 0.0
    %3487 = vmatprep.subr.mxu0 0.0
    %3488 = vmatpush1.msra.mxu0 0.0
    %3489 = vmatprep.subr.mxu0 0.0
    %3490 = vmatpush1.msra.mxu0 0.0
    %3491 = vmatprep.subr.mxu0 0.0
    %3492 = vmatpush1.msra.mxu0 0.0
    %3493 = vmatprep.subr.mxu0 0.0
    %3494 = vmatpush1.msra.mxu0 0.0
    %3495 = vmatprep.subr.mxu0 0.0
    %3496 = vmatpush1.msra.mxu0 0.0
    %3497 = vmatprep.subr.mxu0 0.0
    %3498 = vmatpush1.msra.mxu0 0.0
    %3499 = vmatprep.subr.mxu0 0.0
    %3500 = vmatpush1.msra.mxu0 0.0
    %3501 = vmatprep.subr.mxu0 0.0
    %3502 = vmatpush1.msra.mxu0 0.0
    %3503 = vmatprep.subr.mxu0 0.0
    %3504 = vmatpush1.msra.mxu0 0.0
    %3505 = vmatprep.subr.mxu0 0.0
    %3506 = vmatpush1.msra.mxu0 0.0
    %3507 = vmatprep.subr.mxu0 0.0
    %3508 = vmatpush1.msra.mxu0 0.0
    %3509 = vmatprep.subr.mxu0 0.0
    %3510 = vmatpush1.msra.mxu0 0.0
    %3511 = vmatprep.mubr.f32.mxu0 0.0
    %3512 = vmatmul.mubr.f32.gmra.mrb[0].mxu0 %v3368
    %v3513 = vpop.f32.mrb[0].mxu0
    %v3514 = vadd.f32 %v3446, %v3513
    %v3515 = vpop.f32.mrb[0].mxu0
    %3516 = vdwg.mxu0
    %v3517 = vmul.f32 %v3514, 0.5
    %v3518 = vtanh.pop %v3517
    %v3519 = vadd.f32 %v3518, 1.0
    %v3520 = vmul.f32 %v3519, 0.5
    %v3521 = vmul.f32 %v3437, %v3520
    %v3522 = vadd.f32 %v3521, %v3359
    %v3523 = vmul.f32 %v3522, 0.70710677
    %v3524 = vmax.f32 %v3523, 0.0
    %v3525 = vadd.f32 %v2600, %v3524
    %s3526 = scalar_lea.vmem %s1, 1152
    %v3527 = vld [vmem:[%s3526] sm:$0xff]
    %v3528 = vld [vmem:[%s3526 + $0x8] sm:$0xff]
    %v3529 = vld [vmem:[%s3526 + $0x10] sm:$0xff]
    %v3530 = vld [vmem:[%s3526 + $0x18] sm:$0xff]
    %v3532 = vsel %vm21, %v3525, 0
    %3534 = vmatprep.subr.mxu0 0.0
    %3535 = vmatpush1.msra.mxu0 %v3527
    %3536 = vmatprep.subr.mxu0 0.0
    %3537 = vmatpush1.msra.mxu0 %v3528
    %3538 = vmatprep.subr.mxu0 0.0
    %3539 = vmatpush1.msra.mxu0 %v3529
    %3540 = vmatprep.subr.mxu0 0.0
    %3541 = vmatpush1.msra.mxu0 %v3530
    %3542 = vmatprep.subr.mxu0 0.0
    %3543 = vmatpush1.msra.mxu0 0.0
    %3544 = vmatprep.subr.mxu0 0.0
    %3545 = vmatpush1.msra.mxu0 0.0
    %3546 = vmatprep.subr.mxu0 0.0
    %3547 = vmatpush1.msra.mxu0 0.0
    %3548 = vmatprep.subr.mxu0 0.0
    %3549 = vmatpush1.msra.mxu0 0.0
    %3550 = vmatprep.subr.mxu0 0.0
    %3551 = vmatpush1.msra.mxu0 0.0
    %3552 = vmatprep.subr.mxu0 0.0
    %3553 = vmatpush1.msra.mxu0 0.0
    %3554 = vmatprep.subr.mxu0 0.0
    %3555 = vmatpush1.msra.mxu0 0.0
    %3556 = vmatprep.subr.mxu0 0.0
    %3557 = vmatpush1.msra.mxu0 0.0
    %3558 = vmatprep.subr.mxu0 0.0
    %3559 = vmatpush1.msra.mxu0 0.0
    %3560 = vmatprep.subr.mxu0 0.0
    %3561 = vmatpush1.msra.mxu0 0.0
    %3562 = vmatprep.subr.mxu0 0.0
    %3563 = vmatpush1.msra.mxu0 0.0
    %3564 = vmatprep.subr.mxu0 0.0
    %3565 = vmatpush1.msra.mxu0 0.0
    %3566 = vmatprep.subr.mxu0 0.0
    %3567 = vmatpush1.msra.mxu0 0.0
    %3568 = vmatprep.subr.mxu0 0.0
    %3569 = vmatpush1.msra.mxu0 0.0
    %3570 = vmatprep.subr.mxu0 0.0
    %3571 = vmatpush1.msra.mxu0 0.0
    %3572 = vmatprep.subr.mxu0 0.0
    %3573 = vmatpush1.msra.mxu0 0.0
    %3574 = vmatprep.subr.mxu0 0.0
    %3575 = vmatpush1.msra.mxu0 0.0
    %3576 = vmatprep.subr.mxu0 0.0
    %3577 = vmatpush1.msra.mxu0 0.0
    %3578 = vmatprep.subr.mxu0 0.0
    %3579 = vmatpush1.msra.mxu0 0.0
    %3580 = vmatprep.subr.mxu0 0.0
    %3581 = vmatpush1.msra.mxu0 0.0
    %3582 = vmatprep.subr.mxu0 0.0
    %3583 = vmatpush1.msra.mxu0 0.0
    %3584 = vmatprep.subr.mxu0 0.0
    %3585 = vmatpush1.msra.mxu0 0.0
    %3586 = vmatprep.subr.mxu0 0.0
    %3587 = vmatpush1.msra.mxu0 0.0
    %3588 = vmatprep.subr.mxu0 0.0
    %3589 = vmatpush1.msra.mxu0 0.0
    %3590 = vmatprep.subr.mxu0 0.0
    %3591 = vmatpush1.msra.mxu0 0.0
    %3592 = vmatprep.subr.mxu0 0.0
    %3593 = vmatpush1.msra.mxu0 0.0
    %3594 = vmatprep.subr.mxu0 0.0
    %3595 = vmatpush1.msra.mxu0 0.0
    %3596 = vmatprep.subr.mxu0 0.0
    %3597 = vmatpush1.msra.mxu0 0.0
    %3598 = vmatprep.mubr.f32.mxu0 0.0
    %3599 = vmatmul.mubr.f32.gmra.mrb[0].mxu0 %v3532
    %v3600 = vpop.f32.mrb[0].mxu0
    %v3601 = vadd.f32 0.0, %v3600
    %v3602 = vpop.f32.mrb[0].mxu0
    %3603 = vdwg.mxu0
    %3604 = vst.msk [vmem:[#allocation2] sm:$0xff] %vm21, %v3601
    // Predicated region
    $region14: #{tpu_custom_call.1} parent=1 // pred_check
      _
    $region15: #{tpu_custom_call.1} parent=1 // pred_check_branch
      %3606 = sbr.rel (0) target = $region17
    $region16: #{tpu_custom_call.1} parent=1 // pred_region
      %s3608 = ssub.s32 128, 128
      %3609 = vsyncadd [#allocation3], %s3608
      %s3611 = sshll.u32 [#allocation2], 4
      %s3612 = int_to_ptr.vmem [resolvable:$true] %s3611
      %3614 = dma.vmem_to_hbm [thread:$0]  %s3612, 128, %s3, [#allocation3]
    $region17: #{tpu_custom_call.1} parent=1 // pred_fallthru
      _
    // Predicated region
    $region18: #{tpu_custom_call.1} parent=1 // pred_check
      _
    $region19: #{tpu_custom_call.1} parent=1 // pred_check_branch
      %3616 = sbr.rel (0) target = $region21
    $region20: #{tpu_custom_call.1} parent=1 // pred_region
      %3617 = dma.done [#allocation3], 128
    $region21: #{tpu_custom_call.1} parent=1 // pred_fallthru
      _
    %3618 = vsyncpa [#allocation3], 1

</llo_original>
